<compile_context>
chip_gen: v5e
topology: v5e:2x2
jax: 0.10.0
libtpu: 0.0.40
codegen_flags: <defaults>
</compile_context>

<pallas_src>
import functools
import math

import jax
import jax.numpy as jnp
from jax.experimental import pallas as pl
from jax.experimental.pallas import tpu as pltpu


# ----------------------------------------------------------------------------
# small helpers
# ----------------------------------------------------------------------------
def _round_up(x, m):
    return (x + m - 1) // m * m


def _pick_vmem_limit():
    """~5/8 of physical VMEM per core (40 MiB on v7x, ~80 MiB on v5e/v6e)."""
    try:
        info = pltpu.get_tpu_info()
        for attr in ("vmem_capacity_bytes", "vmem_bytes", "vmem_size_bytes"):
            cap = getattr(info, attr, None)
            if isinstance(cap, int) and cap > 0:
                return int(max(min(cap * 5 // 8, 100 * 1024 * 1024),
                               32 * 1024 * 1024))
    except Exception:
        pass
    return 40 * 1024 * 1024            # conservative fallback (v7x-safe)


_VMEM_LIMIT = _pick_vmem_limit()


def _gelu(x):
    # tanh approximation: the transcendental goes to the EUP slot (the LN and
    # epilogue kernels are otherwise VPU-bound).  ~1e-3 abs deviation from the
    # exact erf-GELU of the reference module.
    c = math.sqrt(2.0 / math.pi)
    return 0.5 * x * (1.0 + jnp.tanh(c * (x + 0.044715 * x * x * x)))


# ----------------------------------------------------------------------------
# Tiled matmul: (M,K) @ (K,N) + bias [+ fused GELU]; accumulates in o_ref (f32)
# ----------------------------------------------------------------------------
def _linear_kernel(x_ref, w_ref, b_ref, o_ref, *, apply_gelu):
    k = pl.program_id(2)

    @pl.when(k == 0)
    def _():
        o_ref[...] = jnp.broadcast_to(b_ref[...], o_ref.shape).astype(o_ref.dtype)

    o_ref[...] += jnp.dot(x_ref[...].astype(jnp.bfloat16),
                          w_ref[...].astype(jnp.bfloat16),
                          preferred_element_type=jnp.float32)

    if apply_gelu:
        @pl.when(k == pl.num_programs(2) - 1)
        def _():
            o_ref[...] = _gelu(o_ref[...])


def linear_pallas(x, w, b, apply_gelu=False):
    """x: (M, K) f32, w: (K, N) f32, b: (N,) f32 -> (M, N) f32."""
    M, K = x.shape
    N = w.shape[1]

    tm = min(_round_up(M, 8), 512)
    Mp = _round_up(M, tm)
    if N <= 512:                       # full-extent N block (exempt from 128 rule)
        tn, Np = N, N
    else:
        tn = 512
        Np = _round_up(N, tn)
    if K <= 2048:                      # whole contraction in one block; keeps the
        tk, Kp = K, K                  # 9-wide im2col un-padded (no 14x zero work)
    else:
        tk = 512
        Kp = _round_up(K, tk)

    xp = x if (Mp == M and Kp == K) else jnp.pad(x, ((0, Mp - M), (0, Kp - K)))
    wp = w if (Kp == K and Np == N) else jnp.pad(w, ((0, Kp - K), (0, Np - N)))
    bp = (b if Np == N else jnp.pad(b, (0, Np - N))).reshape(1, Np)

    out = pl.pallas_call(
        functools.partial(_linear_kernel, apply_gelu=apply_gelu),
        out_shape=jax.ShapeDtypeStruct((Mp, Np), jnp.float32),
        grid=(Mp // tm, Np // tn, Kp // tk),
        in_specs=[pl.BlockSpec((tm, tk), lambda i, j, k: (i, k)),
                  pl.BlockSpec((tk, tn), lambda i, j, k: (k, j)),
                  pl.BlockSpec((1, tn), lambda i, j, k: (0, j))],
        out_specs=pl.BlockSpec((tm, tn), lambda i, j, k: (i, j)),
        compiler_params=pltpu.CompilerParams(
            dimension_semantics=("parallel", "parallel", "arbitrary"),
            vmem_limit_bytes=_VMEM_LIMIT),
    )(xp, wp, bp)
    return out[:M, :N] if (Mp != M or Np != N) else out


# ----------------------------------------------------------------------------
# LayerNorm over the last (lane) dim [+ fused GELU], row-tiled
# ----------------------------------------------------------------------------
def _ln_rows_kernel(x_ref, g_ref, b_ref, o_ref, *, eps, apply_gelu):
    x = x_ref[...]
    mean = jnp.mean(x, axis=-1, keepdims=True)
    var = jnp.mean(jnp.square(x - mean), axis=-1, keepdims=True)
    y = (x - mean) * jax.lax.rsqrt(var + eps)
    y = y * g_ref[...] + b_ref[...]
    if apply_gelu:
        y = _gelu(y)
    o_ref[...] = y.astype(o_ref.dtype)


def layernorm_pallas(x2d, gamma, beta, eps=1e-5, apply_gelu=False):
    """x2d: (M, D); LayerNorm over D (last dim)."""
    M, D = x2d.shape
    tm = min(_round_up(M, 8), 512)
    Mp = _round_up(M, tm)
    xp = x2d if Mp == M else jnp.pad(x2d, ((0, Mp - M), (0, 0)))
    out = pl.pallas_call(
        functools.partial(_ln_rows_kernel, eps=eps, apply_gelu=apply_gelu),
        out_shape=jax.ShapeDtypeStruct((Mp, D), jnp.float32),
        grid=(Mp // tm,),
        in_specs=[pl.BlockSpec((tm, D), lambda i: (i, 0)),
                  pl.BlockSpec((1, D), lambda i: (0, 0)),
                  pl.BlockSpec((1, D), lambda i: (0, 0))],
        out_specs=pl.BlockSpec((tm, D), lambda i: (i, 0)),
        compiler_params=pltpu.CompilerParams(
            dimension_semantics=("parallel",),
            vmem_limit_bytes=_VMEM_LIMIT),
    )(xp, gamma.reshape(1, D), beta.reshape(1, D))
    return out[:M] if Mp != M else out


# ----------------------------------------------------------------------------
# CNNLayerNorm + GELU on NHWC slabs (normalize over the feature axis F),
# tiled over (batch, time) so realistic utterances fit VMEM and pipeline.
# ----------------------------------------------------------------------------
def _time_tile(T):
    return min(_round_up(T, 8), 128)


def _ln_feat_kernel(x_ref, g_ref, b_ref, o_ref, *, eps):
    x = x_ref[...]                                   # (F, tT, C)
    mean = jnp.mean(x, axis=0, keepdims=True)        # reduce over F (outer dim)
    var = jnp.mean(jnp.square(x - mean), axis=0, keepdims=True)
    y = (x - mean) * jax.lax.rsqrt(var + eps)
    y = y * g_ref[...] + b_ref[...]                  # (F, 1, 1) broadcast
    o_ref[...] = _gelu(y).astype(o_ref.dtype)


def cnn_layernorm_gelu_nhwc(x, gamma, beta, eps=1e-5):
    """x: (B, F, T, C) NHWC; LayerNorm over F (per b,t,c), then GELU."""
    B, F, T, C = x.shape
    tT = _time_tile(T)
    Tp = _round_up(T, tT)
    xp = x if Tp == T else jnp.pad(x, ((0, 0), (0, 0), (0, Tp - T), (0, 0)))
    out = pl.pallas_call(
        functools.partial(_ln_feat_kernel, eps=eps),
        out_shape=jax.ShapeDtypeStruct((B, F, Tp, C), jnp.float32),
        grid=(B, Tp // tT),
        in_specs=[pl.BlockSpec((None, F, tT, C), lambda b, j: (b, 0, j, 0)),
                  pl.BlockSpec((None, F, 1, 1), lambda b, j: (0, 0, 0, 0)),
                  pl.BlockSpec((None, F, 1, 1), lambda b, j: (0, 0, 0, 0))],
        out_specs=pl.BlockSpec((None, F, tT, C), lambda b, j: (b, 0, j, 0)),
        compiler_params=pltpu.CompilerParams(
            dimension_semantics=("parallel", "parallel"),
            vmem_limit_bytes=_VMEM_LIMIT),
    )(xp, gamma.reshape(1, F, 1, 1), beta.reshape(1, F, 1, 1))
    return out[:, :, :T] if Tp != T else out


# ----------------------------------------------------------------------------
# 3x3 stride-1 conv (padding=1) on NHWC, tiled over (batch, time) with a
# 1-column halo.  The 3 kw taps are folded into the contraction so the MXU
# sees 3 dots of K=3*Cin=96 instead of nine K=32 dots; bias + residual fused.
# ----------------------------------------------------------------------------
def _conv3x3_kernel(x_ref, w_ref, b_ref, *rest, add_residual):
    if add_residual:
        res_ref, o_ref = rest
    else:
        (o_ref,) = rest
    F, tT, Cout = o_ref.shape
    x = x_ref[...]                                   # (F+2, tT+2, Cin) padded tile
    Cin = x.shape[-1]

    # fold the 3 kw taps into the channel (contraction) dim -> (F+2, tT, 3*Cin)
    xc = jnp.concatenate(
        [x[:, 0:tT, :], x[:, 1:tT + 1, :], x[:, 2:tT + 2, :]], axis=-1)

    acc = jnp.zeros((F * tT, Cout), jnp.float32)
    for kh in range(3):                              # 3 dots, K = 3*Cin
        a = xc[kh:kh + F].reshape(F * tT, 3 * Cin).astype(jnp.bfloat16)
        acc = acc + jnp.dot(a, w_ref[kh].astype(jnp.bfloat16),
                            preferred_element_type=jnp.float32)

    out = (acc + b_ref[...]).reshape(F, tT, Cout)
    if add_residual:
        out = out + res_ref[...]
    o_ref[...] = out.astype(o_ref.dtype)


def conv3x3_s1_nhwc_pallas(x, wk, b, residual=None):
    """x: (B, F, T, Cin) NHWC; wk: (3, 3*Cin, Cout) [kh, kw*Cin+ci, co]; b: (Cout,)."""
    B, F, T, Cin = x.shape
    Cout = wk.shape[-1]
    tT = _time_tile(T)
    Tp = _round_up(T, tT)
    nTt = Tp // tT
    add_res = residual is not None

    # zero-pad (F by 1, T by 1 + alignment) and cut overlapping time windows
    # with a 1-column halo: bounded VMEM per grid step + pipelined DMAs.
    xpad = jnp.pad(x, ((0, 0), (1, 1), (1, 1 + Tp - T), (0, 0)))
    x_tiles = jnp.stack(
        [xpad[:, :, j * tT:j * tT + tT + 2, :] for j in range(nTt)], axis=1)

    in_specs = [pl.BlockSpec((None, None, F + 2, tT + 2, Cin),
                             lambda bb, j: (bb, j, 0, 0, 0)),
                pl.BlockSpec((3, 3 * Cin, Cout), lambda bb, j: (0, 0, 0)),
                pl.BlockSpec((1, Cout), lambda bb, j: (0, 0))]
    args = [x_tiles, wk, b.reshape(1, Cout)]
    if add_res:
        res_p = residual if Tp == T else jnp.pad(
            residual, ((0, 0), (0, 0), (0, Tp - T), (0, 0)))
        in_specs.append(pl.BlockSpec((None, F, tT, Cout),
                                     lambda bb, j: (bb, 0, j, 0)))
        args.append(res_p)

    out = pl.pallas_call(
        functools.partial(_conv3x3_kernel, add_residual=add_res),
        out_shape=jax.ShapeDtypeStruct((B, F, Tp, Cout), jnp.float32),
        grid=(B, nTt),
        in_specs=in_specs,
        out_specs=pl.BlockSpec((None, F, tT, Cout), lambda bb, j: (bb, 0, j, 0)),
        compiler_params=pltpu.CompilerParams(
            dimension_semantics=("parallel", "parallel"),
            vmem_limit_bytes=_VMEM_LIMIT),
    )(*args)
    return out[:, :, :T] if Tp != T else out


# ----------------------------------------------------------------------------
# First conv (Cin=1, stride 2): cheap single-channel im2col (K=9, un-padded)
# + tiled matmul producing NHWC directly.
# ----------------------------------------------------------------------------
def conv_in_stride2(x, wm, b, stride=2):
    """x: (B, 1, F, T); wm: (9, Cout); b: (Cout,) -> (B, Fo, To, Cout) NHWC."""
    B, _, F, T = x.shape
    Cout = wm.shape[1]
    Fo = (F + 2 - 3) // stride + 1
    To = (T + 2 - 3) // stride + 1
    xp = jnp.pad(x[:, 0], ((0, 0), (1, 1), (1, 1)))          # (B, F+2, T+2)
    cols = []
    for kh in range(3):
        for kw in range(3):
            cols.append(jax.lax.slice(
                xp, (0, kh, kw),
                (B, kh + (Fo - 1) * stride + 1, kw + (To - 1) * stride + 1),
                (1, stride, stride)))
    patches = jnp.stack(cols, axis=-1).reshape(B * Fo * To, 9)
    out = linear_pallas(patches, wm, b)                       # K=9 stays K=9
    return out.reshape(B, Fo, To, Cout)


# ----------------------------------------------------------------------------
# Bidirectional GRU: grid=(2 directions [parallel], time tiles [arbitrary]).
# The input projection is fused per time-tile (one big MXU dot), the recurrent
# step uses a single fused (N,H)@(H,3H) dot, h is carried in vregs inside the
# tile and handed across tiles via a VMEM scratch.  The backward direction is
# handled by reversed index_maps + reversed in-tile indices, so outputs land
# in forward-time order with no HBM flips / gate re-layouts.
# ----------------------------------------------------------------------------
def _bigru_kernel(x_ref, wih_ref, bih_ref, whh_ref, bhh_ref, out_ref,
                  g_scr, h_scr, *, s_real):
    d = pl.program_id(0)                  # 0 = forward, 1 = backward
    tb = pl.program_id(1)                 # time-tile counter (per direction)
    nT = pl.num_programs(1)
    tS, N, H = out_ref.shape
    # which time-tile the index_map actually loaded (reversed for d == 1)
    t_blk = (1 - d) * tb + d * (nT - 1 - tb)

    @pl.when(tb == 0)
    def _():
        h_scr[...] = jnp.zeros_like(h_scr)

    # --- input projection for the whole tile on the MXU: (tS*N, D) @ (D, 3H)
    g_scr[...] = (jnp.dot(x_ref[...].astype(jnp.bfloat16),
                          wih_ref[...].astype(jnp.bfloat16),
                          preferred_element_type=jnp.float32)
                  + bih_ref[...])

    w_hh = whh_ref[...].astype(jnp.bfloat16)      # (H, 3H), gate blocks [r|z|n]
    b_hh = bhh_ref[...]                           # (1, 3H)

    def step(s, h):
        # local time index inside the tile (reversed scan for the backward dir)
        lt = jnp.where(d == 0, s, tS - 1 - s)
        row = pl.multiple_of(lt * N, 8)
        g = g_scr[pl.ds(row, N), :]               # (N, 3H) pre-computed gates
        gh = jnp.dot(h.astype(jnp.bfloat16), w_hh,
                     preferred_element_type=jnp.float32) + b_hh
        r = jax.nn.sigmoid(g[:, 0:H] + gh[:, 0:H])
        z = jax.nn.sigmoid(g[:, H:2 * H] + gh[:, H:2 * H])
        n = jnp.tanh(g[:, 2 * H:3 * H] + r * gh[:, 2 * H:3 * H])
        h_new = (1.0 - z) * n + z * h
        # keep h unchanged on zero-padded timesteps (keeps the bwd scan exact)
        h_new = jnp.where(t_blk * tS + lt < s_real, h_new, h)
        out_ref[lt] = h_new.astype(out_ref.dtype)
        return h_new

    h_scr[...] = jax.lax.fori_loop(0, tS, step, h_scr[...])


def bidir_gru_pallas(x_snd, gp):
    """Single-layer bidirectional GRU (PyTorch semantics). x_snd: (S, N, D)."""
    S, N, D = x_snd.shape
    H = gp["w_hh"].shape[-1] // 3

    Nr = _round_up(N, 8)                  # pad batch to sublane multiple
    # time-tile sized so (tile rows) x (D + 3H) stays comfortably in VMEM
    tS = max(1, min(S, 1024 // Nr if Nr <= 1024 else 1))
    Sp = _round_up(S, tS)
    nT = Sp // tS

    xp = jnp.pad(x_snd, ((0, Sp - S), (0, Nr - N), (0, 0)))
    x2d = xp.reshape(Sp * Nr, D)          # row = t*Nr + n  (free reshape)

    def t_map(d, t):
        return (1 - d) * t + d * (nT - 1 - t)

    out = pl.pallas_call(
        functools.partial(_bigru_kernel, s_real=S),
        out_shape=jax.ShapeDtypeStruct((2, Sp, Nr, H), jnp.float32),
        grid=(2, nT),
        in_specs=[
            pl.BlockSpec((tS * Nr, D), lambda d, t: (t_map(d, t), 0)),
            pl.BlockSpec((None, D, 3 * H), lambda d, t: (d, 0, 0)),
            pl.BlockSpec((None, 1, 3 * H), lambda d, t: (d, 0, 0)),
            pl.BlockSpec((None, H, 3 * H), lambda d, t: (d, 0, 0)),
            pl.BlockSpec((None, 1, 3 * H), lambda d, t: (d, 0, 0)),
        ],
        out_specs=pl.BlockSpec((None, tS, Nr, H),
                               lambda d, t: (d, t_map(d, t), 0, 0)),
        scratch_shapes=[pltpu.VMEM((tS * Nr, 3 * H), jnp.float32),
                        pltpu.VMEM((Nr, H), jnp.float32)],
        compiler_params=pltpu.CompilerParams(
            # directions go to separate cores on v7x; time carries h -> arbitrary
            dimension_semantics=("parallel", "arbitrary"),
            vmem_limit_bytes=_VMEM_LIMIT),
    )(x2d, gp["w_ih"], gp["b_ih"], gp["w_hh"], gp["b_hh"])

    # outputs are already in forward-time order for both directions
    h_f = out[0, :S, :N]
    h_b = out[1, :S, :N]
    return jnp.concatenate([h_f, h_b], axis=-1)       # (S, N, 2H)


# ----------------------------------------------------------------------------
# Full forward pass
# ----------------------------------------------------------------------------
def speech_model_forward(x, params):
    """x: (B, 1, n_feats, time) NCHW f32 -> (B, time//2, n_class)."""
    # initial stride-2 conv -> NHWC (B, F2, T2, 32)
    x = conv_in_stride2(x, params["cnn_wm"], params["cnn_b"], stride=2)

    # residual CNN stack, entirely in NHWC (no per-layer layout transposes)
    for p in params["rescnn"]:
        res = x
        y = cnn_layernorm_gelu_nhwc(x, p["ln1_g"], p["ln1_b"])   # dropout: id
        y = conv3x3_s1_nhwc_pallas(y, p["conv1_wk"], p["conv1_b"])
        y = cnn_layernorm_gelu_nhwc(y, p["ln2_g"], p["ln2_b"])   # dropout: id
        x = conv3x3_s1_nhwc_pallas(y, p["conv2_wk"], p["conv2_b"],
                                   residual=res)

    # torch: view(B, C*F, T).transpose(1, 2)  (feature index = c*F + f)
    B, F2, T2, C = x.shape
    x = x.transpose(0, 2, 3, 1).reshape(B, T2, C * F2)
    x = linear_pallas(x.reshape(B * T2, C * F2), params["fc_w_t"],
                      params["fc_b"]).reshape(B, T2, -1)

    for i, gp in enumerate(params["gru"]):
        S0, S1, D = x.shape
        y = layernorm_pallas(x.reshape(S0 * S1, D), gp["ln_g"], gp["ln_b"],
                             apply_gelu=True).reshape(S0, S1, D)
        # dropout: identity (inference)
        if i == 0:
            # batch_first=True: recurrence over the time axis
            x = bidir_gru_pallas(y.transpose(1, 0, 2), gp).transpose(1, 0, 2)
        else:
            # batch_first=False quirk of the reference module: the GRU scans
            # axis 0 of the (B, T, 2H) tensor (the batch axis).  Kept as-spec'd.
            x = bidir_gru_pallas(y, gp)

    B2, T2b, D2 = x.shape
    h = linear_pallas(x.reshape(B2 * T2b, D2), params["cls1_w_t"],
                      params["cls1_b"], apply_gelu=True)         # Linear+GELU
    out = linear_pallas(h, params["cls2_w_t"], params["cls2_b"])
    return out.reshape(B2, T2b, -1)


# ----------------------------------------------------------------------------
# deterministic synthetic parameters (PyTorch shapes -> kernel layouts; all
# transposes / gate re-layouts hoisted here so the forward pass never does .T)
# ----------------------------------------------------------------------------
def init_params(key, n_cnn_layers, n_rnn_layers, rnn_dim, n_class, n_feats):
    F2 = n_feats // 2
    H = rnn_dim
    keys = iter(jax.random.split(key, 4096))

    def nrm(shape, scale=0.1):
        return scale * jax.random.normal(next(keys), shape, jnp.float32)

    cnn_w = nrm((32, 1, 3, 3))
    params = {
        "cnn_wm": cnn_w.reshape(32, 9).T,                  # (9, 32)
        "cnn_b": nrm((32,)),
        "rescnn": [], "gru": [],
        "fc_w_t": nrm((rnn_dim, F2 * 32)).T,               # (F2*32, rnn_dim)
        "fc_b": nrm((rnn_dim,)),
        "cls1_w_t": nrm((rnn_dim, rnn_dim * 2)).T,
        "cls1_b": nrm((rnn_dim,)),
        "cls2_w_t": nrm((n_class, rnn_dim)).T,
        "cls2_b": nrm((n_class,)),
    }
    for _ in range(n_cnn_layers):
        c1 = nrm((32, 32, 3, 3))
        c2 = nrm((32, 32, 3, 3))
        params["rescnn"].append(dict(
            ln1_g=jnp.ones((F2,), jnp.float32),
            ln1_b=jnp.zeros((F2,), jnp.float32),
            # (kh, kw*Cin+ci, co): kw taps folded into the contraction dim
            conv1_wk=c1.transpose(2, 3, 1, 0).reshape(3, 3 * 32, 32),
            conv1_b=nrm((32,)),
            ln2_g=jnp.ones((F2,), jnp.float32),
            ln2_b=jnp.zeros((F2,), jnp.float32),
            conv2_wk=c2.transpose(2, 3, 1, 0).reshape(3, 3 * 32, 32),
            conv2_b=nrm((32,)),
        ))
    for i in range(n_rnn_layers):
        in_dim = rnn_dim if i == 0 else rnn_dim * 2
        w_ih_f, w_hh_f = nrm((3 * H, in_dim)), nrm((3 * H, H))
        b_ih_f, b_hh_f = nrm((3 * H,)), nrm((3 * H,))
        w_ih_b, w_hh_b = nrm((3 * H, in_dim)), nrm((3 * H, H))
        b_ih_b, b_hh_b = nrm((3 * H,)), nrm((3 * H,))
        params["gru"].append(dict(
            ln_g=jnp.ones((in_dim,), jnp.float32),
            ln_b=jnp.zeros((in_dim,), jnp.float32),
            # per-direction input projection, gate columns [r|z|n]: (2, D, 3H)
            w_ih=jnp.stack([w_ih_f.T, w_ih_b.T]),
            b_ih=jnp.stack([b_ih_f, b_ih_b]).reshape(2, 1, 3 * H),
            # per-direction recurrent weights, fused gate columns: (2, H, 3H)
            w_hh=jnp.stack([w_hh_f.T, w_hh_b.T]),
            b_hh=jnp.stack([b_hh_f, b_hh_b]).reshape(2, 1, 3 * H),
        ))
    return params


if __name__ == "__main__":
    n_cnn_layers, n_rnn_layers = 2, 2
    rnn_dim, n_class, n_feats = 32, 10, 16
    B, T = 2, 16

    key = jax.random.PRNGKey(0)
    pkey, xkey = jax.random.split(key)
    params = init_params(pkey, n_cnn_layers, n_rnn_layers, rnn_dim,
                         n_class, n_feats)
    x = jax.random.normal(xkey, (B, 1, n_feats, T), jnp.float32)   # NCHW

    fwd = jax.jit(speech_model_forward)
    out = jax.block_until_ready(fwd(x, params))
    assert out.shape == (B, T // 2, n_class), out.shape
    assert bool(jnp.all(jnp.isfinite(out)))
    print("KERNEL_OK")
</pallas_src>

<mosaic_0001>
module attributes {stable_mosaic.version = 11 : i64} {
  func.func @_linear_kernel(%arg0: i32, %arg1: i32, %arg2: i32, %arg3: memref<128x9xf32, #tpu.memory_space<vmem>>, %arg4: memref<9x32xf32, #tpu.memory_space<vmem>>, %arg5: memref<1x32xf32, #tpu.memory_space<vmem>>, %arg6: memref<128x32xf32, #tpu.memory_space<vmem>>) attributes {dimension_semantics = [#tpu.dimension_semantics<parallel>, #tpu.dimension_semantics<parallel>, #tpu.dimension_semantics<arbitrary>], iteration_bounds = array<i64: 1, 1, 1>, scalar_prefetch = 0 : i64, scratch_operands = 0 : i64, tpu.core_type = #tpu.core_type<tc>, window_params = [{transform_indices = @transform_0, window_bounds = array<i64: 128, 9>}, {transform_indices = @transform_1, window_bounds = array<i64: 9, 32>}, {transform_indices = @transform_2, window_bounds = array<i64: 1, 32>}, {transform_indices = @transform_3, window_bounds = array<i64: 128, 32>}]} {
    %c0_i32 = arith.constant 0 : i32
    %0 = arith.cmpi eq, %arg2, %c0_i32 : i32
    %1 = arith.extui %0 : i1 to i32
    %c0_i32_0 = arith.constant 0 : i32
    %2 = arith.cmpi ne, %1, %c0_i32_0 : i32
    scf.if %2 {
      %c0_8 = arith.constant 0 : index
      %c0_9 = arith.constant 0 : index
      %11 = vector.load %arg5[%c0_8, %c0_9] : memref<1x32xf32, #tpu.memory_space<vmem>>, vector<1x32xf32>
      %12 = vector.shape_cast %11 : vector<1x32xf32> to vector<1x32xf32>
      %13 = vector.broadcast %12 : vector<1x32xf32> to vector<128x32xf32>
      %c0_10 = arith.constant 0 : index
      %c0_11 = arith.constant 0 : index
      %14 = vector.load %arg6[%c0_10, %c0_11] : memref<128x32xf32, #tpu.memory_space<vmem>>, vector<128x32xf32>
      tpu.vector_store %arg6[%c0_10, %c0_11], %13 {strides = array<i32>} : memref<128x32xf32, #tpu.memory_space<vmem>>, vector<128x32xf32>,
    } else {
    }
    %c0 = arith.constant 0 : index
    %c0_1 = arith.constant 0 : index
    %3 = vector.load %arg6[%c0, %c0_1] : memref<128x32xf32, #tpu.memory_space<vmem>>, vector<128x32xf32>
    %c0_2 = arith.constant 0 : index
    %c0_3 = arith.constant 0 : index
    %4 = vector.load %arg3[%c0_2, %c0_3] : memref<128x9xf32, #tpu.memory_space<vmem>>, vector<128x9xf32>
    %5 = arith.truncf %4 : vector<128x9xf32> to vector<128x9xbf16>
    %c0_4 = arith.constant 0 : index
    %c0_5 = arith.constant 0 : index
    %6 = vector.load %arg4[%c0_4, %c0_5] : memref<9x32xf32, #tpu.memory_space<vmem>>, vector<9x32xf32>
    %7 = arith.truncf %6 : vector<9x32xf32> to vector<9x32xbf16>
    %cst = arith.constant dense<0.000000e+00> : vector<128x32xf32>
    %8 = tpu.matmul %5, %7, %cst {dimension_numbers = #tpu.dot_dimension_numbers<[1], [0], [0], [1], [0, 0, 1, 1], [], []>} : vector<128x9xbf16>, vector<9x32xbf16>, vector<128x32xf32> -> vector<128x32xf32>
    %9 = arith.addf %3, %8 : vector<128x32xf32>
    %c0_6 = arith.constant 0 : index
    %c0_7 = arith.constant 0 : index
    %10 = vector.load %arg6[%c0_6, %c0_7] : memref<128x32xf32, #tpu.memory_space<vmem>>, vector<128x32xf32>
    tpu.vector_store %arg6[%c0_6, %c0_7], %9 {strides = array<i32>} : memref<128x32xf32, #tpu.memory_space<vmem>>, vector<128x32xf32>,
    return
  }
  func.func @transform_0(%arg0: i32, %arg1: i32, %arg2: i32) -> (i32, i32) {
    %c0_i32 = arith.constant 0 : i32
    return %arg0, %arg2 : i32, i32
  }
  func.func @transform_1(%arg0: i32, %arg1: i32, %arg2: i32) -> (i32, i32) {
    %c0_i32 = arith.constant 0 : i32
    return %arg2, %arg1 : i32, i32
  }
  func.func @transform_2(%arg0: i32, %arg1: i32, %arg2: i32) -> (i32, i32) {
    %c0_i32 = arith.constant 0 : i32
    %c0_i32_0 = arith.constant 0 : i32
    return %c0_i32, %arg1 : i32, i32
  }
  func.func @transform_3(%arg0: i32, %arg1: i32, %arg2: i32) -> (i32, i32) {
    %c0_i32 = arith.constant 0 : i32
    return %arg0, %arg1 : i32, i32
  }
}

module attributes {stable_mosaic.version = 11 : i64} {
  func.func @_ln_feat_kernel(%arg0: i32, %arg1: i32, %arg2: memref<1x8x8x32xf32, #tpu.memory_space<vmem>>, %arg3: memref<1x8x1x1xf32, #tpu.memory_space<vmem>>, %arg4: memref<1x8x1x1xf32, #tpu.memory_space<vmem>>, %arg5: memref<1x8x8x32xf32, #tpu.memory_space<vmem>>) attributes {dimension_semantics = [#tpu.dimension_semantics<parallel>, #tpu.dimension_semantics<parallel>], iteration_bounds = array<i64: 2, 1>, scalar_prefetch = 0 : i64, scratch_operands = 0 : i64, tpu.core_type = #tpu.core_type<tc>, window_params = [{transform_indices = @transform_0, window_bounds = array<i64: 1, 8, 8, 32>}, {pipeline_mode = #tpu.pipeline_mode<synchronous>, transform_indices = @transform_1, window_bounds = array<i64: 1, 8, 1, 1>}, {pipeline_mode = #tpu.pipeline_mode<synchronous>, transform_indices = @transform_2, window_bounds = array<i64: 1, 8, 1, 1>}, {transform_indices = @transform_3, window_bounds = array<i64: 1, 8, 8, 32>}]} {
    %c0 = arith.constant 0 : index
    %c0_0 = arith.constant 0 : index
    %c0_1 = arith.constant 0 : index
    %c0_2 = arith.constant 0 : index
    %0 = vector.load %arg2[%c0, %c0_0, %c0_1, %c0_2] : memref<1x8x8x32xf32, #tpu.memory_space<vmem>>, vector<1x8x8x32xf32>
    %1 = vector.shape_cast %0 : vector<1x8x8x32xf32> to vector<8x8x32xf32>
    %cst = arith.constant dense<0.000000e+00> : vector<8x32xf32>
    %2 = vector.multi_reduction <add>, %1, %cst [0] : vector<8x8x32xf32> to vector<8x32xf32>
    %3 = vector.shape_cast %2 : vector<8x32xf32> to vector<1x8x32xf32>
    %cst_3 = arith.constant 8.000000e+00 : f32
    %4 = vector.broadcast %cst_3 : f32 to vector<1x8x32xf32>
    %5 = arith.divf %3, %4 : vector<1x8x32xf32>
    %6 = vector.broadcast %5 : vector<1x8x32xf32> to vector<8x8x32xf32>
    %7 = arith.subf %1, %6 : vector<8x8x32xf32>
    %8 = arith.mulf %7, %7 : vector<8x8x32xf32>
    %cst_4 = arith.constant dense<0.000000e+00> : vector<8x32xf32>
    %9 = vector.multi_reduction <add>, %8, %cst_4 [0] : vector<8x8x32xf32> to vector<8x32xf32>
    %10 = vector.shape_cast %9 : vector<8x32xf32> to vector<1x8x32xf32>
    %cst_5 = arith.constant 8.000000e+00 : f32
    %11 = vector.broadcast %cst_5 : f32 to vector<1x8x32xf32>
    %12 = arith.divf %10, %11 : vector<1x8x32xf32>
    %13 = vector.broadcast %5 : vector<1x8x32xf32> to vector<8x8x32xf32>
    %14 = arith.subf %1, %13 : vector<8x8x32xf32>
    %cst_6 = arith.constant 9.99999974E-6 : f32
    %15 = vector.broadcast %cst_6 : f32 to vector<1x8x32xf32>
    %16 = arith.addf %12, %15 : vector<1x8x32xf32>
    %17 = math.rsqrt %16 : vector<1x8x32xf32>
    %18 = vector.broadcast %17 : vector<1x8x32xf32> to vector<8x8x32xf32>
    %19 = arith.mulf %14, %18 : vector<8x8x32xf32>
    %c0_7 = arith.constant 0 : index
    %c0_8 = arith.constant 0 : index
    %c0_9 = arith.constant 0 : index
    %c0_10 = arith.constant 0 : index
    %20 = vector.load %arg3[%c0_7, %c0_8, %c0_9, %c0_10] : memref<1x8x1x1xf32, #tpu.memory_space<vmem>>, vector<1x8x1x1xf32>
    %21 = vector.shape_cast %20 : vector<1x8x1x1xf32> to vector<8x1x1xf32>
    %22 = vector.broadcast %21 : vector<8x1x1xf32> to vector<8x8x32xf32>
    %23 = arith.mulf %19, %22 : vector<8x8x32xf32>
    %c0_11 = arith.constant 0 : index
    %c0_12 = arith.constant 0 : index
    %c0_13 = arith.constant 0 : index
    %c0_14 = arith.constant 0 : index
    %24 = vector.load %arg4[%c0_11, %c0_12, %c0_13, %c0_14] : memref<1x8x1x1xf32, #tpu.memory_space<vmem>>, vector<1x8x1x1xf32>
    %25 = vector.shape_cast %24 : vector<1x8x1x1xf32> to vector<8x1x1xf32>
    %26 = vector.broadcast %25 : vector<8x1x1xf32> to vector<8x8x32xf32>
    %27 = arith.addf %23, %26 : vector<8x8x32xf32>
    %cst_15 = arith.constant 5.000000e-01 : f32
    %28 = vector.broadcast %cst_15 : f32 to vector<8x8x32xf32>
    %29 = arith.mulf %28, %27 : vector<8x8x32xf32>
    %cst_16 = arith.constant 4.471500e-02 : f32
    %30 = vector.broadcast %cst_16 : f32 to vector<8x8x32xf32>
    %31 = arith.mulf %30, %27 : vector<8x8x32xf32>
    %32 = arith.mulf %31, %27 : vector<8x8x32xf32>
    %33 = arith.mulf %32, %27 : vector<8x8x32xf32>
    %34 = arith.addf %27, %33 : vector<8x8x32xf32>
    %cst_17 = arith.constant 0.797884583 : f32
    %35 = vector.broadcast %cst_17 : f32 to vector<8x8x32xf32>
    %36 = arith.mulf %35, %34 : vector<8x8x32xf32>
    %37 = math.tanh %36 : vector<8x8x32xf32>
    %cst_18 = arith.constant 1.000000e+00 : f32
    %38 = vector.broadcast %cst_18 : f32 to vector<8x8x32xf32>
    %39 = arith.addf %38, %37 : vector<8x8x32xf32>
    %40 = arith.mulf %29, %39 : vector<8x8x32xf32>
    %c0_19 = arith.constant 0 : index
    %c0_20 = arith.constant 0 : index
    %c0_21 = arith.constant 0 : index
    %c0_22 = arith.constant 0 : index
    %41 = vector.load %arg5[%c0_19, %c0_20, %c0_21, %c0_22] : memref<1x8x8x32xf32, #tpu.memory_space<vmem>>, vector<1x8x8x32xf32>
    %42 = vector.shape_cast %41 : vector<1x8x8x32xf32> to vector<8x8x32xf32>
    %43 = vector.shape_cast %40 : vector<8x8x32xf32> to vector<1x8x8x32xf32>
    tpu.vector_store %arg5[%c0_19, %c0_20, %c0_21, %c0_22], %43 {strides = array<i32>} : memref<1x8x8x32xf32, #tpu.memory_space<vmem>>, vector<1x8x8x32xf32>,
    return
  }
  func.func @transform_0(%arg0: i32, %arg1: i32) -> (i32, i32, i32, i32) {
    %c0_i32 = arith.constant 0 : i32
    %c0_i32_0 = arith.constant 0 : i32
    %c0_i32_1 = arith.constant 0 : i32
    return %arg0, %c0_i32, %arg1, %c0_i32_0 : i32, i32, i32, i32
  }
  func.func @transform_1(%arg0: i32, %arg1: i32) -> (i32, i32, i32, i32) {
    %c0_i32 = arith.constant 0 : i32
    %c0_i32_0 = arith.constant 0 : i32
    %c0_i32_1 = arith.constant 0 : i32
    %c0_i32_2 = arith.constant 0 : i32
    %c0_i32_3 = arith.constant 0 : i32
    return %c0_i32, %c0_i32_0, %c0_i32_1, %c0_i32_2 : i32, i32, i32, i32
  }
  func.func @transform_2(%arg0: i32, %arg1: i32) -> (i32, i32, i32, i32) {
    %c0_i32 = arith.constant 0 : i32
    %c0_i32_0 = arith.constant 0 : i32
    %c0_i32_1 = arith.constant 0 : i32
    %c0_i32_2 = arith.constant 0 : i32
    %c0_i32_3 = arith.constant 0 : i32
    return %c0_i32, %c0_i32_0, %c0_i32_1, %c0_i32_2 : i32, i32, i32, i32
  }
  func.func @transform_3(%arg0: i32, %arg1: i32) -> (i32, i32, i32, i32) {
    %c0_i32 = arith.constant 0 : i32
    %c0_i32_0 = arith.constant 0 : i32
    %c0_i32_1 = arith.constant 0 : i32
    return %arg0, %c0_i32, %arg1, %c0_i32_0 : i32, i32, i32, i32
  }
}

module attributes {stable_mosaic.version = 11 : i64} {
  func.func @_conv3x3_kernel(%arg0: i32, %arg1: i32, %arg2: memref<1x1x10x10x32xf32, #tpu.memory_space<vmem>>, %arg3: memref<3x96x32xf32, #tpu.memory_space<vmem>>, %arg4: memref<1x32xf32, #tpu.memory_space<vmem>>, %arg5: memref<1x8x8x32xf32, #tpu.memory_space<vmem>>) attributes {dimension_semantics = [#tpu.dimension_semantics<parallel>, #tpu.dimension_semantics<parallel>], iteration_bounds = array<i64: 2, 1>, scalar_prefetch = 0 : i64, scratch_operands = 0 : i64, tpu.core_type = #tpu.core_type<tc>, window_params = [{transform_indices = @transform_0, window_bounds = array<i64: 1, 1, 10, 10, 32>}, {pipeline_mode = #tpu.pipeline_mode<synchronous>, transform_indices = @transform_1, window_bounds = array<i64: 3, 96, 32>}, {pipeline_mode = #tpu.pipeline_mode<synchronous>, transform_indices = @transform_2, window_bounds = array<i64: 1, 32>}, {transform_indices = @transform_3, window_bounds = array<i64: 1, 8, 8, 32>}]} {
    %c0 = arith.constant 0 : index
    %c0_0 = arith.constant 0 : index
    %c0_1 = arith.constant 0 : index
    %c0_2 = arith.constant 0 : index
    %c0_3 = arith.constant 0 : index
    %0 = vector.load %arg2[%c0, %c0_0, %c0_1, %c0_2, %c0_3] : memref<1x1x10x10x32xf32, #tpu.memory_space<vmem>>, vector<1x1x10x10x32xf32>
    %1 = vector.shape_cast %0 : vector<1x1x10x10x32xf32> to vector<10x10x32xf32>
    %2 = vector.extract_strided_slice %1 {offsets = [0, 0, 0], sizes = [10, 8, 32], strides = [1, 1, 1]} : vector<10x10x32xf32> to vector<10x8x32xf32>
    %3 = vector.extract_strided_slice %1 {offsets = [0, 1, 0], sizes = [10, 8, 32], strides = [1, 1, 1]} : vector<10x10x32xf32> to vector<10x8x32xf32>
    %4 = vector.extract_strided_slice %1 {offsets = [0, 2, 0], sizes = [10, 8, 32], strides = [1, 1, 1]} : vector<10x10x32xf32> to vector<10x8x32xf32>
    %5 = tpu.concatenate %2, %3, %4 in 2 : vector<10x8x32xf32>, vector<10x8x32xf32>, vector<10x8x32xf32> -> vector<10x8x96xf32>
    %cst = arith.constant 0.000000e+00 : f32
    %6 = vector.broadcast %cst : f32 to vector<64x32xf32>
    %7 = vector.extract_strided_slice %5 {offsets = [0, 0, 0], sizes = [8, 8, 96], strides = [1, 1, 1]} : vector<10x8x96xf32> to vector<8x8x96xf32>
    %8 = vector.shape_cast %7 : vector<8x8x96xf32> to vector<64x96xf32>
    %9 = arith.truncf %8 : vector<64x96xf32> to vector<64x96xbf16>
    %c0_4 = arith.constant 0 : index
    %c0_5 = arith.constant 0 : index
    %c0_6 = arith.constant 0 : index
    %10 = vector.load %arg3[%c0_4, %c0_5, %c0_6] : memref<3x96x32xf32, #tpu.memory_space<vmem>>, vector<1x96x32xf32>
    %11 = vector.shape_cast %10 : vector<1x96x32xf32> to vector<96x32xf32>
    %12 = arith.truncf %11 : vector<96x32xf32> to vector<96x32xbf16>
    %cst_7 = arith.constant dense<0.000000e+00> : vector<64x32xf32>
    %13 = tpu.matmul %9, %12, %cst_7 {dimension_numbers = #tpu.dot_dimension_numbers<[1], [0], [0], [1], [0, 0, 1, 1], [], []>} : vector<64x96xbf16>, vector<96x32xbf16>, vector<64x32xf32> -> vector<64x32xf32>
    %14 = arith.addf %6, %13 : vector<64x32xf32>
    %15 = vector.extract_strided_slice %5 {offsets = [1, 0, 0], sizes = [8, 8, 96], strides = [1, 1, 1]} : vector<10x8x96xf32> to vector<8x8x96xf32>
    %16 = vector.shape_cast %15 : vector<8x8x96xf32> to vector<64x96xf32>
    %17 = arith.truncf %16 : vector<64x96xf32> to vector<64x96xbf16>
    %c1 = arith.constant 1 : index
    %c0_8 = arith.constant 0 : index
    %c0_9 = arith.constant 0 : index
    %18 = vector.load %arg3[%c1, %c0_8, %c0_9] : memref<3x96x32xf32, #tpu.memory_space<vmem>>, vector<1x96x32xf32>
    %19 = vector.shape_cast %18 : vector<1x96x32xf32> to vector<96x32xf32>
    %20 = arith.truncf %19 : vector<96x32xf32> to vector<96x32xbf16>
    %cst_10 = arith.constant dense<0.000000e+00> : vector<64x32xf32>
    %21 = tpu.matmul %17, %20, %cst_10 {dimension_numbers = #tpu.dot_dimension_numbers<[1], [0], [0], [1], [0, 0, 1, 1], [], []>} : vector<64x96xbf16>, vector<96x32xbf16>, vector<64x32xf32> -> vector<64x32xf32>
    %22 = arith.addf %14, %21 : vector<64x32xf32>
    %23 = vector.extract_strided_slice %5 {offsets = [2, 0, 0], sizes = [8, 8, 96], strides = [1, 1, 1]} : vector<10x8x96xf32> to vector<8x8x96xf32>
    %24 = vector.shape_cast %23 : vector<8x8x96xf32> to vector<64x96xf32>
    %25 = arith.truncf %24 : vector<64x96xf32> to vector<64x96xbf16>
    %c2 = arith.constant 2 : index
    %c0_11 = arith.constant 0 : index
    %c0_12 = arith.constant 0 : index
    %26 = vector.load %arg3[%c2, %c0_11, %c0_12] : memref<3x96x32xf32, #tpu.memory_space<vmem>>, vector<1x96x32xf32>
    %27 = vector.shape_cast %26 : vector<1x96x32xf32> to vector<96x32xf32>
    %28 = arith.truncf %27 : vector<96x32xf32> to vector<96x32xbf16>
    %cst_13 = arith.constant dense<0.000000e+00> : vector<64x32xf32>
    %29 = tpu.matmul %25, %28, %cst_13 {dimension_numbers = #tpu.dot_dimension_numbers<[1], [0], [0], [1], [0, 0, 1, 1], [], []>} : vector<64x96xbf16>, vector<96x32xbf16>, vector<64x32xf32> -> vector<64x32xf32>
    %30 = arith.addf %22, %29 : vector<64x32xf32>
    %c0_14 = arith.constant 0 : index
    %c0_15 = arith.constant 0 : index
    %31 = vector.load %arg4[%c0_14, %c0_15] : memref<1x32xf32, #tpu.memory_space<vmem>>, vector<1x32xf32>
    %32 = vector.broadcast %31 : vector<1x32xf32> to vector<64x32xf32>
    %33 = arith.addf %30, %32 : vector<64x32xf32>
    %34 = vector.shape_cast %33 : vector<64x32xf32> to vector<8x8x32xf32>
    %c0_16 = arith.constant 0 : index
    %c0_17 = arith.constant 0 : index
    %c0_18 = arith.constant 0 : index
    %c0_19 = arith.constant 0 : index
    %35 = vector.load %arg5[%c0_16, %c0_17, %c0_18, %c0_19] : memref<1x8x8x32xf32, #tpu.memory_space<vmem>>, vector<1x8x8x32xf32>
    %36 = vector.shape_cast %35 : vector<1x8x8x32xf32> to vector<8x8x32xf32>
    %37 = vector.shape_cast %34 : vector<8x8x32xf32> to vector<1x8x8x32xf32>
    tpu.vector_store %arg5[%c0_16, %c0_17, %c0_18, %c0_19], %37 {strides = array<i32>} : memref<1x8x8x32xf32, #tpu.memory_space<vmem>>, vector<1x8x8x32xf32>,
    return
  }
  func.func @transform_0(%arg0: i32, %arg1: i32) -> (i32, i32, i32, i32, i32) {
    %c0_i32 = arith.constant 0 : i32
    %c0_i32_0 = arith.constant 0 : i32
    %c0_i32_1 = arith.constant 0 : i32
    %c0_i32_2 = arith.constant 0 : i32
    return %arg0, %arg1, %c0_i32, %c0_i32_0, %c0_i32_1 : i32, i32, i32, i32, i32
  }
  func.func @transform_1(%arg0: i32, %arg1: i32) -> (i32, i32, i32) {
    %c0_i32 = arith.constant 0 : i32
    %c0_i32_0 = arith.constant 0 : i32
    %c0_i32_1 = arith.constant 0 : i32
    %c0_i32_2 = arith.constant 0 : i32
    return %c0_i32, %c0_i32_0, %c0_i32_1 : i32, i32, i32
  }
  func.func @transform_2(%arg0: i32, %arg1: i32) -> (i32, i32) {
    %c0_i32 = arith.constant 0 : i32
    %c0_i32_0 = arith.constant 0 : i32
    %c0_i32_1 = arith.constant 0 : i32
    return %c0_i32, %c0_i32_0 : i32, i32
  }
  func.func @transform_3(%arg0: i32, %arg1: i32) -> (i32, i32, i32, i32) {
    %c0_i32 = arith.constant 0 : i32
    %c0_i32_0 = arith.constant 0 : i32
    %c0_i32_1 = arith.constant 0 : i32
    return %arg0, %c0_i32, %arg1, %c0_i32_0 : i32, i32, i32, i32
  }
}

module attributes {stable_mosaic.version = 11 : i64} {
  func.func @_conv3x3_kernel(%arg0: i32, %arg1: i32, %arg2: memref<1x1x10x10x32xf32, #tpu.memory_space<vmem>>, %arg3: memref<3x96x32xf32, #tpu.memory_space<vmem>>, %arg4: memref<1x32xf32, #tpu.memory_space<vmem>>, %arg5: memref<1x8x8x32xf32, #tpu.memory_space<vmem>>, %arg6: memref<1x8x8x32xf32, #tpu.memory_space<vmem>>) attributes {dimension_semantics = [#tpu.dimension_semantics<parallel>, #tpu.dimension_semantics<parallel>], iteration_bounds = array<i64: 2, 1>, scalar_prefetch = 0 : i64, scratch_operands = 0 : i64, tpu.core_type = #tpu.core_type<tc>, window_params = [{transform_indices = @transform_0, window_bounds = array<i64: 1, 1, 10, 10, 32>}, {pipeline_mode = #tpu.pipeline_mode<synchronous>, transform_indices = @transform_1, window_bounds = array<i64: 3, 96, 32>}, {pipeline_mode = #tpu.pipeline_mode<synchronous>, transform_indices = @transform_2, window_bounds = array<i64: 1, 32>}, {transform_indices = @transform_3, window_bounds = array<i64: 1, 8, 8, 32>}, {transform_indices = @transform_4, window_bounds = array<i64: 1, 8, 8, 32>}]} {
    %c0 = arith.constant 0 : index
    %c0_0 = arith.constant 0 : index
    %c0_1 = arith.constant 0 : index
    %c0_2 = arith.constant 0 : index
    %c0_3 = arith.constant 0 : index
    %0 = vector.load %arg2[%c0, %c0_0, %c0_1, %c0_2, %c0_3] : memref<1x1x10x10x32xf32, #tpu.memory_space<vmem>>, vector<1x1x10x10x32xf32>
    %1 = vector.shape_cast %0 : vector<1x1x10x10x32xf32> to vector<10x10x32xf32>
    %2 = vector.extract_strided_slice %1 {offsets = [0, 0, 0], sizes = [10, 8, 32], strides = [1, 1, 1]} : vector<10x10x32xf32> to vector<10x8x32xf32>
    %3 = vector.extract_strided_slice %1 {offsets = [0, 1, 0], sizes = [10, 8, 32], strides = [1, 1, 1]} : vector<10x10x32xf32> to vector<10x8x32xf32>
    %4 = vector.extract_strided_slice %1 {offsets = [0, 2, 0], sizes = [10, 8, 32], strides = [1, 1, 1]} : vector<10x10x32xf32> to vector<10x8x32xf32>
    %5 = tpu.concatenate %2, %3, %4 in 2 : vector<10x8x32xf32>, vector<10x8x32xf32>, vector<10x8x32xf32> -> vector<10x8x96xf32>
    %cst = arith.constant 0.000000e+00 : f32
    %6 = vector.broadcast %cst : f32 to vector<64x32xf32>
    %7 = vector.extract_strided_slice %5 {offsets = [0, 0, 0], sizes = [8, 8, 96], strides = [1, 1, 1]} : vector<10x8x96xf32> to vector<8x8x96xf32>
    %8 = vector.shape_cast %7 : vector<8x8x96xf32> to vector<64x96xf32>
    %9 = arith.truncf %8 : vector<64x96xf32> to vector<64x96xbf16>
    %c0_4 = arith.constant 0 : index
    %c0_5 = arith.constant 0 : index
    %c0_6 = arith.constant 0 : index
    %10 = vector.load %arg3[%c0_4, %c0_5, %c0_6] : memref<3x96x32xf32, #tpu.memory_space<vmem>>, vector<1x96x32xf32>
    %11 = vector.shape_cast %10 : vector<1x96x32xf32> to vector<96x32xf32>
    %12 = arith.truncf %11 : vector<96x32xf32> to vector<96x32xbf16>
    %cst_7 = arith.constant dense<0.000000e+00> : vector<64x32xf32>
    %13 = tpu.matmul %9, %12, %cst_7 {dimension_numbers = #tpu.dot_dimension_numbers<[1], [0], [0], [1], [0, 0, 1, 1], [], []>} : vector<64x96xbf16>, vector<96x32xbf16>, vector<64x32xf32> -> vector<64x32xf32>
    %14 = arith.addf %6, %13 : vector<64x32xf32>
    %15 = vector.extract_strided_slice %5 {offsets = [1, 0, 0], sizes = [8, 8, 96], strides = [1, 1, 1]} : vector<10x8x96xf32> to vector<8x8x96xf32>
    %16 = vector.shape_cast %15 : vector<8x8x96xf32> to vector<64x96xf32>
    %17 = arith.truncf %16 : vector<64x96xf32> to vector<64x96xbf16>
    %c1 = arith.constant 1 : index
    %c0_8 = arith.constant 0 : index
    %c0_9 = arith.constant 0 : index
    %18 = vector.load %arg3[%c1, %c0_8, %c0_9] : memref<3x96x32xf32, #tpu.memory_space<vmem>>, vector<1x96x32xf32>
    %19 = vector.shape_cast %18 : vector<1x96x32xf32> to vector<96x32xf32>
    %20 = arith.truncf %19 : vector<96x32xf32> to vector<96x32xbf16>
    %cst_10 = arith.constant dense<0.000000e+00> : vector<64x32xf32>
    %21 = tpu.matmul %17, %20, %cst_10 {dimension_numbers = #tpu.dot_dimension_numbers<[1], [0], [0], [1], [0, 0, 1, 1], [], []>} : vector<64x96xbf16>, vector<96x32xbf16>, vector<64x32xf32> -> vector<64x32xf32>
    %22 = arith.addf %14, %21 : vector<64x32xf32>
    %23 = vector.extract_strided_slice %5 {offsets = [2, 0, 0], sizes = [8, 8, 96], strides = [1, 1, 1]} : vector<10x8x96xf32> to vector<8x8x96xf32>
    %24 = vector.shape_cast %23 : vector<8x8x96xf32> to vector<64x96xf32>
    %25 = arith.truncf %24 : vector<64x96xf32> to vector<64x96xbf16>
    %c2 = arith.constant 2 : index
    %c0_11 = arith.constant 0 : index
    %c0_12 = arith.constant 0 : index
    %26 = vector.load %arg3[%c2, %c0_11, %c0_12] : memref<3x96x32xf32, #tpu.memory_space<vmem>>, vector<1x96x32xf32>
    %27 = vector.shape_cast %26 : vector<1x96x32xf32> to vector<96x32xf32>
    %28 = arith.truncf %27 : vector<96x32xf32> to vector<96x32xbf16>
    %cst_13 = arith.constant dense<0.000000e+00> : vector<64x32xf32>
    %29 = tpu.matmul %25, %28, %cst_13 {dimension_numbers = #tpu.dot_dimension_numbers<[1], [0], [0], [1], [0, 0, 1, 1], [], []>} : vector<64x96xbf16>, vector<96x32xbf16>, vector<64x32xf32> -> vector<64x32xf32>
    %30 = arith.addf %22, %29 : vector<64x32xf32>
    %c0_14 = arith.constant 0 : index
    %c0_15 = arith.constant 0 : index
    %31 = vector.load %arg4[%c0_14, %c0_15] : memref<1x32xf32, #tpu.memory_space<vmem>>, vector<1x32xf32>
    %32 = vector.broadcast %31 : vector<1x32xf32> to vector<64x32xf32>
    %33 = arith.addf %30, %32 : vector<64x32xf32>
    %34 = vector.shape_cast %33 : vector<64x32xf32> to vector<8x8x32xf32>
    %c0_16 = arith.constant 0 : index
    %c0_17 = arith.constant 0 : index
    %c0_18 = arith.constant 0 : index
    %c0_19 = arith.constant 0 : index
    %35 = vector.load %arg5[%c0_16, %c0_17, %c0_18, %c0_19] : memref<1x8x8x32xf32, #tpu.memory_space<vmem>>, vector<1x8x8x32xf32>
    %36 = vector.shape_cast %35 : vector<1x8x8x32xf32> to vector<8x8x32xf32>
    %37 = arith.addf %34, %36 : vector<8x8x32xf32>
    %c0_20 = arith.constant 0 : index
    %c0_21 = arith.constant 0 : index
    %c0_22 = arith.constant 0 : index
    %c0_23 = arith.constant 0 : index
    %38 = vector.load %arg6[%c0_20, %c0_21, %c0_22, %c0_23] : memref<1x8x8x32xf32, #tpu.memory_space<vmem>>, vector<1x8x8x32xf32>
    %39 = vector.shape_cast %38 : vector<1x8x8x32xf32> to vector<8x8x32xf32>
    %40 = vector.shape_cast %37 : vector<8x8x32xf32> to vector<1x8x8x32xf32>
    tpu.vector_store %arg6[%c0_20, %c0_21, %c0_22, %c0_23], %40 {strides = array<i32>} : memref<1x8x8x32xf32, #tpu.memory_space<vmem>>, vector<1x8x8x32xf32>,
    return
  }
  func.func @transform_0(%arg0: i32, %arg1: i32) -> (i32, i32, i32, i32, i32) {
    %c0_i32 = arith.constant 0 : i32
    %c0_i32_0 = arith.constant 0 : i32
    %c0_i32_1 = arith.constant 0 : i32
    %c0_i32_2 = arith.constant 0 : i32
    return %arg0, %arg1, %c0_i32, %c0_i32_0, %c0_i32_1 : i32, i32, i32, i32, i32
  }
  func.func @transform_1(%arg0: i32, %arg1: i32) -> (i32, i32, i32) {
    %c0_i32 = arith.constant 0 : i32
    %c0_i32_0 = arith.constant 0 : i32
    %c0_i32_1 = arith.constant 0 : i32
    %c0_i32_2 = arith.constant 0 : i32
    return %c0_i32, %c0_i32_0, %c0_i32_1 : i32, i32, i32
  }
  func.func @transform_2(%arg0: i32, %arg1: i32) -> (i32, i32) {
    %c0_i32 = arith.constant 0 : i32
    %c0_i32_0 = arith.constant 0 : i32
    %c0_i32_1 = arith.constant 0 : i32
    return %c0_i32, %c0_i32_0 : i32, i32
  }
  func.func @transform_3(%arg0: i32, %arg1: i32) -> (i32, i32, i32, i32) {
    %c0_i32 = arith.constant 0 : i32
    %c0_i32_0 = arith.constant 0 : i32
    %c0_i32_1 = arith.constant 0 : i32
    return %arg0, %c0_i32, %arg1, %c0_i32_0 : i32, i32, i32, i32
  }
  func.func @transform_4(%arg0: i32, %arg1: i32) -> (i32, i32, i32, i32) {
    %c0_i32 = arith.constant 0 : i32
    %c0_i32_0 = arith.constant 0 : i32
    %c0_i32_1 = arith.constant 0 : i32
    return %arg0, %c0_i32, %arg1, %c0_i32_0 : i32, i32, i32, i32
  }
}

module attributes {stable_mosaic.version = 11 : i64} {
  func.func @_linear_kernel(%arg0: i32, %arg1: i32, %arg2: i32, %arg3: memref<16x256xf32, #tpu.memory_space<vmem>>, %arg4: memref<256x32xf32, #tpu.memory_space<vmem>>, %arg5: memref<1x32xf32, #tpu.memory_space<vmem>>, %arg6: memref<16x32xf32, #tpu.memory_space<vmem>>) attributes {dimension_semantics = [#tpu.dimension_semantics<parallel>, #tpu.dimension_semantics<parallel>, #tpu.dimension_semantics<arbitrary>], iteration_bounds = array<i64: 1, 1, 1>, scalar_prefetch = 0 : i64, scratch_operands = 0 : i64, tpu.core_type = #tpu.core_type<tc>, window_params = [{transform_indices = @transform_0, window_bounds = array<i64: 16, 256>}, {transform_indices = @transform_1, window_bounds = array<i64: 256, 32>}, {transform_indices = @transform_2, window_bounds = array<i64: 1, 32>}, {transform_indices = @transform_3, window_bounds = array<i64: 16, 32>}]} {
    %c0_i32 = arith.constant 0 : i32
    %0 = arith.cmpi eq, %arg2, %c0_i32 : i32
    %1 = arith.extui %0 : i1 to i32
    %c0_i32_0 = arith.constant 0 : i32
    %2 = arith.cmpi ne, %1, %c0_i32_0 : i32
    scf.if %2 {
      %c0_8 = arith.constant 0 : index
      %c0_9 = arith.constant 0 : index
      %11 = vector.load %arg5[%c0_8, %c0_9] : memref<1x32xf32, #tpu.memory_space<vmem>>, vector<1x32xf32>
      %12 = vector.shape_cast %11 : vector<1x32xf32> to vector<1x32xf32>
      %13 = vector.broadcast %12 : vector<1x32xf32> to vector<16x32xf32>
      %c0_10 = arith.constant 0 : index
      %c0_11 = arith.constant 0 : index
      %14 = vector.load %arg6[%c0_10, %c0_11] : memref<16x32xf32, #tpu.memory_space<vmem>>, vector<16x32xf32>
      tpu.vector_store %arg6[%c0_10, %c0_11], %13 {strides = array<i32>} : memref<16x32xf32, #tpu.memory_space<vmem>>, vector<16x32xf32>,
    } else {
    }
    %c0 = arith.constant 0 : index
    %c0_1 = arith.constant 0 : index
    %3 = vector.load %arg6[%c0, %c0_1] : memref<16x32xf32, #tpu.memory_space<vmem>>, vector<16x32xf32>
    %c0_2 = arith.constant 0 : index
    %c0_3 = arith.constant 0 : index
    %4 = vector.load %arg3[%c0_2, %c0_3] : memref<16x256xf32, #tpu.memory_space<vmem>>, vector<16x256xf32>
    %5 = arith.truncf %4 : vector<16x256xf32> to vector<16x256xbf16>
    %c0_4 = arith.constant 0 : index
    %c0_5 = arith.constant 0 : index
    %6 = vector.load %arg4[%c0_4, %c0_5] : memref<256x32xf32, #tpu.memory_space<vmem>>, vector<256x32xf32>
    %7 = arith.truncf %6 : vector<256x32xf32> to vector<256x32xbf16>
    %cst = arith.constant dense<0.000000e+00> : vector<16x32xf32>
    %8 = tpu.matmul %5, %7, %cst {dimension_numbers = #tpu.dot_dimension_numbers<[1], [0], [0], [1], [0, 0, 1, 1], [], []>} : vector<16x256xbf16>, vector<256x32xbf16>, vector<16x32xf32> -> vector<16x32xf32>
    %9 = arith.addf %3, %8 : vector<16x32xf32>
    %c0_6 = arith.constant 0 : index
    %c0_7 = arith.constant 0 : index
    %10 = vector.load %arg6[%c0_6, %c0_7] : memref<16x32xf32, #tpu.memory_space<vmem>>, vector<16x32xf32>
    tpu.vector_store %arg6[%c0_6, %c0_7], %9 {strides = array<i32>} : memref<16x32xf32, #tpu.memory_space<vmem>>, vector<16x32xf32>,
    return
  }
  func.func @transform_0(%arg0: i32, %arg1: i32, %arg2: i32) -> (i32, i32) {
    %c0_i32 = arith.constant 0 : i32
    return %arg0, %arg2 : i32, i32
  }
  func.func @transform_1(%arg0: i32, %arg1: i32, %arg2: i32) -> (i32, i32) {
    %c0_i32 = arith.constant 0 : i32
    return %arg2, %arg1 : i32, i32
  }
  func.func @transform_2(%arg0: i32, %arg1: i32, %arg2: i32) -> (i32, i32) {
    %c0_i32 = arith.constant 0 : i32
    %c0_i32_0 = arith.constant 0 : i32
    return %c0_i32, %arg1 : i32, i32
  }
  func.func @transform_3(%arg0: i32, %arg1: i32, %arg2: i32) -> (i32, i32) {
    %c0_i32 = arith.constant 0 : i32
    return %arg0, %arg1 : i32, i32
  }
}

module attributes {stable_mosaic.version = 11 : i64} {
  func.func @_ln_rows_kernel(%arg0: i32, %arg1: memref<16x32xf32, #tpu.memory_space<vmem>>, %arg2: memref<1x32xf32, #tpu.memory_space<vmem>>, %arg3: memref<1x32xf32, #tpu.memory_space<vmem>>, %arg4: memref<16x32xf32, #tpu.memory_space<vmem>>) attributes {dimension_semantics = [#tpu.dimension_semantics<parallel>], iteration_bounds = array<i64: 1>, scalar_prefetch = 0 : i64, scratch_operands = 0 : i64, tpu.core_type = #tpu.core_type<tc>, window_params = [{transform_indices = @transform_0, window_bounds = array<i64: 16, 32>}, {pipeline_mode = #tpu.pipeline_mode<synchronous>, transform_indices = @transform_1, window_bounds = array<i64: 1, 32>}, {pipeline_mode = #tpu.pipeline_mode<synchronous>, transform_indices = @transform_2, window_bounds = array<i64: 1, 32>}, {transform_indices = @transform_3, window_bounds = array<i64: 16, 32>}]} {
    %c0 = arith.constant 0 : index
    %c0_0 = arith.constant 0 : index
    %0 = vector.load %arg1[%c0, %c0_0] : memref<16x32xf32, #tpu.memory_space<vmem>>, vector<16x32xf32>
    %cst = arith.constant dense<0.000000e+00> : vector<16xf32>
    %1 = vector.multi_reduction <add>, %0, %cst [1] : vector<16x32xf32> to vector<16xf32>
    %2 = vector.shape_cast %1 : vector<16xf32> to vector<16x1xf32>
    %cst_1 = arith.constant 3.200000e+01 : f32
    %3 = vector.broadcast %cst_1 : f32 to vector<16x1xf32>
    %4 = arith.divf %2, %3 : vector<16x1xf32>
    %5 = vector.broadcast %4 : vector<16x1xf32> to vector<16x32xf32>
    %6 = arith.subf %0, %5 : vector<16x32xf32>
    %7 = arith.mulf %6, %6 : vector<16x32xf32>
    %cst_2 = arith.constant dense<0.000000e+00> : vector<16xf32>
    %8 = vector.multi_reduction <add>, %7, %cst_2 [1] : vector<16x32xf32> to vector<16xf32>
    %9 = vector.shape_cast %8 : vector<16xf32> to vector<16x1xf32>
    %cst_3 = arith.constant 3.200000e+01 : f32
    %10 = vector.broadcast %cst_3 : f32 to vector<16x1xf32>
    %11 = arith.divf %9, %10 : vector<16x1xf32>
    %12 = vector.broadcast %4 : vector<16x1xf32> to vector<16x32xf32>
    %13 = arith.subf %0, %12 : vector<16x32xf32>
    %cst_4 = arith.constant 9.99999974E-6 : f32
    %14 = vector.broadcast %cst_4 : f32 to vector<16x1xf32>
    %15 = arith.addf %11, %14 : vector<16x1xf32>
    %16 = math.rsqrt %15 : vector<16x1xf32>
    %17 = vector.broadcast %16 : vector<16x1xf32> to vector<16x32xf32>
    %18 = arith.mulf %13, %17 : vector<16x32xf32>
    %c0_5 = arith.constant 0 : index
    %c0_6 = arith.constant 0 : index
    %19 = vector.load %arg2[%c0_5, %c0_6] : memref<1x32xf32, #tpu.memory_space<vmem>>, vector<1x32xf32>
    %20 = vector.broadcast %19 : vector<1x32xf32> to vector<16x32xf32>
    %21 = arith.mulf %18, %20 : vector<16x32xf32>
    %c0_7 = arith.constant 0 : index
    %c0_8 = arith.constant 0 : index
    %22 = vector.load %arg3[%c0_7, %c0_8] : memref<1x32xf32, #tpu.memory_space<vmem>>, vector<1x32xf32>
    %23 = vector.broadcast %22 : vector<1x32xf32> to vector<16x32xf32>
    %24 = arith.addf %21, %23 : vector<16x32xf32>
    %cst_9 = arith.constant 5.000000e-01 : f32
    %25 = vector.broadcast %cst_9 : f32 to vector<16x32xf32>
    %26 = arith.mulf %25, %24 : vector<16x32xf32>
    %cst_10 = arith.constant 4.471500e-02 : f32
    %27 = vector.broadcast %cst_10 : f32 to vector<16x32xf32>
    %28 = arith.mulf %27, %24 : vector<16x32xf32>
    %29 = arith.mulf %28, %24 : vector<16x32xf32>
    %30 = arith.mulf %29, %24 : vector<16x32xf32>
    %31 = arith.addf %24, %30 : vector<16x32xf32>
    %cst_11 = arith.constant 0.797884583 : f32
    %32 = vector.broadcast %cst_11 : f32 to vector<16x32xf32>
    %33 = arith.mulf %32, %31 : vector<16x32xf32>
    %34 = math.tanh %33 : vector<16x32xf32>
    %cst_12 = arith.constant 1.000000e+00 : f32
    %35 = vector.broadcast %cst_12 : f32 to vector<16x32xf32>
    %36 = arith.addf %35, %34 : vector<16x32xf32>
    %37 = arith.mulf %26, %36 : vector<16x32xf32>
    %c0_13 = arith.constant 0 : index
    %c0_14 = arith.constant 0 : index
    %38 = vector.load %arg4[%c0_13, %c0_14] : memref<16x32xf32, #tpu.memory_space<vmem>>, vector<16x32xf32>
    tpu.vector_store %arg4[%c0_13, %c0_14], %37 {strides = array<i32>} : memref<16x32xf32, #tpu.memory_space<vmem>>, vector<16x32xf32>,
    return
  }
  func.func @transform_0(%arg0: i32) -> (i32, i32) {
    %c0_i32 = arith.constant 0 : i32
    %c0_i32_0 = arith.constant 0 : i32
    return %arg0, %c0_i32 : i32, i32
  }
  func.func @transform_1(%arg0: i32) -> (i32, i32) {
    %c0_i32 = arith.constant 0 : i32
    %c0_i32_0 = arith.constant 0 : i32
    %c0_i32_1 = arith.constant 0 : i32
    return %c0_i32, %c0_i32_0 : i32, i32
  }
  func.func @transform_2(%arg0: i32) -> (i32, i32) {
    %c0_i32 = arith.constant 0 : i32
    %c0_i32_0 = arith.constant 0 : i32
    %c0_i32_1 = arith.constant 0 : i32
    return %c0_i32, %c0_i32_0 : i32, i32
  }
  func.func @transform_3(%arg0: i32) -> (i32, i32) {
    %c0_i32 = arith.constant 0 : i32
    %c0_i32_0 = arith.constant 0 : i32
    return %arg0, %c0_i32 : i32, i32
  }
}

module attributes {stable_mosaic.version = 11 : i64} {
  func.func @_bigru_kernel(%arg0: i32, %arg1: i32, %arg2: memref<64x32xf32, #tpu.memory_space<vmem>>, %arg3: memref<1x32x96xf32, #tpu.memory_space<vmem>>, %arg4: memref<1x1x96xf32, #tpu.memory_space<vmem>>, %arg5: memref<1x32x96xf32, #tpu.memory_space<vmem>>, %arg6: memref<1x1x96xf32, #tpu.memory_space<vmem>>, %arg7: memref<1x8x8x32xf32, #tpu.memory_space<vmem>>, %arg8: memref<64x96xf32, #tpu.memory_space<vmem>>, %arg9: memref<8x32xf32, #tpu.memory_space<vmem>>) attributes {dimension_semantics = [#tpu.dimension_semantics<parallel>, #tpu.dimension_semantics<arbitrary>], iteration_bounds = array<i64: 2, 1>, scalar_prefetch = 0 : i64, scratch_operands = 2 : i64, tpu.core_type = #tpu.core_type<tc>, window_params = [{transform_indices = @transform_0, window_bounds = array<i64: 64, 32>}, {transform_indices = @transform_1, window_bounds = array<i64: 1, 32, 96>}, {transform_indices = @transform_2, window_bounds = array<i64: 1, 1, 96>}, {transform_indices = @transform_3, window_bounds = array<i64: 1, 32, 96>}, {transform_indices = @transform_4, window_bounds = array<i64: 1, 1, 96>}, {transform_indices = @transform_5, window_bounds = array<i64: 1, 8, 8, 32>}]} {
    %c1_i32 = arith.constant 1 : i32
    %0 = arith.subi %c1_i32, %arg0 : i32
    %1 = arith.muli %0, %arg1 : i32
    %c0_i32 = arith.constant 0 : i32
    %2 = arith.subi %c0_i32, %arg1 : i32
    %3 = arith.muli %arg0, %2 : i32
    %4 = arith.addi %1, %3 : i32
    %c0_i32_0 = arith.constant 0 : i32
    %5 = arith.cmpi eq, %arg1, %c0_i32_0 : i32
    %6 = arith.extui %5 : i1 to i32
    %c0_i32_1 = arith.constant 0 : i32
    %7 = arith.cmpi ne, %6, %c0_i32_1 : i32
    scf.if %7 {
      %cst_24 = arith.constant 0.000000e+00 : f32
      %28 = vector.broadcast %cst_24 : f32 to vector<8x32xf32>
      %c0_25 = arith.constant 0 : index
      %c0_26 = arith.constant 0 : index
      %29 = vector.load %arg9[%c0_25, %c0_26] : memref<8x32xf32, #tpu.memory_space<vmem>>, vector<8x32xf32>
      tpu.vector_store %arg9[%c0_25, %c0_26], %28 {strides = array<i32>} : memref<8x32xf32, #tpu.memory_space<vmem>>, vector<8x32xf32>,
    } else {
    }
    %c0 = arith.constant 0 : index
    %c0_2 = arith.constant 0 : index
    %8 = vector.load %arg2[%c0, %c0_2] : memref<64x32xf32, #tpu.memory_space<vmem>>, vector<64x32xf32>
    %9 = arith.truncf %8 : vector<64x32xf32> to vector<64x32xbf16>
    %c0_3 = arith.constant 0 : index
    %c0_4 = arith.constant 0 : index
    %c0_5 = arith.constant 0 : index
    %10 = vector.load %arg3[%c0_3, %c0_4, %c0_5] : memref<1x32x96xf32, #tpu.memory_space<vmem>>, vector<1x32x96xf32>
    %11 = vector.shape_cast %10 : vector<1x32x96xf32> to vector<32x96xf32>
    %12 = arith.truncf %11 : vector<32x96xf32> to vector<32x96xbf16>
    %cst = arith.constant dense<0.000000e+00> : vector<64x96xf32>
    %13 = tpu.matmul %9, %12, %cst {dimension_numbers = #tpu.dot_dimension_numbers<[1], [0], [0], [1], [0, 0, 1, 1], [], []>} : vector<64x32xbf16>, vector<32x96xbf16>, vector<64x96xf32> -> vector<64x96xf32>
    %c0_6 = arith.constant 0 : index
    %c0_7 = arith.constant 0 : index
    %c0_8 = arith.constant 0 : index
    %14 = vector.load %arg4[%c0_6, %c0_7, %c0_8] : memref<1x1x96xf32, #tpu.memory_space<vmem>>, vector<1x1x96xf32>
    %15 = vector.shape_cast %14 : vector<1x1x96xf32> to vector<1x96xf32>
    %16 = vector.broadcast %15 : vector<1x96xf32> to vector<64x96xf32>
    %17 = arith.addf %13, %16 : vector<64x96xf32>
    %c0_9 = arith.constant 0 : index
    %c0_10 = arith.constant 0 : index
    %18 = vector.load %arg8[%c0_9, %c0_10] : memref<64x96xf32, #tpu.memory_space<vmem>>, vector<64x96xf32>
    tpu.vector_store %arg8[%c0_9, %c0_10], %17 {strides = array<i32>} : memref<64x96xf32, #tpu.memory_space<vmem>>, vector<64x96xf32>,
    %c0_11 = arith.constant 0 : index
    %c0_12 = arith.constant 0 : index
    %c0_13 = arith.constant 0 : index
    %19 = vector.load %arg5[%c0_11, %c0_12, %c0_13] : memref<1x32x96xf32, #tpu.memory_space<vmem>>, vector<1x32x96xf32>
    %20 = vector.shape_cast %19 : vector<1x32x96xf32> to vector<32x96xf32>
    %21 = arith.truncf %20 : vector<32x96xf32> to vector<32x96xbf16>
    %c0_14 = arith.constant 0 : index
    %c0_15 = arith.constant 0 : index
    %c0_16 = arith.constant 0 : index
    %22 = vector.load %arg6[%c0_14, %c0_15, %c0_16] : memref<1x1x96xf32, #tpu.memory_space<vmem>>, vector<1x1x96xf32>
    %23 = vector.shape_cast %22 : vector<1x1x96xf32> to vector<1x96xf32>
    %c0_17 = arith.constant 0 : index
    %c0_18 = arith.constant 0 : index
    %24 = vector.load %arg9[%c0_17, %c0_18] : memref<8x32xf32, #tpu.memory_space<vmem>>, vector<8x32xf32>
    %c0_i32_19 = arith.constant 0 : i32
    %c8_i32 = arith.constant 8 : i32
    %25 = arith.addi %c0_i32_19, %c8_i32 : i32
    %c1_i32_20 = arith.constant 1 : i32
    %26 = scf.for %arg10 = %c0_i32_19 to %25 step %c1_i32_20 iter_args(%arg11 = %24) -> (vector<8x32xf32>)  : i32 {
      %c0_i32_24 = arith.constant 0 : i32
      %28 = arith.cmpi eq, %arg0, %c0_i32_24 : i32
      %c7_i32 = arith.constant 7 : i32
      %29 = arith.subi %c7_i32, %arg10 : i32
      %30 = arith.select %28, %arg10, %29 : i32
      %c8_i32_25 = arith.constant 8 : i32
      %31 = arith.muli %30, %c8_i32_25 : i32
      %32 = tpu.assume_multiple %31, 8 : i32
      %33 = arith.index_cast %32 : i32 to index
      %c0_26 = arith.constant 0 : index
      %34 = vector.load %arg8[%33, %c0_26] : memref<64x96xf32, #tpu.memory_space<vmem>>, vector<8x96xf32>
      %35 = arith.truncf %arg11 : vector<8x32xf32> to vector<8x32xbf16>
      %cst_27 = arith.constant dense<0.000000e+00> : vector<8x96xf32>
      %36 = tpu.matmul %35, %21, %cst_27 {dimension_numbers = #tpu.dot_dimension_numbers<[1], [0], [0], [1], [0, 0, 1, 1], [], []>} : vector<8x32xbf16>, vector<32x96xbf16>, vector<8x96xf32> -> vector<8x96xf32>
      %37 = vector.broadcast %23 : vector<1x96xf32> to vector<8x96xf32>
      %38 = arith.addf %36, %37 : vector<8x96xf32>
      %39 = vector.extract_strided_slice %34 {offsets = [0, 0], sizes = [8, 32], strides = [1, 1]} : vector<8x96xf32> to vector<8x32xf32>
      %40 = vector.extract_strided_slice %38 {offsets = [0, 0], sizes = [8, 32], strides = [1, 1]} : vector<8x96xf32> to vector<8x32xf32>
      %41 = arith.addf %39, %40 : vector<8x32xf32>
      %42 = arith.negf %41 : vector<8x32xf32>
      %43 = math.exp %42 : vector<8x32xf32>
      %cst_28 = arith.constant 1.000000e+00 : f32
      %44 = vector.broadcast %cst_28 : f32 to vector<8x32xf32>
      %45 = arith.addf %44, %43 : vector<8x32xf32>
      %46 = arith.divf %44, %45 : vector<8x32xf32>
      %47 = vector.extract_strided_slice %34 {offsets = [0, 32], sizes = [8, 32], strides = [1, 1]} : vector<8x96xf32> to vector<8x32xf32>
      %48 = vector.extract_strided_slice %38 {offsets = [0, 32], sizes = [8, 32], strides = [1, 1]} : vector<8x96xf32> to vector<8x32xf32>
      %49 = arith.addf %47, %48 : vector<8x32xf32>
      %50 = arith.negf %49 : vector<8x32xf32>
      %51 = math.exp %50 : vector<8x32xf32>
      %cst_29 = arith.constant 1.000000e+00 : f32
      %52 = vector.broadcast %cst_29 : f32 to vector<8x32xf32>
      %53 = arith.addf %52, %51 : vector<8x32xf32>
      %54 = arith.divf %52, %53 : vector<8x32xf32>
      %55 = vector.extract_strided_slice %34 {offsets = [0, 64], sizes = [8, 32], strides = [1, 1]} : vector<8x96xf32> to vector<8x32xf32>
      %56 = vector.extract_strided_slice %38 {offsets = [0, 64], sizes = [8, 32], strides = [1, 1]} : vector<8x96xf32> to vector<8x32xf32>
      %57 = arith.mulf %46, %56 : vector<8x32xf32>
      %58 = arith.addf %55, %57 : vector<8x32xf32>
      %59 = math.tanh %58 : vector<8x32xf32>
      %cst_30 = arith.constant 1.000000e+00 : f32
      %60 = vector.broadcast %cst_30 : f32 to vector<8x32xf32>
      %61 = arith.subf %60, %54 : vector<8x32xf32>
      %62 = arith.mulf %61, %59 : vector<8x32xf32>
      %63 = arith.mulf %54, %arg11 : vector<8x32xf32>
      %64 = arith.addf %62, %63 : vector<8x32xf32>
      %c8_i32_31 = arith.constant 8 : i32
      %65 = arith.muli %4, %c8_i32_31 : i32
      %66 = arith.addi %65, %30 : i32
      %c8_i32_32 = arith.constant 8 : i32
      %67 = arith.cmpi slt, %66, %c8_i32_32 : i32
      %68 = arith.select %67, %64, %arg11 : vector<8x32xf32>
      %c0_33 = arith.constant 0 : index
      %69 = arith.index_cast %30 : i32 to index
      %c0_34 = arith.constant 0 : index
      %c0_35 = arith.constant 0 : index
      %70 = vector.load %arg7[%c0_33, %69, %c0_34, %c0_35] : memref<1x8x8x32xf32, #tpu.memory_space<vmem>>, vector<1x1x8x32xf32>
      %71 = vector.shape_cast %70 : vector<1x1x8x32xf32> to vector<8x32xf32>
      %72 = vector.shape_cast %68 : vector<8x32xf32> to vector<1x1x8x32xf32>
      tpu.vector_store %arg7[%c0_33, %69, %c0_34, %c0_35], %72 {strides = array<i32>} : memref<1x8x8x32xf32, #tpu.memory_space<vmem>>, vector<1x1x8x32xf32>,
      scf.yield %68 : vector<8x32xf32>
    }
    %c8_i32_21 = arith.constant 8 : i32
    %c0_22 = arith.constant 0 : index
    %c0_23 = arith.constant 0 : index
    %27 = vector.load %arg9[%c0_22, %c0_23] : memref<8x32xf32, #tpu.memory_space<vmem>>, vector<8x32xf32>
    tpu.vector_store %arg9[%c0_22, %c0_23], %26 {strides = array<i32>} : memref<8x32xf32, #tpu.memory_space<vmem>>, vector<8x32xf32>,
    return
  }
  func.func @transform_0(%arg0: i32, %arg1: i32) -> (i32, i32) {
    %c1_i32 = arith.constant 1 : i32
    %0 = arith.subi %c1_i32, %arg0 : i32
    %1 = arith.muli %0, %arg1 : i32
    %c0_i32 = arith.constant 0 : i32
    %2 = arith.subi %c0_i32, %arg1 : i32
    %3 = arith.muli %arg0, %2 : i32
    %4 = arith.addi %1, %3 : i32
    %c0_i32_0 = arith.constant 0 : i32
    %c0_i32_1 = arith.constant 0 : i32
    return %4, %c0_i32_0 : i32, i32
  }
  func.func @transform_1(%arg0: i32, %arg1: i32) -> (i32, i32, i32) {
    %c0_i32 = arith.constant 0 : i32
    %c0_i32_0 = arith.constant 0 : i32
    %c0_i32_1 = arith.constant 0 : i32
    return %arg0, %c0_i32, %c0_i32_0 : i32, i32, i32
  }
  func.func @transform_2(%arg0: i32, %arg1: i32) -> (i32, i32, i32) {
    %c0_i32 = arith.constant 0 : i32
    %c0_i32_0 = arith.constant 0 : i32
    %c0_i32_1 = arith.constant 0 : i32
    return %arg0, %c0_i32, %c0_i32_0 : i32, i32, i32
  }
  func.func @transform_3(%arg0: i32, %arg1: i32) -> (i32, i32, i32) {
    %c0_i32 = arith.constant 0 : i32
    %c0_i32_0 = arith.constant 0 : i32
    %c0_i32_1 = arith.constant 0 : i32
    return %arg0, %c0_i32, %c0_i32_0 : i32, i32, i32
  }
  func.func @transform_4(%arg0: i32, %arg1: i32) -> (i32, i32, i32) {
    %c0_i32 = arith.constant 0 : i32
    %c0_i32_0 = arith.constant 0 : i32
    %c0_i32_1 = arith.constant 0 : i32
    return %arg0, %c0_i32, %c0_i32_0 : i32, i32, i32
  }
  func.func @transform_5(%arg0: i32, %arg1: i32) -> (i32, i32, i32, i32) {
    %c1_i32 = arith.constant 1 : i32
    %0 = arith.subi %c1_i32, %arg0 : i32
    %1 = arith.muli %0, %arg1 : i32
    %c0_i32 = arith.constant 0 : i32
    %2 = arith.subi %c0_i32, %arg1 : i32
    %3 = arith.muli %arg0, %2 : i32
    %4 = arith.addi %1, %3 : i32
    %c0_i32_0 = arith.constant 0 : i32
    %c0_i32_1 = arith.constant 0 : i32
    %c0_i32_2 = arith.constant 0 : i32
    return %arg0, %4, %c0_i32_0, %c0_i32_1 : i32, i32, i32, i32
  }
}

module attributes {stable_mosaic.version = 11 : i64} {
  func.func @_ln_rows_kernel(%arg0: i32, %arg1: memref<16x64xf32, #tpu.memory_space<vmem>>, %arg2: memref<1x64xf32, #tpu.memory_space<vmem>>, %arg3: memref<1x64xf32, #tpu.memory_space<vmem>>, %arg4: memref<16x64xf32, #tpu.memory_space<vmem>>) attributes {dimension_semantics = [#tpu.dimension_semantics<parallel>], iteration_bounds = array<i64: 1>, scalar_prefetch = 0 : i64, scratch_operands = 0 : i64, tpu.core_type = #tpu.core_type<tc>, window_params = [{transform_indices = @transform_0, window_bounds = array<i64: 16, 64>}, {pipeline_mode = #tpu.pipeline_mode<synchronous>, transform_indices = @transform_1, window_bounds = array<i64: 1, 64>}, {pipeline_mode = #tpu.pipeline_mode<synchronous>, transform_indices = @transform_2, window_bounds = array<i64: 1, 64>}, {transform_indices = @transform_3, window_bounds = array<i64: 16, 64>}]} {
    %c0 = arith.constant 0 : index
    %c0_0 = arith.constant 0 : index
    %0 = vector.load %arg1[%c0, %c0_0] : memref<16x64xf32, #tpu.memory_space<vmem>>, vector<16x64xf32>
    %cst = arith.constant dense<0.000000e+00> : vector<16xf32>
    %1 = vector.multi_reduction <add>, %0, %cst [1] : vector<16x64xf32> to vector<16xf32>
    %2 = vector.shape_cast %1 : vector<16xf32> to vector<16x1xf32>
    %cst_1 = arith.constant 6.400000e+01 : f32
    %3 = vector.broadcast %cst_1 : f32 to vector<16x1xf32>
    %4 = arith.divf %2, %3 : vector<16x1xf32>
    %5 = vector.broadcast %4 : vector<16x1xf32> to vector<16x64xf32>
    %6 = arith.subf %0, %5 : vector<16x64xf32>
    %7 = arith.mulf %6, %6 : vector<16x64xf32>
    %cst_2 = arith.constant dense<0.000000e+00> : vector<16xf32>
    %8 = vector.multi_reduction <add>, %7, %cst_2 [1] : vector<16x64xf32> to vector<16xf32>
    %9 = vector.shape_cast %8 : vector<16xf32> to vector<16x1xf32>
    %cst_3 = arith.constant 6.400000e+01 : f32
    %10 = vector.broadcast %cst_3 : f32 to vector<16x1xf32>
    %11 = arith.divf %9, %10 : vector<16x1xf32>
    %12 = vector.broadcast %4 : vector<16x1xf32> to vector<16x64xf32>
    %13 = arith.subf %0, %12 : vector<16x64xf32>
    %cst_4 = arith.constant 9.99999974E-6 : f32
    %14 = vector.broadcast %cst_4 : f32 to vector<16x1xf32>
    %15 = arith.addf %11, %14 : vector<16x1xf32>
    %16 = math.rsqrt %15 : vector<16x1xf32>
    %17 = vector.broadcast %16 : vector<16x1xf32> to vector<16x64xf32>
    %18 = arith.mulf %13, %17 : vector<16x64xf32>
    %c0_5 = arith.constant 0 : index
    %c0_6 = arith.constant 0 : index
    %19 = vector.load %arg2[%c0_5, %c0_6] : memref<1x64xf32, #tpu.memory_space<vmem>>, vector<1x64xf32>
    %20 = vector.broadcast %19 : vector<1x64xf32> to vector<16x64xf32>
    %21 = arith.mulf %18, %20 : vector<16x64xf32>
    %c0_7 = arith.constant 0 : index
    %c0_8 = arith.constant 0 : index
    %22 = vector.load %arg3[%c0_7, %c0_8] : memref<1x64xf32, #tpu.memory_space<vmem>>, vector<1x64xf32>
    %23 = vector.broadcast %22 : vector<1x64xf32> to vector<16x64xf32>
    %24 = arith.addf %21, %23 : vector<16x64xf32>
    %cst_9 = arith.constant 5.000000e-01 : f32
    %25 = vector.broadcast %cst_9 : f32 to vector<16x64xf32>
    %26 = arith.mulf %25, %24 : vector<16x64xf32>
    %cst_10 = arith.constant 4.471500e-02 : f32
    %27 = vector.broadcast %cst_10 : f32 to vector<16x64xf32>
    %28 = arith.mulf %27, %24 : vector<16x64xf32>
    %29 = arith.mulf %28, %24 : vector<16x64xf32>
    %30 = arith.mulf %29, %24 : vector<16x64xf32>
    %31 = arith.addf %24, %30 : vector<16x64xf32>
    %cst_11 = arith.constant 0.797884583 : f32
    %32 = vector.broadcast %cst_11 : f32 to vector<16x64xf32>
    %33 = arith.mulf %32, %31 : vector<16x64xf32>
    %34 = math.tanh %33 : vector<16x64xf32>
    %cst_12 = arith.constant 1.000000e+00 : f32
    %35 = vector.broadcast %cst_12 : f32 to vector<16x64xf32>
    %36 = arith.addf %35, %34 : vector<16x64xf32>
    %37 = arith.mulf %26, %36 : vector<16x64xf32>
    %c0_13 = arith.constant 0 : index
    %c0_14 = arith.constant 0 : index
    %38 = vector.load %arg4[%c0_13, %c0_14] : memref<16x64xf32, #tpu.memory_space<vmem>>, vector<16x64xf32>
    tpu.vector_store %arg4[%c0_13, %c0_14], %37 {strides = array<i32>} : memref<16x64xf32, #tpu.memory_space<vmem>>, vector<16x64xf32>,
    return
  }
  func.func @transform_0(%arg0: i32) -> (i32, i32) {
    %c0_i32 = arith.constant 0 : i32
    %c0_i32_0 = arith.constant 0 : i32
    return %arg0, %c0_i32 : i32, i32
  }
  func.func @transform_1(%arg0: i32) -> (i32, i32) {
    %c0_i32 = arith.constant 0 : i32
    %c0_i32_0 = arith.constant 0 : i32
    %c0_i32_1 = arith.constant 0 : i32
    return %c0_i32, %c0_i32_0 : i32, i32
  }
  func.func @transform_2(%arg0: i32) -> (i32, i32) {
    %c0_i32 = arith.constant 0 : i32
    %c0_i32_0 = arith.constant 0 : i32
    %c0_i32_1 = arith.constant 0 : i32
    return %c0_i32, %c0_i32_0 : i32, i32
  }
  func.func @transform_3(%arg0: i32) -> (i32, i32) {
    %c0_i32 = arith.constant 0 : i32
    %c0_i32_0 = arith.constant 0 : i32
    return %arg0, %c0_i32 : i32, i32
  }
}

module attributes {stable_mosaic.version = 11 : i64} {
  func.func @_bigru_kernel(%arg0: i32, %arg1: i32, %arg2: memref<16x64xf32, #tpu.memory_space<vmem>>, %arg3: memref<1x64x96xf32, #tpu.memory_space<vmem>>, %arg4: memref<1x1x96xf32, #tpu.memory_space<vmem>>, %arg5: memref<1x32x96xf32, #tpu.memory_space<vmem>>, %arg6: memref<1x1x96xf32, #tpu.memory_space<vmem>>, %arg7: memref<1x2x8x32xf32, #tpu.memory_space<vmem>>, %arg8: memref<16x96xf32, #tpu.memory_space<vmem>>, %arg9: memref<8x32xf32, #tpu.memory_space<vmem>>) attributes {dimension_semantics = [#tpu.dimension_semantics<parallel>, #tpu.dimension_semantics<arbitrary>], iteration_bounds = array<i64: 2, 1>, scalar_prefetch = 0 : i64, scratch_operands = 2 : i64, tpu.core_type = #tpu.core_type<tc>, window_params = [{transform_indices = @transform_0, window_bounds = array<i64: 16, 64>}, {transform_indices = @transform_1, window_bounds = array<i64: 1, 64, 96>}, {transform_indices = @transform_2, window_bounds = array<i64: 1, 1, 96>}, {transform_indices = @transform_3, window_bounds = array<i64: 1, 32, 96>}, {transform_indices = @transform_4, window_bounds = array<i64: 1, 1, 96>}, {transform_indices = @transform_5, window_bounds = array<i64: 1, 2, 8, 32>}]} {
    %c1_i32 = arith.constant 1 : i32
    %0 = arith.subi %c1_i32, %arg0 : i32
    %1 = arith.muli %0, %arg1 : i32
    %c0_i32 = arith.constant 0 : i32
    %2 = arith.subi %c0_i32, %arg1 : i32
    %3 = arith.muli %arg0, %2 : i32
    %4 = arith.addi %1, %3 : i32
    %c0_i32_0 = arith.constant 0 : i32
    %5 = arith.cmpi eq, %arg1, %c0_i32_0 : i32
    %6 = arith.extui %5 : i1 to i32
    %c0_i32_1 = arith.constant 0 : i32
    %7 = arith.cmpi ne, %6, %c0_i32_1 : i32
    scf.if %7 {
      %cst_24 = arith.constant 0.000000e+00 : f32
      %28 = vector.broadcast %cst_24 : f32 to vector<8x32xf32>
      %c0_25 = arith.constant 0 : index
      %c0_26 = arith.constant 0 : index
      %29 = vector.load %arg9[%c0_25, %c0_26] : memref<8x32xf32, #tpu.memory_space<vmem>>, vector<8x32xf32>
      tpu.vector_store %arg9[%c0_25, %c0_26], %28 {strides = array<i32>} : memref<8x32xf32, #tpu.memory_space<vmem>>, vector<8x32xf32>,
    } else {
    }
    %c0 = arith.constant 0 : index
    %c0_2 = arith.constant 0 : index
    %8 = vector.load %arg2[%c0, %c0_2] : memref<16x64xf32, #tpu.memory_space<vmem>>, vector<16x64xf32>
    %9 = arith.truncf %8 : vector<16x64xf32> to vector<16x64xbf16>
    %c0_3 = arith.constant 0 : index
    %c0_4 = arith.constant 0 : index
    %c0_5 = arith.constant 0 : index
    %10 = vector.load %arg3[%c0_3, %c0_4, %c0_5] : memref<1x64x96xf32, #tpu.memory_space<vmem>>, vector<1x64x96xf32>
    %11 = vector.shape_cast %10 : vector<1x64x96xf32> to vector<64x96xf32>
    %12 = arith.truncf %11 : vector<64x96xf32> to vector<64x96xbf16>
    %cst = arith.constant dense<0.000000e+00> : vector<16x96xf32>
    %13 = tpu.matmul %9, %12, %cst {dimension_numbers = #tpu.dot_dimension_numbers<[1], [0], [0], [1], [0, 0, 1, 1], [], []>} : vector<16x64xbf16>, vector<64x96xbf16>, vector<16x96xf32> -> vector<16x96xf32>
    %c0_6 = arith.constant 0 : index
    %c0_7 = arith.constant 0 : index
    %c0_8 = arith.constant 0 : index
    %14 = vector.load %arg4[%c0_6, %c0_7, %c0_8] : memref<1x1x96xf32, #tpu.memory_space<vmem>>, vector<1x1x96xf32>
    %15 = vector.shape_cast %14 : vector<1x1x96xf32> to vector<1x96xf32>
    %16 = vector.broadcast %15 : vector<1x96xf32> to vector<16x96xf32>
    %17 = arith.addf %13, %16 : vector<16x96xf32>
    %c0_9 = arith.constant 0 : index
    %c0_10 = arith.constant 0 : index
    %18 = vector.load %arg8[%c0_9, %c0_10] : memref<16x96xf32, #tpu.memory_space<vmem>>, vector<16x96xf32>
    tpu.vector_store %arg8[%c0_9, %c0_10], %17 {strides = array<i32>} : memref<16x96xf32, #tpu.memory_space<vmem>>, vector<16x96xf32>,
    %c0_11 = arith.constant 0 : index
    %c0_12 = arith.constant 0 : index
    %c0_13 = arith.constant 0 : index
    %19 = vector.load %arg5[%c0_11, %c0_12, %c0_13] : memref<1x32x96xf32, #tpu.memory_space<vmem>>, vector<1x32x96xf32>
    %20 = vector.shape_cast %19 : vector<1x32x96xf32> to vector<32x96xf32>
    %21 = arith.truncf %20 : vector<32x96xf32> to vector<32x96xbf16>
    %c0_14 = arith.constant 0 : index
    %c0_15 = arith.constant 0 : index
    %c0_16 = arith.constant 0 : index
    %22 = vector.load %arg6[%c0_14, %c0_15, %c0_16] : memref<1x1x96xf32, #tpu.memory_space<vmem>>, vector<1x1x96xf32>
    %23 = vector.shape_cast %22 : vector<1x1x96xf32> to vector<1x96xf32>
    %c0_17 = arith.constant 0 : index
    %c0_18 = arith.constant 0 : index
    %24 = vector.load %arg9[%c0_17, %c0_18] : memref<8x32xf32, #tpu.memory_space<vmem>>, vector<8x32xf32>
    %c0_i32_19 = arith.constant 0 : i32
    %c2_i32 = arith.constant 2 : i32
    %25 = arith.addi %c0_i32_19, %c2_i32 : i32
    %c1_i32_20 = arith.constant 1 : i32
    %26 = scf.for %arg10 = %c0_i32_19 to %25 step %c1_i32_20 iter_args(%arg11 = %24) -> (vector<8x32xf32>)  : i32 {
      %c0_i32_24 = arith.constant 0 : i32
      %28 = arith.cmpi eq, %arg0, %c0_i32_24 : i32
      %c1_i32_25 = arith.constant 1 : i32
      %29 = arith.subi %c1_i32_25, %arg10 : i32
      %30 = arith.select %28, %arg10, %29 : i32
      %c8_i32 = arith.constant 8 : i32
      %31 = arith.muli %30, %c8_i32 : i32
      %32 = tpu.assume_multiple %31, 8 : i32
      %33 = arith.index_cast %32 : i32 to index
      %c0_26 = arith.constant 0 : index
      %34 = vector.load %arg8[%33, %c0_26] : memref<16x96xf32, #tpu.memory_space<vmem>>, vector<8x96xf32>
      %35 = arith.truncf %arg11 : vector<8x32xf32> to vector<8x32xbf16>
      %cst_27 = arith.constant dense<0.000000e+00> : vector<8x96xf32>
      %36 = tpu.matmul %35, %21, %cst_27 {dimension_numbers = #tpu.dot_dimension_numbers<[1], [0], [0], [1], [0, 0, 1, 1], [], []>} : vector<8x32xbf16>, vector<32x96xbf16>, vector<8x96xf32> -> vector<8x96xf32>
      %37 = vector.broadcast %23 : vector<1x96xf32> to vector<8x96xf32>
      %38 = arith.addf %36, %37 : vector<8x96xf32>
      %39 = vector.extract_strided_slice %34 {offsets = [0, 0], sizes = [8, 32], strides = [1, 1]} : vector<8x96xf32> to vector<8x32xf32>
      %40 = vector.extract_strided_slice %38 {offsets = [0, 0], sizes = [8, 32], strides = [1, 1]} : vector<8x96xf32> to vector<8x32xf32>
      %41 = arith.addf %39, %40 : vector<8x32xf32>
      %42 = arith.negf %41 : vector<8x32xf32>
      %43 = math.exp %42 : vector<8x32xf32>
      %cst_28 = arith.constant 1.000000e+00 : f32
      %44 = vector.broadcast %cst_28 : f32 to vector<8x32xf32>
      %45 = arith.addf %44, %43 : vector<8x32xf32>
      %46 = arith.divf %44, %45 : vector<8x32xf32>
      %47 = vector.extract_strided_slice %34 {offsets = [0, 32], sizes = [8, 32], strides = [1, 1]} : vector<8x96xf32> to vector<8x32xf32>
      %48 = vector.extract_strided_slice %38 {offsets = [0, 32], sizes = [8, 32], strides = [1, 1]} : vector<8x96xf32> to vector<8x32xf32>
      %49 = arith.addf %47, %48 : vector<8x32xf32>
      %50 = arith.negf %49 : vector<8x32xf32>
      %51 = math.exp %50 : vector<8x32xf32>
      %cst_29 = arith.constant 1.000000e+00 : f32
      %52 = vector.broadcast %cst_29 : f32 to vector<8x32xf32>
      %53 = arith.addf %52, %51 : vector<8x32xf32>
      %54 = arith.divf %52, %53 : vector<8x32xf32>
      %55 = vector.extract_strided_slice %34 {offsets = [0, 64], sizes = [8, 32], strides = [1, 1]} : vector<8x96xf32> to vector<8x32xf32>
      %56 = vector.extract_strided_slice %38 {offsets = [0, 64], sizes = [8, 32], strides = [1, 1]} : vector<8x96xf32> to vector<8x32xf32>
      %57 = arith.mulf %46, %56 : vector<8x32xf32>
      %58 = arith.addf %55, %57 : vector<8x32xf32>
      %59 = math.tanh %58 : vector<8x32xf32>
      %cst_30 = arith.constant 1.000000e+00 : f32
      %60 = vector.broadcast %cst_30 : f32 to vector<8x32xf32>
      %61 = arith.subf %60, %54 : vector<8x32xf32>
      %62 = arith.mulf %61, %59 : vector<8x32xf32>
      %63 = arith.mulf %54, %arg11 : vector<8x32xf32>
      %64 = arith.addf %62, %63 : vector<8x32xf32>
      %c2_i32_31 = arith.constant 2 : i32
      %65 = arith.muli %4, %c2_i32_31 : i32
      %66 = arith.addi %65, %30 : i32
      %c2_i32_32 = arith.constant 2 : i32
      %67 = arith.cmpi slt, %66, %c2_i32_32 : i32
      %68 = arith.select %67, %64, %arg11 : vector<8x32xf32>
      %c0_33 = arith.constant 0 : index
      %69 = arith.index_cast %30 : i32 to index
      %c0_34 = arith.constant 0 : index
      %c0_35 = arith.constant 0 : index
      %70 = vector.load %arg7[%c0_33, %69, %c0_34, %c0_35] : memref<1x2x8x32xf32, #tpu.memory_space<vmem>>, vector<1x1x8x32xf32>
      %71 = vector.shape_cast %70 : vector<1x1x8x32xf32> to vector<8x32xf32>
      %72 = vector.shape_cast %68 : vector<8x32xf32> to vector<1x1x8x32xf32>
      tpu.vector_store %arg7[%c0_33, %69, %c0_34, %c0_35], %72 {strides = array<i32>} : memref<1x2x8x32xf32, #tpu.memory_space<vmem>>, vector<1x1x8x32xf32>,
      scf.yield %68 : vector<8x32xf32>
    }
    %c2_i32_21 = arith.constant 2 : i32
    %c0_22 = arith.constant 0 : index
    %c0_23 = arith.constant 0 : index
    %27 = vector.load %arg9[%c0_22, %c0_23] : memref<8x32xf32, #tpu.memory_space<vmem>>, vector<8x32xf32>
    tpu.vector_store %arg9[%c0_22, %c0_23], %26 {strides = array<i32>} : memref<8x32xf32, #tpu.memory_space<vmem>>, vector<8x32xf32>,
    return
  }
  func.func @transform_0(%arg0: i32, %arg1: i32) -> (i32, i32) {
    %c1_i32 = arith.constant 1 : i32
    %0 = arith.subi %c1_i32, %arg0 : i32
    %1 = arith.muli %0, %arg1 : i32
    %c0_i32 = arith.constant 0 : i32
    %2 = arith.subi %c0_i32, %arg1 : i32
    %3 = arith.muli %arg0, %2 : i32
    %4 = arith.addi %1, %3 : i32
    %c0_i32_0 = arith.constant 0 : i32
    %c0_i32_1 = arith.constant 0 : i32
    return %4, %c0_i32_0 : i32, i32
  }
  func.func @transform_1(%arg0: i32, %arg1: i32) -> (i32, i32, i32) {
    %c0_i32 = arith.constant 0 : i32
    %c0_i32_0 = arith.constant 0 : i32
    %c0_i32_1 = arith.constant 0 : i32
    return %arg0, %c0_i32, %c0_i32_0 : i32, i32, i32
  }
  func.func @transform_2(%arg0: i32, %arg1: i32) -> (i32, i32, i32) {
    %c0_i32 = arith.constant 0 : i32
    %c0_i32_0 = arith.constant 0 : i32
    %c0_i32_1 = arith.constant 0 : i32
    return %arg0, %c0_i32, %c0_i32_0 : i32, i32, i32
  }
  func.func @transform_3(%arg0: i32, %arg1: i32) -> (i32, i32, i32) {
    %c0_i32 = arith.constant 0 : i32
    %c0_i32_0 = arith.constant 0 : i32
    %c0_i32_1 = arith.constant 0 : i32
    return %arg0, %c0_i32, %c0_i32_0 : i32, i32, i32
  }
  func.func @transform_4(%arg0: i32, %arg1: i32) -> (i32, i32, i32) {
    %c0_i32 = arith.constant 0 : i32
    %c0_i32_0 = arith.constant 0 : i32
    %c0_i32_1 = arith.constant 0 : i32
    return %arg0, %c0_i32, %c0_i32_0 : i32, i32, i32
  }
  func.func @transform_5(%arg0: i32, %arg1: i32) -> (i32, i32, i32, i32) {
    %c1_i32 = arith.constant 1 : i32
    %0 = arith.subi %c1_i32, %arg0 : i32
    %1 = arith.muli %0, %arg1 : i32
    %c0_i32 = arith.constant 0 : i32
    %2 = arith.subi %c0_i32, %arg1 : i32
    %3 = arith.muli %arg0, %2 : i32
    %4 = arith.addi %1, %3 : i32
    %c0_i32_0 = arith.constant 0 : i32
    %c0_i32_1 = arith.constant 0 : i32
    %c0_i32_2 = arith.constant 0 : i32
    return %arg0, %4, %c0_i32_0, %c0_i32_1 : i32, i32, i32, i32
  }
}

module attributes {stable_mosaic.version = 11 : i64} {
  func.func @_linear_kernel(%arg0: i32, %arg1: i32, %arg2: i32, %arg3: memref<16x64xf32, #tpu.memory_space<vmem>>, %arg4: memref<64x32xf32, #tpu.memory_space<vmem>>, %arg5: memref<1x32xf32, #tpu.memory_space<vmem>>, %arg6: memref<16x32xf32, #tpu.memory_space<vmem>>) attributes {dimension_semantics = [#tpu.dimension_semantics<parallel>, #tpu.dimension_semantics<parallel>, #tpu.dimension_semantics<arbitrary>], iteration_bounds = array<i64: 1, 1, 1>, scalar_prefetch = 0 : i64, scratch_operands = 0 : i64, tpu.core_type = #tpu.core_type<tc>, window_params = [{transform_indices = @transform_0, window_bounds = array<i64: 16, 64>}, {transform_indices = @transform_1, window_bounds = array<i64: 64, 32>}, {transform_indices = @transform_2, window_bounds = array<i64: 1, 32>}, {transform_indices = @transform_3, window_bounds = array<i64: 16, 32>}]} {
    %c0_i32 = arith.constant 0 : i32
    %0 = arith.cmpi eq, %arg2, %c0_i32 : i32
    %1 = arith.extui %0 : i1 to i32
    %c0_i32_0 = arith.constant 0 : i32
    %2 = arith.cmpi ne, %1, %c0_i32_0 : i32
    scf.if %2 {
      %c0_10 = arith.constant 0 : index
      %c0_11 = arith.constant 0 : index
      %14 = vector.load %arg5[%c0_10, %c0_11] : memref<1x32xf32, #tpu.memory_space<vmem>>, vector<1x32xf32>
      %15 = vector.shape_cast %14 : vector<1x32xf32> to vector<1x32xf32>
      %16 = vector.broadcast %15 : vector<1x32xf32> to vector<16x32xf32>
      %c0_12 = arith.constant 0 : index
      %c0_13 = arith.constant 0 : index
      %17 = vector.load %arg6[%c0_12, %c0_13] : memref<16x32xf32, #tpu.memory_space<vmem>>, vector<16x32xf32>
      tpu.vector_store %arg6[%c0_12, %c0_13], %16 {strides = array<i32>} : memref<16x32xf32, #tpu.memory_space<vmem>>, vector<16x32xf32>,
    } else {
    }
    %c0 = arith.constant 0 : index
    %c0_1 = arith.constant 0 : index
    %3 = vector.load %arg6[%c0, %c0_1] : memref<16x32xf32, #tpu.memory_space<vmem>>, vector<16x32xf32>
    %c0_2 = arith.constant 0 : index
    %c0_3 = arith.constant 0 : index
    %4 = vector.load %arg3[%c0_2, %c0_3] : memref<16x64xf32, #tpu.memory_space<vmem>>, vector<16x64xf32>
    %5 = arith.truncf %4 : vector<16x64xf32> to vector<16x64xbf16>
    %c0_4 = arith.constant 0 : index
    %c0_5 = arith.constant 0 : index
    %6 = vector.load %arg4[%c0_4, %c0_5] : memref<64x32xf32, #tpu.memory_space<vmem>>, vector<64x32xf32>
    %7 = arith.truncf %6 : vector<64x32xf32> to vector<64x32xbf16>
    %cst = arith.constant dense<0.000000e+00> : vector<16x32xf32>
    %8 = tpu.matmul %5, %7, %cst {dimension_numbers = #tpu.dot_dimension_numbers<[1], [0], [0], [1], [0, 0, 1, 1], [], []>} : vector<16x64xbf16>, vector<64x32xbf16>, vector<16x32xf32> -> vector<16x32xf32>
    %9 = arith.addf %3, %8 : vector<16x32xf32>
    %c0_6 = arith.constant 0 : index
    %c0_7 = arith.constant 0 : index
    %10 = vector.load %arg6[%c0_6, %c0_7] : memref<16x32xf32, #tpu.memory_space<vmem>>, vector<16x32xf32>
    tpu.vector_store %arg6[%c0_6, %c0_7], %9 {strides = array<i32>} : memref<16x32xf32, #tpu.memory_space<vmem>>, vector<16x32xf32>,
    %c0_i32_8 = arith.constant 0 : i32
    %11 = arith.cmpi eq, %arg2, %c0_i32_8 : i32
    %12 = arith.extui %11 : i1 to i32
    %c0_i32_9 = arith.constant 0 : i32
    %13 = arith.cmpi ne, %12, %c0_i32_9 : i32
    scf.if %13 {
      %c0_10 = arith.constant 0 : index
      %c0_11 = arith.constant 0 : index
      %14 = vector.load %arg6[%c0_10, %c0_11] : memref<16x32xf32, #tpu.memory_space<vmem>>, vector<16x32xf32>
      %cst_12 = arith.constant 5.000000e-01 : f32
      %15 = vector.broadcast %cst_12 : f32 to vector<16x32xf32>
      %16 = arith.mulf %15, %14 : vector<16x32xf32>
      %cst_13 = arith.constant 4.471500e-02 : f32
      %17 = vector.broadcast %cst_13 : f32 to vector<16x32xf32>
      %18 = arith.mulf %17, %14 : vector<16x32xf32>
      %19 = arith.mulf %18, %14 : vector<16x32xf32>
      %20 = arith.mulf %19, %14 : vector<16x32xf32>
      %21 = arith.addf %14, %20 : vector<16x32xf32>
      %cst_14 = arith.constant 0.797884583 : f32
      %22 = vector.broadcast %cst_14 : f32 to vector<16x32xf32>
      %23 = arith.mulf %22, %21 : vector<16x32xf32>
      %24 = math.tanh %23 : vector<16x32xf32>
      %cst_15 = arith.constant 1.000000e+00 : f32
      %25 = vector.broadcast %cst_15 : f32 to vector<16x32xf32>
      %26 = arith.addf %25, %24 : vector<16x32xf32>
      %27 = arith.mulf %16, %26 : vector<16x32xf32>
      %c0_16 = arith.constant 0 : index
      %c0_17 = arith.constant 0 : index
      %28 = vector.load %arg6[%c0_16, %c0_17] : memref<16x32xf32, #tpu.memory_space<vmem>>, vector<16x32xf32>
      tpu.vector_store %arg6[%c0_16, %c0_17], %27 {strides = array<i32>} : memref<16x32xf32, #tpu.memory_space<vmem>>, vector<16x32xf32>,
    } else {
    }
    return
  }
  func.func @transform_0(%arg0: i32, %arg1: i32, %arg2: i32) -> (i32, i32) {
    %c0_i32 = arith.constant 0 : i32
    return %arg0, %arg2 : i32, i32
  }
  func.func @transform_1(%arg0: i32, %arg1: i32, %arg2: i32) -> (i32, i32) {
    %c0_i32 = arith.constant 0 : i32
    return %arg2, %arg1 : i32, i32
  }
  func.func @transform_2(%arg0: i32, %arg1: i32, %arg2: i32) -> (i32, i32) {
    %c0_i32 = arith.constant 0 : i32
    %c0_i32_0 = arith.constant 0 : i32
    return %c0_i32, %arg1 : i32, i32
  }
  func.func @transform_3(%arg0: i32, %arg1: i32, %arg2: i32) -> (i32, i32) {
    %c0_i32 = arith.constant 0 : i32
    return %arg0, %arg1 : i32, i32
  }
}

module attributes {stable_mosaic.version = 11 : i64} {
  func.func @_linear_kernel(%arg0: i32, %arg1: i32, %arg2: i32, %arg3: memref<16x32xf32, #tpu.memory_space<vmem>>, %arg4: memref<32x10xf32, #tpu.memory_space<vmem>>, %arg5: memref<1x10xf32, #tpu.memory_space<vmem>>, %arg6: memref<16x10xf32, #tpu.memory_space<vmem>>) attributes {dimension_semantics = [#tpu.dimension_semantics<parallel>, #tpu.dimension_semantics<parallel>, #tpu.dimension_semantics<arbitrary>], iteration_bounds = array<i64: 1, 1, 1>, scalar_prefetch = 0 : i64, scratch_operands = 0 : i64, tpu.core_type = #tpu.core_type<tc>, window_params = [{transform_indices = @transform_0, window_bounds = array<i64: 16, 32>}, {transform_indices = @transform_1, window_bounds = array<i64: 32, 10>}, {transform_indices = @transform_2, window_bounds = array<i64: 1, 10>}, {transform_indices = @transform_3, window_bounds = array<i64: 16, 10>}]} {
    %c0_i32 = arith.constant 0 : i32
    %0 = arith.cmpi eq, %arg2, %c0_i32 : i32
    %1 = arith.extui %0 : i1 to i32
    %c0_i32_0 = arith.constant 0 : i32
    %2 = arith.cmpi ne, %1, %c0_i32_0 : i32
    scf.if %2 {
      %c0_8 = arith.constant 0 : index
      %c0_9 = arith.constant 0 : index
      %11 = vector.load %arg5[%c0_8, %c0_9] : memref<1x10xf32, #tpu.memory_space<vmem>>, vector<1x10xf32>
      %12 = vector.shape_cast %11 : vector<1x10xf32> to vector<1x10xf32>
      %13 = vector.broadcast %12 : vector<1x10xf32> to vector<16x10xf32>
      %c0_10 = arith.constant 0 : index
      %c0_11 = arith.constant 0 : index
      %14 = vector.load %arg6[%c0_10, %c0_11] : memref<16x10xf32, #tpu.memory_space<vmem>>, vector<16x10xf32>
      tpu.vector_store %arg6[%c0_10, %c0_11], %13 {strides = array<i32>} : memref<16x10xf32, #tpu.memory_space<vmem>>, vector<16x10xf32>,
    } else {
    }
    %c0 = arith.constant 0 : index
    %c0_1 = arith.constant 0 : index
    %3 = vector.load %arg6[%c0, %c0_1] : memref<16x10xf32, #tpu.memory_space<vmem>>, vector<16x10xf32>
    %c0_2 = arith.constant 0 : index
    %c0_3 = arith.constant 0 : index
    %4 = vector.load %arg3[%c0_2, %c0_3] : memref<16x32xf32, #tpu.memory_space<vmem>>, vector<16x32xf32>
    %5 = arith.truncf %4 : vector<16x32xf32> to vector<16x32xbf16>
    %c0_4 = arith.constant 0 : index
    %c0_5 = arith.constant 0 : index
    %6 = vector.load %arg4[%c0_4, %c0_5] : memref<32x10xf32, #tpu.memory_space<vmem>>, vector<32x10xf32>
    %7 = arith.truncf %6 : vector<32x10xf32> to vector<32x10xbf16>
    %cst = arith.constant dense<0.000000e+00> : vector<16x10xf32>
    %8 = tpu.matmul %5, %7, %cst {dimension_numbers = #tpu.dot_dimension_numbers<[1], [0], [0], [1], [0, 0, 1, 1], [], []>} : vector<16x32xbf16>, vector<32x10xbf16>, vector<16x10xf32> -> vector<16x10xf32>
    %9 = arith.addf %3, %8 : vector<16x10xf32>
    %c0_6 = arith.constant 0 : index
    %c0_7 = arith.constant 0 : index
    %10 = vector.load %arg6[%c0_6, %c0_7] : memref<16x10xf32, #tpu.memory_space<vmem>>, vector<16x10xf32>
    tpu.vector_store %arg6[%c0_6, %c0_7], %9 {strides = array<i32>} : memref<16x10xf32, #tpu.memory_space<vmem>>, vector<16x10xf32>,
    return
  }
  func.func @transform_0(%arg0: i32, %arg1: i32, %arg2: i32) -> (i32, i32) {
    %c0_i32 = arith.constant 0 : i32
    return %arg0, %arg2 : i32, i32
  }
  func.func @transform_1(%arg0: i32, %arg1: i32, %arg2: i32) -> (i32, i32) {
    %c0_i32 = arith.constant 0 : i32
    return %arg2, %arg1 : i32, i32
  }
  func.func @transform_2(%arg0: i32, %arg1: i32, %arg2: i32) -> (i32, i32) {
    %c0_i32 = arith.constant 0 : i32
    %c0_i32_0 = arith.constant 0 : i32
    return %c0_i32, %arg1 : i32, i32
  }
  func.func @transform_3(%arg0: i32, %arg1: i32, %arg2: i32) -> (i32, i32) {
    %c0_i32 = arith.constant 0 : i32
    return %arg0, %arg1 : i32, i32
  }
}

</mosaic_0001>

<llo_original>
// kernel: speech_model_forward.16
$region0: #{speech_model_forward.16}
  #allocation0 [shape = 'u32[]', space=smem, size = 0x4, offset = 0x4, fixed_abs, tag = 'smem constant byte address 0x4 - core index']
  #allocation1 [shape = 'u32[72,128]{1,0:T(1,128)}', space=vmem, size = 0x9000, scoped, tag = 'internal scratch']
  %s0 = inlined_call_operand.vmem [shape: f32[128,9], index: 0, kind: input, shape index: {}]
  %s1 = inlined_call_operand.vmem [shape: f32[9,32], index: 1, kind: input, shape index: {}]
  %s2 = inlined_call_operand.vmem [shape: f32[1,32], index: 2, kind: input, shape index: {}]
  %s3 = inlined_call_operand.vmem [shape: f32[128,32], index: 3, kind: output, shape index: {}]
  %s4 = sld [smem:[#allocation0]]
  $region26: #{speech_model_forward.16} parent=0
    _
  %s6 = ssub.s32 1, %s4
  %s7 = scalar_select 0, %s6, %s4
  // Predicated region
  $region2: #{speech_model_forward.16} parent=0 // pred_check
    _
  $region3: #{speech_model_forward.16} parent=0 // pred_check_branch
    %9 = sbr.rel (0) target = $region5
  $region4: #{speech_model_forward.16} parent=0 // pred_region
    _
  $region5: #{speech_model_forward.16} parent=0 // pred_fallthru
    _
  // Predicated region
  $region6: #{speech_model_forward.16} parent=0 // pred_check
    _
  $region7: #{speech_model_forward.16} parent=0 // pred_check_branch
    %11 = sbr.rel (0) target = $region9
  $region8: #{speech_model_forward.16} parent=0 // pred_region
    _
  $region9: #{speech_model_forward.16} parent=0 // pred_fallthru
    _
  // Predicated region
  $region10: #{speech_model_forward.16} parent=0 // pred_check
    _
  $region11: #{speech_model_forward.16} parent=0 // pred_check_branch
    %13 = sbr.rel (0) target = $region13
  $region12: #{speech_model_forward.16} parent=0 // pred_region
    _
  $region13: #{speech_model_forward.16} parent=0 // pred_fallthru
    _
  %p15 = scmp.eq.s32.totalorder 0, 0
  // Predicated region
  $region14: #{speech_model_forward.16} parent=0 // pred_check
    %p16 = pneg %p15
  $region15: #{speech_model_forward.16} parent=0 // pred_check_branch
    %18 = sbr.rel (%p16) target = $region17
  $region16: #{speech_model_forward.16} parent=0 // pred_region
    %v19 = vld [vmem:[%s2] sm:$0x1]
    %v21 = vperm.slane %v19, 0
    %vm23 = vcmask 261120
    %24 = vst.msk [vmem:[%s3] sm:$0xff] %vm23, %v21
    %25 = vst.msk [vmem:[%s3 + $0x8] sm:$0xff] %vm23, %v21
    %26 = vst.msk [vmem:[%s3 + $0x10] sm:$0xff] %vm23, %v21
    %27 = vst.msk [vmem:[%s3 + $0x18] sm:$0xff] %vm23, %v21
    %28 = vst.msk [vmem:[%s3 + $0x20] sm:$0xff] %vm23, %v21
    %29 = vst.msk [vmem:[%s3 + $0x28] sm:$0xff] %vm23, %v21
    %30 = vst.msk [vmem:[%s3 + $0x30] sm:$0xff] %vm23, %v21
    %31 = vst.msk [vmem:[%s3 + $0x38] sm:$0xff] %vm23, %v21
    %32 = vst.msk [vmem:[%s3 + $0x40] sm:$0xff] %vm23, %v21
    %33 = vst.msk [vmem:[%s3 + $0x48] sm:$0xff] %vm23, %v21
    %34 = vst.msk [vmem:[%s3 + $0x50] sm:$0xff] %vm23, %v21
    %35 = vst.msk [vmem:[%s3 + $0x58] sm:$0xff] %vm23, %v21
    %36 = vst.msk [vmem:[%s3 + $0x60] sm:$0xff] %vm23, %v21
    %37 = vst.msk [vmem:[%s3 + $0x68] sm:$0xff] %vm23, %v21
    %38 = vst.msk [vmem:[%s3 + $0x70] sm:$0xff] %vm23, %v21
    %39 = vst.msk [vmem:[%s3 + $0x78] sm:$0xff] %vm23, %v21
  $region17: #{speech_model_forward.16} parent=0 // pred_fallthru
    _
  %v40 = vld [vmem:[%s3] sm:$0xff]
  %v41 = vld [vmem:[%s3 + $0x8] sm:$0xff]
  %v42 = vld [vmem:[%s3 + $0x10] sm:$0xff]
  %v43 = vld [vmem:[%s3 + $0x18] sm:$0xff]
  %v44 = vld [vmem:[%s3 + $0x20] sm:$0xff]
  %v45 = vld [vmem:[%s3 + $0x28] sm:$0xff]
  %v46 = vld [vmem:[%s3 + $0x30] sm:$0xff]
  %v47 = vld [vmem:[%s3 + $0x38] sm:$0xff]
  %v48 = vld [vmem:[%s3 + $0x40] sm:$0xff]
  %v49 = vld [vmem:[%s3 + $0x48] sm:$0xff]
  %v50 = vld [vmem:[%s3 + $0x50] sm:$0xff]
  %v51 = vld [vmem:[%s3 + $0x58] sm:$0xff]
  %v52 = vld [vmem:[%s3 + $0x60] sm:$0xff]
  %v53 = vld [vmem:[%s3 + $0x68] sm:$0xff]
  %v54 = vld [vmem:[%s3 + $0x70] sm:$0xff]
  %v55 = vld [vmem:[%s3 + $0x78] sm:$0xff]
  %v56 = vld [vmem:[%s0] sm:$0xff]
  %v57 = vld [vmem:[%s0 + $0x8] sm:$0xff]
  %v58 = vld [vmem:[%s0 + $0x10] sm:$0xff]
  %v59 = vld [vmem:[%s0 + $0x18] sm:$0xff]
  %v60 = vld [vmem:[%s0 + $0x20] sm:$0xff]
  %v61 = vld [vmem:[%s0 + $0x28] sm:$0xff]
  %v62 = vld [vmem:[%s0 + $0x30] sm:$0xff]
  %v63 = vld [vmem:[%s0 + $0x38] sm:$0xff]
  %v64 = vld [vmem:[%s0 + $0x40] sm:$0xff]
  %v65 = vld [vmem:[%s0 + $0x48] sm:$0xff]
  %v66 = vld [vmem:[%s0 + $0x50] sm:$0xff]
  %v67 = vld [vmem:[%s0 + $0x58] sm:$0xff]
  %v68 = vld [vmem:[%s0 + $0x60] sm:$0xff]
  %v69 = vld [vmem:[%s0 + $0x68] sm:$0xff]
  %v70 = vld [vmem:[%s0 + $0x70] sm:$0xff]
  %v71 = vld [vmem:[%s0 + $0x78] sm:$0xff]
  %v72 = vpack.c.bf16 %v57, %v56
  %v73 = vpack.c.bf16 %v59, %v58
  %v74 = vpack.c.bf16 %v61, %v60
  %v75 = vpack.c.bf16 %v63, %v62
  %v76 = vpack.c.bf16 %v65, %v64
  %v77 = vpack.c.bf16 %v67, %v66
  %v78 = vpack.c.bf16 %v69, %v68
  %v79 = vpack.c.bf16 %v71, %v70
  %v80 = vld [vmem:[%s1] sm:$0xff]
  %v81 = vld [vmem:[%s1 + $0x8] sm:$0x1]
  %v82 = vpack.c.bf16 %v81, %v80
  %vm83 = vcmask 72704
  %v85 = vsel %vm83, %v72, 0
  %v88 = vsel %vm83, %v73, 0
  %v91 = vsel %vm83, %v74, 0
  %v94 = vsel %vm83, %v75, 0
  %v97 = vsel %vm83, %v76, 0
  %v100 = vsel %vm83, %v77, 0
  %v103 = vsel %vm83, %v78, 0
  %v106 = vsel %vm83, %v79, 0
  %vm108 = vcmask 1043456
  %vm109 = vcmask 1044480
  %v110 = vsel %vm108, 4294967295, 65535
  %v111 = vsel %vm109, %v110, 0
  %v113 = vand.u32 %v82, %v111
  %115 = vmatpush.bf16.msra.mxu0 0
  %116 = vmatpush.bf16.msra.mxu0 0
  %117 = vmatpush.bf16.msra.mxu0 0
  %118 = vmatpush.bf16.msra.mxu0 0
  %119 = vmatpush.bf16.msra.mxu0 0
  %120 = vmatpush.bf16.msra.mxu0 0
  %121 = vmatpush.bf16.msra.mxu0 0
  %122 = vmatpush.bf16.msra.mxu0 %v113
  %123 = vmatmul.bf16.gmra.mxu0 %v85
  %v124 = vpop.f32.mrf.mxu0
  %v125 = vadd.f32 0.0, %v124
  %v126 = vpop.f32.mrf.mxu0
  %v127 = vadd.f32 0.0, %v126
  %128 = vmatmul.bf16.gmra.mxu0 %v88
  %v129 = vpop.f32.mrf.mxu0
  %v130 = vadd.f32 0.0, %v129
  %v131 = vpop.f32.mrf.mxu0
  %v132 = vadd.f32 0.0, %v131
  %133 = vmatmul.bf16.gmra.mxu0 %v91
  %v134 = vpop.f32.mrf.mxu0
  %v135 = vadd.f32 0.0, %v134
  %v136 = vpop.f32.mrf.mxu0
  %v137 = vadd.f32 0.0, %v136
  %138 = vmatmul.bf16.gmra.mxu0 %v94
  %v139 = vpop.f32.mrf.mxu0
  %v140 = vadd.f32 0.0, %v139
  %v141 = vpop.f32.mrf.mxu0
  %v142 = vadd.f32 0.0, %v141
  %143 = vmatmul.bf16.gmra.mxu0 %v97
  %v144 = vpop.f32.mrf.mxu0
  %v145 = vadd.f32 0.0, %v144
  %v146 = vpop.f32.mrf.mxu0
  %v147 = vadd.f32 0.0, %v146
  %148 = vmatmul.bf16.gmra.mxu0 %v100
  %v149 = vpop.f32.mrf.mxu0
  %v150 = vadd.f32 0.0, %v149
  %v151 = vpop.f32.mrf.mxu0
  %v152 = vadd.f32 0.0, %v151
  %153 = vmatmul.bf16.gmra.mxu0 %v103
  %v154 = vpop.f32.mrf.mxu0
  %v155 = vadd.f32 0.0, %v154
  %v156 = vpop.f32.mrf.mxu0
  %v157 = vadd.f32 0.0, %v156
  %158 = vmatmul.bf16.gmra.mxu0 %v106
  %v159 = vpop.f32.mrf.mxu0
  %v160 = vadd.f32 0.0, %v159
  %v161 = vpop.f32.mrf.mxu0
  %v162 = vadd.f32 0.0, %v161
  %163 = vdwg.mxu0
  %v164 = vadd.f32 %v40, %v125
  %v165 = vadd.f32 %v41, %v127
  %v166 = vadd.f32 %v42, %v130
  %v167 = vadd.f32 %v43, %v132
  %v168 = vadd.f32 %v44, %v135
  %v169 = vadd.f32 %v45, %v137
  %v170 = vadd.f32 %v46, %v140
  %v171 = vadd.f32 %v47, %v142
  %v172 = vadd.f32 %v48, %v145
  %v173 = vadd.f32 %v49, %v147
  %v174 = vadd.f32 %v50, %v150
  %v175 = vadd.f32 %v51, %v152
  %v176 = vadd.f32 %v52, %v155
  %v177 = vadd.f32 %v53, %v157
  %v178 = vadd.f32 %v54, %v160
  %v179 = vadd.f32 %v55, %v162
  %vm180 = vcmask 261120
  %181 = vst.msk [vmem:[%s3] sm:$0xff] %vm180, %v164
  %182 = vst.msk [vmem:[%s3 + $0x8] sm:$0xff] %vm180, %v165
  %183 = vst.msk [vmem:[%s3 + $0x10] sm:$0xff] %vm180, %v166
  %184 = vst.msk [vmem:[%s3 + $0x18] sm:$0xff] %vm180, %v167
  %185 = vst.msk [vmem:[%s3 + $0x20] sm:$0xff] %vm180, %v168
  %186 = vst.msk [vmem:[%s3 + $0x28] sm:$0xff] %vm180, %v169
  %187 = vst.msk [vmem:[%s3 + $0x30] sm:$0xff] %vm180, %v170
  %188 = vst.msk [vmem:[%s3 + $0x38] sm:$0xff] %vm180, %v171
  %189 = vst.msk [vmem:[%s3 + $0x40] sm:$0xff] %vm180, %v172
  %190 = vst.msk [vmem:[%s3 + $0x48] sm:$0xff] %vm180, %v173
  %191 = vst.msk [vmem:[%s3 + $0x50] sm:$0xff] %vm180, %v174
  %192 = vst.msk [vmem:[%s3 + $0x58] sm:$0xff] %vm180, %v175
  %193 = vst.msk [vmem:[%s3 + $0x60] sm:$0xff] %vm180, %v176
  %194 = vst.msk [vmem:[%s3 + $0x68] sm:$0xff] %vm180, %v177
  %195 = vst.msk [vmem:[%s3 + $0x70] sm:$0xff] %vm180, %v178
  %196 = vst.msk [vmem:[%s3 + $0x78] sm:$0xff] %vm180, %v179
  // Predicated region
  $region18: #{speech_model_forward.16} parent=0 // pred_check
    _
  $region19: #{speech_model_forward.16} parent=0 // pred_check_branch
    %198 = sbr.rel (0) target = $region21
  $region20: #{speech_model_forward.16} parent=0 // pred_region
    _
  $region21: #{speech_model_forward.16} parent=0 // pred_fallthru
    _
  // Predicated region
  $region22: #{speech_model_forward.16} parent=0 // pred_check
    _
  $region23: #{speech_model_forward.16} parent=0 // pred_check_branch
    %200 = sbr.rel (0) target = $region25
  $region24: #{speech_model_forward.16} parent=0 // pred_region
    _
  $region25: #{speech_model_forward.16} parent=0 // pred_fallthru
    _

// kernel: speech_model_forward.17
$region0: #{speech_model_forward.17}
  #allocation0 [shape = 'u32[]', space=smem, size = 0x4, offset = 0x4, fixed_abs, tag = 'smem constant byte address 0x4 - core index']
  #allocation1 [shape = 'u32[72,128]{1,0:T(1,128)}', space=vmem, size = 0x9000, scoped, tag = 'internal scratch']
  %s0 = inlined_call_operand.vmem [shape: f32[2,8,8,32], index: 0, kind: input, shape index: {}]
  %s1 = inlined_call_operand.vmem [shape: f32[1,8,1,1], index: 1, kind: input, shape index: {}]
  %s2 = inlined_call_operand.vmem [shape: f32[1,8,1,1], index: 2, kind: input, shape index: {}]
  %s3 = inlined_call_operand.vmem [shape: f32[2,8,8,32], index: 3, kind: output, shape index: {}]
  %s4 = sld [smem:[#allocation0]]
  $region45: #{speech_model_forward.17} parent=0
    _
  %s6 = ssub.s32 1, %s4
  %s7 = scalar_select 0, %s6, %s4
  loop: start=0, step=1, limit=4
  $region2: #{speech_model_forward.17} parent=0 // loop_pre_header
    _
  $region3: #{speech_model_forward.17} parent=0 // loop_header
    %s9 = sphi 0, %s13
    %p10 = scmp.ge.s32.totalorder %s9, 4
    %s16 = sphi 0, %s28
    %s17 = sphi 0, %s24
    %s18 = sphi 0, %s16
    %s19 = sphi 0, %s17
    %s20 = sphi 0, %s18
    %s21 = sphi 0, %s19
    %s33 = sphi 0, %s35
    %s36 = sphi 0, %s33
    %s37 = sphi 0, %s36
    %s53 = sphi 0, %s37
    %s57 = sphi 0, %s57
    %s59 = sphi 0, %s57
    %s60 = sphi 0, %s59
    %s74 = sphi 0, %s60
    %s78 = sphi 0, %s78
    %s80 = sphi 0, %s78
    %s81 = sphi 0, %s80
    %s95 = sphi 0, %s81
    %s103 = sphi 0, %s105
    %s106 = sphi 0, %s103
    %s107 = sphi 0, %s106
    %s123 = sphi 0, %s107
  $region4: #{speech_model_forward.17} parent=0 // loop_header_branch
    %12 = sbr.rel (%p10) target = $region8
  $region5: #{speech_model_forward.17} parent=0 // loop_body
    %s14 = ssub.s32 %s9, 1
    %s15 = ssub.s32 %s9, 2
    %s22 = sadd.s32 1, %s17
    %p23 = scmp.ge.s32.totalorder %s22, 1
    %s24 = scalar_select %p23, 0, %s22
    %s25 = sadd.s32 1, %s16
    %s26 = scalar_select %p23, %s25, %s16
    %p27 = scmp.ge.s32.totalorder %s26, 2
    %s28 = scalar_select %p27, 0, %s26
    %s29 = ssub.s32 %s16, %s28
    %s30 = ssub.s32 %s17, %s24
    %s31 = sor.u32 %s29, %s30
    %p32 = scmp.eq.s32.totalorder %s31, 0
    %s34 = sadd.s32 %s33, 1
    %s35 = scalar_select %p32, %s33, %s34
    %p38 = pneg %p32
    %p39 = scmp.eq.s32.totalorder %s9, 1
    %p40 = por %p38, %p39
    %p41 = scmp.ne.s32.totalorder %s33, %s36
    %p42 = scmp.eq.s32.totalorder %s9, 0
    %p43 = por %p41, %p42
    %p44 = scmp.ne.s32.totalorder %s33, %s36
    %p45 = scmp.eq.s32.totalorder %s14, 1
    %p46 = por %p44, %p45
    %p47 = scmp.ne.s32.totalorder %s36, %s37
    %p48 = scmp.eq.s32.totalorder %s14, 0
    %p49 = por %p47, %p48
    %p50 = scmp.ne.s32.totalorder %s36, %s37
    %p51 = scmp.eq.s32.totalorder %s15, 1
    %p52 = por %p50, %p51
    %p54 = scmp.ne.s32.totalorder %s37, %s53
    %p55 = scmp.eq.s32.totalorder %s15, 0
    %p56 = por %p54, %p55
    %s58 = sadd.s32 %s57, 1
    %p61 = scmp.eq.s32.totalorder %s9, 1
    %p62 = scmp.ne.s32.totalorder %s57, %s59
    %p63 = scmp.eq.s32.totalorder %s9, 0
    %p64 = por %p62, %p63
    %p65 = scmp.ne.s32.totalorder %s57, %s59
    %p66 = scmp.eq.s32.totalorder %s14, 1
    %p67 = por %p65, %p66
    %p68 = scmp.ne.s32.totalorder %s59, %s60
    %p69 = scmp.eq.s32.totalorder %s14, 0
    %p70 = por %p68, %p69
    %p71 = scmp.ne.s32.totalorder %s59, %s60
    %p72 = scmp.eq.s32.totalorder %s15, 1
    %p73 = por %p71, %p72
    %p75 = scmp.ne.s32.totalorder %s60, %s74
    %p76 = scmp.eq.s32.totalorder %s15, 0
    %p77 = por %p75, %p76
    %s79 = sadd.s32 %s78, 1
    %p82 = scmp.eq.s32.totalorder %s9, 1
    %p83 = scmp.ne.s32.totalorder %s78, %s80
    %p84 = scmp.eq.s32.totalorder %s9, 0
    %p85 = por %p83, %p84
    %p86 = scmp.ne.s32.totalorder %s78, %s80
    %p87 = scmp.eq.s32.totalorder %s14, 1
    %p88 = por %p86, %p87
    %p89 = scmp.ne.s32.totalorder %s80, %s81
    %p90 = scmp.eq.s32.totalorder %s14, 0
    %p91 = por %p89, %p90
    %p92 = scmp.ne.s32.totalorder %s80, %s81
    %p93 = scmp.eq.s32.totalorder %s15, 1
    %p94 = por %p92, %p93
    %p96 = scmp.ne.s32.totalorder %s81, %s95
    %p97 = scmp.eq.s32.totalorder %s15, 0
    %p98 = por %p96, %p97
    %s99 = ssub.s32 %s16, %s28
    %s100 = ssub.s32 %s17, %s24
    %s101 = sor.u32 %s99, %s100
    %p102 = scmp.eq.s32.totalorder %s101, 0
    %s104 = sadd.s32 %s103, 1
    %s105 = scalar_select %p102, %s103, %s104
    %p108 = pneg %p102
    %p109 = scmp.eq.s32.totalorder %s9, 1
    %p110 = por %p108, %p109
    %p111 = scmp.ne.s32.totalorder %s103, %s106
    %p112 = scmp.eq.s32.totalorder %s9, 0
    %p113 = por %p111, %p112
    %p114 = scmp.ne.s32.totalorder %s103, %s106
    %p115 = scmp.eq.s32.totalorder %s14, 1
    %p116 = por %p114, %p115
    %p117 = scmp.ne.s32.totalorder %s106, %s107
    %p118 = scmp.eq.s32.totalorder %s14, 0
    %p119 = por %p117, %p118
    %p120 = scmp.ne.s32.totalorder %s106, %s107
    %p121 = scmp.eq.s32.totalorder %s15, 1
    %p122 = por %p120, %p121
    %p124 = scmp.ne.s32.totalorder %s107, %s123
    %p125 = scmp.eq.s32.totalorder %s15, 0
    %p126 = por %p124, %p125
    %p127 = scmp.le.s32.totalorder 1, %s9
    %p128 = scmp.lt.s32.totalorder %s9, 3
    %p129 = pnand %p127, %p128
    %p130 = pneg %p129
    // Predicated region
    $region9: #{speech_model_forward.17} parent=5 // pred_check
      _
    $region10: #{speech_model_forward.17} parent=5 // pred_check_branch
      %132 = sbr.rel (%p129) target = $region12
    $region11: #{speech_model_forward.17} parent=5 // pred_region
      %s133 = ssub.s32 %s9, 1
      // Predicated region
      $region13: #{speech_model_forward.17} parent=11 // pred_check
        %p134 = pneg %p70
      $region14: #{speech_model_forward.17} parent=11 // pred_check_branch
        %136 = sbr.rel (%p134) target = $region16
      $region15: #{speech_model_forward.17} parent=11 // pred_region
        _
      $region16: #{speech_model_forward.17} parent=11 // pred_fallthru
        _
      // Predicated region
      $region17: #{speech_model_forward.17} parent=11 // pred_check
        %p137 = pneg %p91
      $region18: #{speech_model_forward.17} parent=11 // pred_check_branch
        %139 = sbr.rel (%p137) target = $region20
      $region19: #{speech_model_forward.17} parent=11 // pred_region
        _
      $region20: #{speech_model_forward.17} parent=11 // pred_fallthru
        _
    $region12: #{speech_model_forward.17} parent=5 // pred_fallthru
      _
    %p140 = scmp.lt.s32.totalorder %s9, 2
    // Predicated region
    $region21: #{speech_model_forward.17} parent=5 // pred_check
      %p141 = pneg %p140
    $region22: #{speech_model_forward.17} parent=5 // pred_check_branch
      %143 = sbr.rel (%p141) target = $region24
    $region23: #{speech_model_forward.17} parent=5 // pred_region
      // Predicated region
      $region25: #{speech_model_forward.17} parent=23 // pred_check
        %p144 = pneg %p43
      $region26: #{speech_model_forward.17} parent=23 // pred_check_branch
        %146 = sbr.rel (%p144) target = $region28
      $region27: #{speech_model_forward.17} parent=23 // pred_region
        %p147 = scmp.lt.s32.totalorder %s16, 1
        %s148 = scalar_select %p147, %s16, 1
        %p149 = scmp.lt.s32.totalorder %s17, 0
        %s150 = scalar_select %p149, %s17, 0
        %s151 = smul.addr %s148, 8
        %s152 = sadd.s32 %s150, %s151
        %s153 = smul.addr %s152, 8
        %s154 = scalar_lea.vmem %s0, %s153
      $region28: #{speech_model_forward.17} parent=23 // pred_fallthru
        _
    $region24: #{speech_model_forward.17} parent=5 // pred_fallthru
      _
    %p155 = scmp.le.s32.totalorder 1, %s9
    %p156 = scmp.lt.s32.totalorder %s9, 3
    %p157 = pnand %p155, %p156
    %p158 = pneg %p157
    // Predicated region
    $region29: #{speech_model_forward.17} parent=5 // pred_check
      _
    $region30: #{speech_model_forward.17} parent=5 // pred_check_branch
      %160 = sbr.rel (%p157) target = $region32
    $region31: #{speech_model_forward.17} parent=5 // pred_region
      %s161 = ssub.s32 %s9, 1
      %p162 = scmp.lt.s32.totalorder %s18, 1
      %s163 = scalar_select %p162, %s18, 1
      %p164 = scmp.lt.s32.totalorder %s19, 0
      %s165 = scalar_select %p164, %s19, 0
      %s166 = smul.addr %s163, 8
      %s167 = sadd.s32 %s165, %s166
      %s168 = smul.addr %s167, 8
      %s169 = scalar_lea.vmem %s0, %s168
      %p170 = pneg %p49
      %p171 = pneg %p46
      %p172 = pneg %p70
      %p173 = pneg %p67
      %p174 = pneg %p91
      %p175 = pneg %p88
      %p176 = pneg %p119
      %p177 = pneg %p116
      %p178 = scmp.lt.s32.totalorder %s18, 1
      %s179 = scalar_select %p178, %s18, 1
      %p180 = scmp.lt.s32.totalorder %s19, 0
      %s181 = scalar_select %p180, %s19, 0
      %s182 = smul.addr %s179, 8
      %s183 = sadd.s32 %s181, %s182
      %s184 = smul.addr %s183, 8
      %s185 = scalar_lea.vmem %s3, %s184
      %p186 = scmp.lt.s32.totalorder %s18, 1
      %s187 = scalar_select %p186, %s18, 1
      %p188 = scmp.lt.s32.totalorder %s19, 0
      %s189 = scalar_select %p188, %s19, 0
      %s190 = smul.addr %s187, 8
      %s191 = sadd.s32 %s189, %s190
      %s192 = smul.addr %s191, 8
      %s193 = scalar_lea.vmem %s0, %s192
      %p194 = scmp.lt.s32.totalorder %s18, 1
      %s195 = scalar_select %p194, %s18, 1
      %p196 = scmp.lt.s32.totalorder %s19, 0
      %s197 = scalar_select %p196, %s19, 0
      %s198 = smul.addr %s195, 8
      %s199 = sadd.s32 %s197, %s198
      %s200 = smul.addr %s199, 8
      %s201 = scalar_lea.vmem %s3, %s200
      %v202 = vld [vmem:[%s193] sm:$0xff]
      %v203 = vld [vmem:[%s193 + $0x8] sm:$0xff]
      %v204 = vld [vmem:[%s193 + $0x10] sm:$0xff]
      %v205 = vld [vmem:[%s193 + $0x18] sm:$0xff]
      %v206 = vld [vmem:[%s193 + $0x20] sm:$0xff]
      %v207 = vld [vmem:[%s193 + $0x28] sm:$0xff]
      %v208 = vld [vmem:[%s193 + $0x30] sm:$0xff]
      %v209 = vld [vmem:[%s193 + $0x38] sm:$0xff]
      %vm210 = vcmask 261120
      %v211 = vsel %vm210, %v202, 0.0
      %v212 = vsel %vm210, %v203, 0.0
      %v213 = vadd.f32 %v211, %v212
      %v214 = vsel %vm210, %v204, 0.0
      %v215 = vadd.f32 %v213, %v214
      %v216 = vsel %vm210, %v205, 0.0
      %v217 = vadd.f32 %v215, %v216
      %v218 = vsel %vm210, %v206, 0.0
      %v219 = vadd.f32 %v217, %v218
      %v220 = vsel %vm210, %v207, 0.0
      %v221 = vadd.f32 %v219, %v220
      %v222 = vsel %vm210, %v208, 0.0
      %v223 = vadd.f32 %v221, %v222
      %v224 = vsel %vm210, %v209, 0.0
      %v225 = vadd.f32 %v223, %v224
      %v226 = vrcp.pop 8.0
      %v227 = vmul.f32 8.0, %v226
      %v228 = vsub.f32 1.0, %v227
      %v229 = vmul.f32 %v226, %v228
      %v230 = vadd.f32 %v226, %v229
      %vm231 = vweird.f32 %v226
      %v232 = vsel %vm231, %v226, %v230
      %v233 = vmul.f32 %v225, %v232
      %v234 = vsub.f32 %v202, %v233
      %v235 = vsub.f32 %v203, %v233
      %v236 = vsub.f32 %v204, %v233
      %v237 = vsub.f32 %v205, %v233
      %v238 = vsub.f32 %v206, %v233
      %v239 = vsub.f32 %v207, %v233
      %v240 = vsub.f32 %v208, %v233
      %v241 = vsub.f32 %v209, %v233
      %v242 = vmul.f32 %v234, %v234
      %v243 = vmul.f32 %v235, %v235
      %v244 = vmul.f32 %v236, %v236
      %v245 = vmul.f32 %v237, %v237
      %v246 = vmul.f32 %v238, %v238
      %v247 = vmul.f32 %v239, %v239
      %v248 = vmul.f32 %v240, %v240
      %v249 = vmul.f32 %v241, %v241
      %v250 = vsel %vm210, %v242, 0.0
      %v251 = vsel %vm210, %v243, 0.0
      %v252 = vadd.f32 %v250, %v251
      %v253 = vsel %vm210, %v244, 0.0
      %v254 = vadd.f32 %v252, %v253
      %v255 = vsel %vm210, %v245, 0.0
      %v256 = vadd.f32 %v254, %v255
      %v257 = vsel %vm210, %v246, 0.0
      %v258 = vadd.f32 %v256, %v257
      %v259 = vsel %vm210, %v247, 0.0
      %v260 = vadd.f32 %v258, %v259
      %v261 = vsel %vm210, %v248, 0.0
      %v262 = vadd.f32 %v260, %v261
      %v263 = vsel %vm210, %v249, 0.0
      %v264 = vadd.f32 %v262, %v263
      %v265 = vmul.f32 %v264, %v232
      %v266 = vadd.f32 %v265, 1e-05
      %v267 = vrsqrt.pop %v266
      %v268 = vmul.f32 %v267, %v266
      %v269 = vmul.f32 %v268, %v267
      %v270 = vmul.f32 0.5, %v269
      %v271 = vsub.f32 1.5, %v270
      %v272 = vmul.f32 %v267, %v271
      %vm273 = vweird.f32 %v266
      %vm274 = vweird.f32 %v267
      %vm275 = vmor %vm273, %vm274
      %v276 = vsel %vm275, %v267, %v272
      %v277 = vmul.f32 %v234, %v276
      %v278 = vmul.f32 %v235, %v276
      %v279 = vmul.f32 %v236, %v276
      %v280 = vmul.f32 %v237, %v276
      %v281 = vmul.f32 %v238, %v276
      %v282 = vmul.f32 %v239, %v276
      %v283 = vmul.f32 %v240, %v276
      %v284 = vmul.f32 %v241, %v276
      %v285 = vld [vmem:[%s1] sm:$0x1]
      %v286 = vld [vmem:[%s1 + $0x1] sm:$0x1]
      %v287 = vld [vmem:[%s1 + $0x2] sm:$0x1]
      %v288 = vld [vmem:[%s1 + $0x3] sm:$0x1]
      %v289 = vld [vmem:[%s1 + $0x4] sm:$0x1]
      %v290 = vld [vmem:[%s1 + $0x5] sm:$0x1]
      %v291 = vld [vmem:[%s1 + $0x6] sm:$0x1]
      %v292 = vld [vmem:[%s1 + $0x7] sm:$0x1]
      %v301 = vperm.slane %v285, 0
      %v302 = vperm.slane %v286, 0
      %v303 = vperm.slane %v287, 0
      %v304 = vperm.slane %v288, 0
      %v305 = vperm.slane %v289, 0
      %v306 = vperm.slane %v290, 0
      %v307 = vperm.slane %v291, 0
      %v308 = vperm.slane %v292, 0
      %309 = vset.pattern.permute.xlu0 0
      %310 = vperm.xlu0 %309, %v301
      %v311 = vpop.permute.xlu0 %310
      %313 = vset.pattern.permute.xlu0 0
      %314 = vperm.xlu0 %313, %v302
      %v315 = vpop.permute.xlu0 %314
      %317 = vset.pattern.permute.xlu0 0
      %318 = vperm.xlu0 %317, %v303
      %v319 = vpop.permute.xlu0 %318
      %321 = vset.pattern.permute.xlu0 0
      %322 = vperm.xlu0 %321, %v304
      %v323 = vpop.permute.xlu0 %322
      %325 = vset.pattern.permute.xlu0 0
      %326 = vperm.xlu0 %325, %v305
      %v327 = vpop.permute.xlu0 %326
      %329 = vset.pattern.permute.xlu0 0
      %330 = vperm.xlu0 %329, %v306
      %v331 = vpop.permute.xlu0 %330
      %333 = vset.pattern.permute.xlu0 0
      %334 = vperm.xlu0 %333, %v307
      %v335 = vpop.permute.xlu0 %334
      %337 = vset.pattern.permute.xlu0 0
      %338 = vperm.xlu0 %337, %v308
      %v339 = vpop.permute.xlu0 %338
      %v341 = vmul.f32 %v277, %v311
      %v342 = vmul.f32 %v278, %v315
      %v343 = vmul.f32 %v279, %v319
      %v344 = vmul.f32 %v280, %v323
      %v345 = vmul.f32 %v281, %v327
      %v346 = vmul.f32 %v282, %v331
      %v347 = vmul.f32 %v283, %v335
      %v348 = vmul.f32 %v284, %v339
      %v349 = vld [vmem:[%s2] sm:$0x1]
      %v350 = vld [vmem:[%s2 + $0x1] sm:$0x1]
      %v351 = vld [vmem:[%s2 + $0x2] sm:$0x1]
      %v352 = vld [vmem:[%s2 + $0x3] sm:$0x1]
      %v353 = vld [vmem:[%s2 + $0x4] sm:$0x1]
      %v354 = vld [vmem:[%s2 + $0x5] sm:$0x1]
      %v355 = vld [vmem:[%s2 + $0x6] sm:$0x1]
      %v356 = vld [vmem:[%s2 + $0x7] sm:$0x1]
      %v365 = vperm.slane %v349, 0
      %v366 = vperm.slane %v350, 0
      %v367 = vperm.slane %v351, 0
      %v368 = vperm.slane %v352, 0
      %v369 = vperm.slane %v353, 0
      %v370 = vperm.slane %v354, 0
      %v371 = vperm.slane %v355, 0
      %v372 = vperm.slane %v356, 0
      %373 = vset.pattern.permute.xlu0 0
      %374 = vperm.xlu0 %373, %v365
      %v375 = vpop.permute.xlu0 %374
      %377 = vset.pattern.permute.xlu0 0
      %378 = vperm.xlu0 %377, %v366
      %v379 = vpop.permute.xlu0 %378
      %381 = vset.pattern.permute.xlu0 0
      %382 = vperm.xlu0 %381, %v367
      %v383 = vpop.permute.xlu0 %382
      %385 = vset.pattern.permute.xlu0 0
      %386 = vperm.xlu0 %385, %v368
      %v387 = vpop.permute.xlu0 %386
      %389 = vset.pattern.permute.xlu0 0
      %390 = vperm.xlu0 %389, %v369
      %v391 = vpop.permute.xlu0 %390
      %393 = vset.pattern.permute.xlu0 0
      %394 = vperm.xlu0 %393, %v370
      %v395 = vpop.permute.xlu0 %394
      %397 = vset.pattern.permute.xlu0 0
      %398 = vperm.xlu0 %397, %v371
      %v399 = vpop.permute.xlu0 %398
      %401 = vset.pattern.permute.xlu0 0
      %402 = vperm.xlu0 %401, %v372
      %v403 = vpop.permute.xlu0 %402
      %v405 = vadd.f32 %v341, %v375
      %v406 = vadd.f32 %v342, %v379
      %v407 = vadd.f32 %v343, %v383
      %v408 = vadd.f32 %v344, %v387
      %v409 = vadd.f32 %v345, %v391
      %v410 = vadd.f32 %v346, %v395
      %v411 = vadd.f32 %v347, %v399
      %v412 = vadd.f32 %v348, %v403
      %v413 = vmul.f32 %v405, 0.5
      %v414 = vmul.f32 %v406, 0.5
      %v415 = vmul.f32 %v407, 0.5
      %v416 = vmul.f32 %v408, 0.5
      %v417 = vmul.f32 %v409, 0.5
      %v418 = vmul.f32 %v410, 0.5
      %v419 = vmul.f32 %v411, 0.5
      %v420 = vmul.f32 %v412, 0.5
      %v421 = vmul.f32 %v405, 0.044715
      %v422 = vmul.f32 %v406, 0.044715
      %v423 = vmul.f32 %v407, 0.044715
      %v424 = vmul.f32 %v408, 0.044715
      %v425 = vmul.f32 %v409, 0.044715
      %v426 = vmul.f32 %v410, 0.044715
      %v427 = vmul.f32 %v411, 0.044715
      %v428 = vmul.f32 %v412, 0.044715
      %v429 = vmul.f32 %v421, %v405
      %v430 = vmul.f32 %v422, %v406
      %v431 = vmul.f32 %v423, %v407
      %v432 = vmul.f32 %v424, %v408
      %v433 = vmul.f32 %v425, %v409
      %v434 = vmul.f32 %v426, %v410
      %v435 = vmul.f32 %v427, %v411
      %v436 = vmul.f32 %v428, %v412
      %v437 = vmul.f32 %v429, %v405
      %v438 = vmul.f32 %v430, %v406
      %v439 = vmul.f32 %v431, %v407
      %v440 = vmul.f32 %v432, %v408
      %v441 = vmul.f32 %v433, %v409
      %v442 = vmul.f32 %v434, %v410
      %v443 = vmul.f32 %v435, %v411
      %v444 = vmul.f32 %v436, %v412
      %v445 = vadd.f32 %v405, %v437
      %v446 = vadd.f32 %v406, %v438
      %v447 = vadd.f32 %v407, %v439
      %v448 = vadd.f32 %v408, %v440
      %v449 = vadd.f32 %v409, %v441
      %v450 = vadd.f32 %v410, %v442
      %v451 = vadd.f32 %v411, %v443
      %v452 = vadd.f32 %v412, %v444
      %v453 = vmul.f32 %v445, 0.7978846
      %v454 = vmul.f32 %v446, 0.7978846
      %v455 = vmul.f32 %v447, 0.7978846
      %v456 = vmul.f32 %v448, 0.7978846
      %v457 = vmul.f32 %v449, 0.7978846
      %v458 = vmul.f32 %v450, 0.7978846
      %v459 = vmul.f32 %v451, 0.7978846
      %v460 = vmul.f32 %v452, 0.7978846
      %v461 = vtanh.pop %v453
      %v462 = vtanh.pop %v454
      %v463 = vtanh.pop %v455
      %v464 = vtanh.pop %v456
      %v465 = vtanh.pop %v457
      %v466 = vtanh.pop %v458
      %v467 = vtanh.pop %v459
      %v468 = vtanh.pop %v460
      %v469 = vadd.f32 %v461, 1.0
      %v470 = vadd.f32 %v462, 1.0
      %v471 = vadd.f32 %v463, 1.0
      %v472 = vadd.f32 %v464, 1.0
      %v473 = vadd.f32 %v465, 1.0
      %v474 = vadd.f32 %v466, 1.0
      %v475 = vadd.f32 %v467, 1.0
      %v476 = vadd.f32 %v468, 1.0
      %v477 = vmul.f32 %v413, %v469
      %v478 = vmul.f32 %v414, %v470
      %v479 = vmul.f32 %v415, %v471
      %v480 = vmul.f32 %v416, %v472
      %v481 = vmul.f32 %v417, %v473
      %v482 = vmul.f32 %v418, %v474
      %v483 = vmul.f32 %v419, %v475
      %v484 = vmul.f32 %v420, %v476
      %485 = vst.msk [vmem:[%s201] sm:$0xff] %vm210, %v477
      %486 = vst.msk [vmem:[%s201 + $0x8] sm:$0xff] %vm210, %v478
      %487 = vst.msk [vmem:[%s201 + $0x10] sm:$0xff] %vm210, %v479
      %488 = vst.msk [vmem:[%s201 + $0x18] sm:$0xff] %vm210, %v480
      %489 = vst.msk [vmem:[%s201 + $0x20] sm:$0xff] %vm210, %v481
      %490 = vst.msk [vmem:[%s201 + $0x28] sm:$0xff] %vm210, %v482
      %491 = vst.msk [vmem:[%s201 + $0x30] sm:$0xff] %vm210, %v483
      %492 = vst.msk [vmem:[%s201 + $0x38] sm:$0xff] %vm210, %v484
      %p493 = scmp.lt.s32.totalorder %s18, 1
      %s494 = scalar_select %p493, %s18, 1
      %p495 = scmp.lt.s32.totalorder %s19, 0
      %s496 = scalar_select %p495, %s19, 0
      %s497 = smul.addr %s494, 8
      %s498 = sadd.s32 %s496, %s497
      %s499 = smul.addr %s498, 8
      %s500 = scalar_lea.vmem %s3, %s499
      // Predicated region
      $region33: #{speech_model_forward.17} parent=31 // pred_check
        %p501 = pneg %p116
      $region34: #{speech_model_forward.17} parent=31 // pred_check_branch
        %503 = sbr.rel (%p501) target = $region36
      $region35: #{speech_model_forward.17} parent=31 // pred_region
        _
      $region36: #{speech_model_forward.17} parent=31 // pred_fallthru
        _
    $region32: #{speech_model_forward.17} parent=5 // pred_fallthru
      _
    %p504 = scmp.le.s32.totalorder 2, %s9
    // Predicated region
    $region37: #{speech_model_forward.17} parent=5 // pred_check
      %p505 = pneg %p504
    $region38: #{speech_model_forward.17} parent=5 // pred_check_branch
      %507 = sbr.rel (%p505) target = $region40
    $region39: #{speech_model_forward.17} parent=5 // pred_region
      %s508 = ssub.s32 %s9, 2
      // Predicated region
      $region41: #{speech_model_forward.17} parent=39 // pred_check
        %p509 = pneg %p122
      $region42: #{speech_model_forward.17} parent=39 // pred_check_branch
        %511 = sbr.rel (%p509) target = $region44
      $region43: #{speech_model_forward.17} parent=39 // pred_region
        %p512 = scmp.lt.s32.totalorder %s20, 1
        %s513 = scalar_select %p512, %s20, 1
        %p514 = scmp.lt.s32.totalorder %s21, 0
        %s515 = scalar_select %p514, %s21, 0
        %s516 = smul.addr %s513, 8
        %s517 = sadd.s32 %s515, %s516
        %s518 = smul.addr %s517, 8
        %s519 = scalar_lea.vmem %s3, %s518
      $region44: #{speech_model_forward.17} parent=39 // pred_fallthru
        _
    $region40: #{speech_model_forward.17} parent=5 // pred_fallthru
      _
  $region6: #{speech_model_forward.17} parent=0 // loop_footer
    %s13 = sadd.s32 1, %s9
  $region7: #{speech_model_forward.17} parent=0 // loop_footer_branch
    %8 = sbr.rel target = $region3
  $region8: #{speech_model_forward.17} parent=0 // loop_exit
    _

// kernel: speech_model_forward.18
$region0: #{speech_model_forward.18}
  #allocation0 [shape = 'u32[]', space=smem, size = 0x4, offset = 0x4, fixed_abs, tag = 'smem constant byte address 0x4 - core index']
  #allocation1 [shape = 'u32[72,128]{1,0:T(1,128)}', space=vmem, size = 0x9000, scoped, tag = 'internal scratch']
  %s0 = inlined_call_operand.vmem [shape: f32[2,1,10,10,32], index: 0, kind: input, shape index: {}]
  %s1 = inlined_call_operand.vmem [shape: f32[3,96,32], index: 1, kind: input, shape index: {}]
  %s2 = inlined_call_operand.vmem [shape: f32[1,32], index: 2, kind: input, shape index: {}]
  %s3 = inlined_call_operand.vmem [shape: f32[2,8,8,32], index: 3, kind: output, shape index: {}]
  %s4 = sld [smem:[#allocation0]]
  $region45: #{speech_model_forward.18} parent=0
    _
  %s6 = ssub.s32 1, %s4
  %s7 = scalar_select 0, %s6, %s4
  loop: start=0, step=1, limit=4
  $region2: #{speech_model_forward.18} parent=0 // loop_pre_header
    _
  $region3: #{speech_model_forward.18} parent=0 // loop_header
    %s9 = sphi 0, %s13
    %p10 = scmp.ge.s32.totalorder %s9, 4
    %s16 = sphi 0, %s28
    %s17 = sphi 0, %s24
    %s18 = sphi 0, %s16
    %s19 = sphi 0, %s17
    %s20 = sphi 0, %s18
    %s21 = sphi 0, %s19
    %s33 = sphi 0, %s35
    %s36 = sphi 0, %s33
    %s37 = sphi 0, %s36
    %s53 = sphi 0, %s37
    %s57 = sphi 0, %s57
    %s59 = sphi 0, %s57
    %s60 = sphi 0, %s59
    %s74 = sphi 0, %s60
    %s78 = sphi 0, %s78
    %s80 = sphi 0, %s78
    %s81 = sphi 0, %s80
    %s95 = sphi 0, %s81
    %s103 = sphi 0, %s105
    %s106 = sphi 0, %s103
    %s107 = sphi 0, %s106
    %s123 = sphi 0, %s107
  $region4: #{speech_model_forward.18} parent=0 // loop_header_branch
    %12 = sbr.rel (%p10) target = $region8
  $region5: #{speech_model_forward.18} parent=0 // loop_body
    %s14 = ssub.s32 %s9, 1
    %s15 = ssub.s32 %s9, 2
    %s22 = sadd.s32 1, %s17
    %p23 = scmp.ge.s32.totalorder %s22, 1
    %s24 = scalar_select %p23, 0, %s22
    %s25 = sadd.s32 1, %s16
    %s26 = scalar_select %p23, %s25, %s16
    %p27 = scmp.ge.s32.totalorder %s26, 2
    %s28 = scalar_select %p27, 0, %s26
    %s29 = ssub.s32 %s16, %s28
    %s30 = ssub.s32 %s17, %s24
    %s31 = sor.u32 %s29, %s30
    %p32 = scmp.eq.s32.totalorder %s31, 0
    %s34 = sadd.s32 %s33, 1
    %s35 = scalar_select %p32, %s33, %s34
    %p38 = pneg %p32
    %p39 = scmp.eq.s32.totalorder %s9, 1
    %p40 = por %p38, %p39
    %p41 = scmp.ne.s32.totalorder %s33, %s36
    %p42 = scmp.eq.s32.totalorder %s9, 0
    %p43 = por %p41, %p42
    %p44 = scmp.ne.s32.totalorder %s33, %s36
    %p45 = scmp.eq.s32.totalorder %s14, 1
    %p46 = por %p44, %p45
    %p47 = scmp.ne.s32.totalorder %s36, %s37
    %p48 = scmp.eq.s32.totalorder %s14, 0
    %p49 = por %p47, %p48
    %p50 = scmp.ne.s32.totalorder %s36, %s37
    %p51 = scmp.eq.s32.totalorder %s15, 1
    %p52 = por %p50, %p51
    %p54 = scmp.ne.s32.totalorder %s37, %s53
    %p55 = scmp.eq.s32.totalorder %s15, 0
    %p56 = por %p54, %p55
    %s58 = sadd.s32 %s57, 1
    %p61 = scmp.eq.s32.totalorder %s9, 1
    %p62 = scmp.ne.s32.totalorder %s57, %s59
    %p63 = scmp.eq.s32.totalorder %s9, 0
    %p64 = por %p62, %p63
    %p65 = scmp.ne.s32.totalorder %s57, %s59
    %p66 = scmp.eq.s32.totalorder %s14, 1
    %p67 = por %p65, %p66
    %p68 = scmp.ne.s32.totalorder %s59, %s60
    %p69 = scmp.eq.s32.totalorder %s14, 0
    %p70 = por %p68, %p69
    %p71 = scmp.ne.s32.totalorder %s59, %s60
    %p72 = scmp.eq.s32.totalorder %s15, 1
    %p73 = por %p71, %p72
    %p75 = scmp.ne.s32.totalorder %s60, %s74
    %p76 = scmp.eq.s32.totalorder %s15, 0
    %p77 = por %p75, %p76
    %s79 = sadd.s32 %s78, 1
    %p82 = scmp.eq.s32.totalorder %s9, 1
    %p83 = scmp.ne.s32.totalorder %s78, %s80
    %p84 = scmp.eq.s32.totalorder %s9, 0
    %p85 = por %p83, %p84
    %p86 = scmp.ne.s32.totalorder %s78, %s80
    %p87 = scmp.eq.s32.totalorder %s14, 1
    %p88 = por %p86, %p87
    %p89 = scmp.ne.s32.totalorder %s80, %s81
    %p90 = scmp.eq.s32.totalorder %s14, 0
    %p91 = por %p89, %p90
    %p92 = scmp.ne.s32.totalorder %s80, %s81
    %p93 = scmp.eq.s32.totalorder %s15, 1
    %p94 = por %p92, %p93
    %p96 = scmp.ne.s32.totalorder %s81, %s95
    %p97 = scmp.eq.s32.totalorder %s15, 0
    %p98 = por %p96, %p97
    %s99 = ssub.s32 %s16, %s28
    %s100 = ssub.s32 %s17, %s24
    %s101 = sor.u32 %s99, %s100
    %p102 = scmp.eq.s32.totalorder %s101, 0
    %s104 = sadd.s32 %s103, 1
    %s105 = scalar_select %p102, %s103, %s104
    %p108 = pneg %p102
    %p109 = scmp.eq.s32.totalorder %s9, 1
    %p110 = por %p108, %p109
    %p111 = scmp.ne.s32.totalorder %s103, %s106
    %p112 = scmp.eq.s32.totalorder %s9, 0
    %p113 = por %p111, %p112
    %p114 = scmp.ne.s32.totalorder %s103, %s106
    %p115 = scmp.eq.s32.totalorder %s14, 1
    %p116 = por %p114, %p115
    %p117 = scmp.ne.s32.totalorder %s106, %s107
    %p118 = scmp.eq.s32.totalorder %s14, 0
    %p119 = por %p117, %p118
    %p120 = scmp.ne.s32.totalorder %s106, %s107
    %p121 = scmp.eq.s32.totalorder %s15, 1
    %p122 = por %p120, %p121
    %p124 = scmp.ne.s32.totalorder %s107, %s123
    %p125 = scmp.eq.s32.totalorder %s15, 0
    %p126 = por %p124, %p125
    %p127 = scmp.le.s32.totalorder 1, %s9
    %p128 = scmp.lt.s32.totalorder %s9, 3
    %p129 = pnand %p127, %p128
    %p130 = pneg %p129
    // Predicated region
    $region9: #{speech_model_forward.18} parent=5 // pred_check
      _
    $region10: #{speech_model_forward.18} parent=5 // pred_check_branch
      %132 = sbr.rel (%p129) target = $region12
    $region11: #{speech_model_forward.18} parent=5 // pred_region
      %s133 = ssub.s32 %s9, 1
      // Predicated region
      $region13: #{speech_model_forward.18} parent=11 // pred_check
        %p134 = pneg %p70
      $region14: #{speech_model_forward.18} parent=11 // pred_check_branch
        %136 = sbr.rel (%p134) target = $region16
      $region15: #{speech_model_forward.18} parent=11 // pred_region
        _
      $region16: #{speech_model_forward.18} parent=11 // pred_fallthru
        _
      // Predicated region
      $region17: #{speech_model_forward.18} parent=11 // pred_check
        %p137 = pneg %p91
      $region18: #{speech_model_forward.18} parent=11 // pred_check_branch
        %139 = sbr.rel (%p137) target = $region20
      $region19: #{speech_model_forward.18} parent=11 // pred_region
        _
      $region20: #{speech_model_forward.18} parent=11 // pred_fallthru
        _
    $region12: #{speech_model_forward.18} parent=5 // pred_fallthru
      _
    %p140 = scmp.lt.s32.totalorder %s9, 2
    // Predicated region
    $region21: #{speech_model_forward.18} parent=5 // pred_check
      %p141 = pneg %p140
    $region22: #{speech_model_forward.18} parent=5 // pred_check_branch
      %143 = sbr.rel (%p141) target = $region24
    $region23: #{speech_model_forward.18} parent=5 // pred_region
      // Predicated region
      $region25: #{speech_model_forward.18} parent=23 // pred_check
        %p144 = pneg %p43
      $region26: #{speech_model_forward.18} parent=23 // pred_check_branch
        %146 = sbr.rel (%p144) target = $region28
      $region27: #{speech_model_forward.18} parent=23 // pred_region
        %p147 = scmp.lt.s32.totalorder %s16, 1
        %s148 = scalar_select %p147, %s16, 1
        %p149 = scmp.lt.s32.totalorder %s17, 0
        %s150 = scalar_select %p149, %s17, 0
        %s151 = smul.addr %s150, 20
        %s152 = smul.addr %s148, 20
        %s153 = sadd.s32 %s151, %s152
        %s154 = smul.addr %s153, 8
        %s155 = scalar_lea.vmem %s0, %s154
      $region28: #{speech_model_forward.18} parent=23 // pred_fallthru
        _
    $region24: #{speech_model_forward.18} parent=5 // pred_fallthru
      _
    %p156 = scmp.le.s32.totalorder 1, %s9
    %p157 = scmp.lt.s32.totalorder %s9, 3
    %p158 = pnand %p156, %p157
    %p159 = pneg %p158
    // Predicated region
    $region29: #{speech_model_forward.18} parent=5 // pred_check
      _
    $region30: #{speech_model_forward.18} parent=5 // pred_check_branch
      %161 = sbr.rel (%p158) target = $region32
    $region31: #{speech_model_forward.18} parent=5 // pred_region
      %s162 = ssub.s32 %s9, 1
      %p163 = scmp.lt.s32.totalorder %s18, 1
      %s164 = scalar_select %p163, %s18, 1
      %p165 = scmp.lt.s32.totalorder %s19, 0
      %s166 = scalar_select %p165, %s19, 0
      %s167 = smul.addr %s166, 20
      %s168 = smul.addr %s164, 20
      %s169 = sadd.s32 %s167, %s168
      %s170 = smul.addr %s169, 8
      %s171 = scalar_lea.vmem %s0, %s170
      %p172 = pneg %p49
      %p173 = pneg %p46
      %p174 = pneg %p70
      %p175 = pneg %p67
      %p176 = pneg %p91
      %p177 = pneg %p88
      %p178 = pneg %p119
      %p179 = pneg %p116
      %p180 = scmp.lt.s32.totalorder %s18, 1
      %s181 = scalar_select %p180, %s18, 1
      %p182 = scmp.lt.s32.totalorder %s19, 0
      %s183 = scalar_select %p182, %s19, 0
      %s184 = smul.addr %s181, 8
      %s185 = sadd.s32 %s183, %s184
      %s186 = smul.addr %s185, 8
      %s187 = scalar_lea.vmem %s3, %s186
      %p188 = scmp.lt.s32.totalorder %s18, 1
      %s189 = scalar_select %p188, %s18, 1
      %p190 = scmp.lt.s32.totalorder %s19, 0
      %s191 = scalar_select %p190, %s19, 0
      %s192 = smul.addr %s191, 20
      %s193 = smul.addr %s189, 20
      %s194 = sadd.s32 %s192, %s193
      %s195 = smul.addr %s194, 8
      %s196 = scalar_lea.vmem %s0, %s195
      %p197 = scmp.lt.s32.totalorder %s18, 1
      %s198 = scalar_select %p197, %s18, 1
      %p199 = scmp.lt.s32.totalorder %s19, 0
      %s200 = scalar_select %p199, %s19, 0
      %s201 = smul.addr %s198, 8
      %s202 = sadd.s32 %s200, %s201
      %s203 = smul.addr %s202, 8
      %s204 = scalar_lea.vmem %s3, %s203
      %v206 = vld [vmem:[%s196] sm:$0xff]
      %v207 = vld [vmem:[%s196 + $0x8] sm:$0x3]
      %v208 = vld [vmem:[%s196 + $0x10] sm:$0xff]
      %v209 = vld [vmem:[%s196 + $0x18] sm:$0x3]
      %v210 = vld [vmem:[%s196 + $0x20] sm:$0xff]
      %v211 = vld [vmem:[%s196 + $0x28] sm:$0x3]
      %v212 = vld [vmem:[%s196 + $0x30] sm:$0xff]
      %v213 = vld [vmem:[%s196 + $0x38] sm:$0x3]
      %v214 = vld [vmem:[%s196 + $0x40] sm:$0xff]
      %v215 = vld [vmem:[%s196 + $0x48] sm:$0x3]
      %v216 = vld [vmem:[%s196 + $0x50] sm:$0xff]
      %v217 = vld [vmem:[%s196 + $0x58] sm:$0x3]
      %v218 = vld [vmem:[%s196 + $0x60] sm:$0xff]
      %v219 = vld [vmem:[%s196 + $0x68] sm:$0x3]
      %v220 = vld [vmem:[%s196 + $0x70] sm:$0xff]
      %v221 = vld [vmem:[%s196 + $0x78] sm:$0x3]
      %v222 = vld [vmem:[%s196 + $0x80] sm:$0xff]
      %v223 = vld [vmem:[%s196 + $0x88] sm:$0x3]
      %v224 = vld [vmem:[%s196 + $0x90] sm:$0xff]
      %v225 = vld [vmem:[%s196 + $0x98] sm:$0x3]
      %vm246 = vcmask 1046528
      %v247 = vrot.slane %v206, 1
      %v248 = vrot.slane %v207, 1
      %v249 = vsel %vm246, %v247, %v248
      %v250 = vrot.slane %v208, 1
      %v251 = vrot.slane %v209, 1
      %v252 = vsel %vm246, %v250, %v251
      %v253 = vrot.slane %v210, 1
      %v254 = vrot.slane %v211, 1
      %v255 = vsel %vm246, %v253, %v254
      %v256 = vrot.slane %v212, 1
      %v257 = vrot.slane %v213, 1
      %v258 = vsel %vm246, %v256, %v257
      %v259 = vrot.slane %v214, 1
      %v260 = vrot.slane %v215, 1
      %v261 = vsel %vm246, %v259, %v260
      %v262 = vrot.slane %v216, 1
      %v263 = vrot.slane %v217, 1
      %v264 = vsel %vm246, %v262, %v263
      %v265 = vrot.slane %v218, 1
      %v266 = vrot.slane %v219, 1
      %v267 = vsel %vm246, %v265, %v266
      %v268 = vrot.slane %v220, 1
      %v269 = vrot.slane %v221, 1
      %v270 = vsel %vm246, %v268, %v269
      %v271 = vrot.slane %v222, 1
      %v272 = vrot.slane %v223, 1
      %v273 = vsel %vm246, %v271, %v272
      %v274 = vrot.slane %v224, 1
      %v275 = vrot.slane %v225, 1
      %v276 = vsel %vm246, %v274, %v275
      %277 = vrot.lane.b32.xlu0 %v249, 32
      %v278 = vpop.permute.xlu0 %277
      %279 = vrot.lane.b32.xlu0 %v252, 32
      %v280 = vpop.permute.xlu0 %279
      %281 = vrot.lane.b32.xlu0 %v255, 32
      %v282 = vpop.permute.xlu0 %281
      %283 = vrot.lane.b32.xlu0 %v258, 32
      %v284 = vpop.permute.xlu0 %283
      %285 = vrot.lane.b32.xlu0 %v261, 32
      %v286 = vpop.permute.xlu0 %285
      %287 = vrot.lane.b32.xlu0 %v264, 32
      %v288 = vpop.permute.xlu0 %287
      %289 = vrot.lane.b32.xlu0 %v267, 32
      %v290 = vpop.permute.xlu0 %289
      %291 = vrot.lane.b32.xlu0 %v270, 32
      %v292 = vpop.permute.xlu0 %291
      %293 = vrot.lane.b32.xlu0 %v273, 32
      %v294 = vpop.permute.xlu0 %293
      %295 = vrot.lane.b32.xlu0 %v276, 32
      %v296 = vpop.permute.xlu0 %295
      %vm307 = vcmask 1045504
      %v308 = vrot.slane %v206, 2
      %v309 = vrot.slane %v207, 2
      %v310 = vsel %vm307, %v308, %v309
      %v311 = vrot.slane %v208, 2
      %v312 = vrot.slane %v209, 2
      %v313 = vsel %vm307, %v311, %v312
      %v314 = vrot.slane %v210, 2
      %v315 = vrot.slane %v211, 2
      %v316 = vsel %vm307, %v314, %v315
      %v317 = vrot.slane %v212, 2
      %v318 = vrot.slane %v213, 2
      %v319 = vsel %vm307, %v317, %v318
      %v320 = vrot.slane %v214, 2
      %v321 = vrot.slane %v215, 2
      %v322 = vsel %vm307, %v320, %v321
      %v323 = vrot.slane %v216, 2
      %v324 = vrot.slane %v217, 2
      %v325 = vsel %vm307, %v323, %v324
      %v326 = vrot.slane %v218, 2
      %v327 = vrot.slane %v219, 2
      %v328 = vsel %vm307, %v326, %v327
      %v329 = vrot.slane %v220, 2
      %v330 = vrot.slane %v221, 2
      %v331 = vsel %vm307, %v329, %v330
      %v332 = vrot.slane %v222, 2
      %v333 = vrot.slane %v223, 2
      %v334 = vsel %vm307, %v332, %v333
      %v335 = vrot.slane %v224, 2
      %v336 = vrot.slane %v225, 2
      %v337 = vsel %vm307, %v335, %v336
      %338 = vrot.lane.b32.xlu0 %v310, 64
      %v339 = vpop.permute.xlu0 %338
      %340 = vrot.lane.b32.xlu0 %v313, 64
      %v341 = vpop.permute.xlu0 %340
      %342 = vrot.lane.b32.xlu0 %v316, 64
      %v343 = vpop.permute.xlu0 %342
      %344 = vrot.lane.b32.xlu0 %v319, 64
      %v345 = vpop.permute.xlu0 %344
      %346 = vrot.lane.b32.xlu0 %v322, 64
      %v347 = vpop.permute.xlu0 %346
      %348 = vrot.lane.b32.xlu0 %v325, 64
      %v349 = vpop.permute.xlu0 %348
      %350 = vrot.lane.b32.xlu0 %v328, 64
      %v351 = vpop.permute.xlu0 %350
      %352 = vrot.lane.b32.xlu0 %v331, 64
      %v353 = vpop.permute.xlu0 %352
      %354 = vrot.lane.b32.xlu0 %v334, 64
      %v355 = vpop.permute.xlu0 %354
      %356 = vrot.lane.b32.xlu0 %v337, 64
      %v357 = vpop.permute.xlu0 %356
      %vm368 = vcmask 261120
      %v369 = vsel %vm368, %v206, %v278
      %v370 = vsel %vm368, %v208, %v280
      %v371 = vsel %vm368, %v210, %v282
      %v372 = vsel %vm368, %v212, %v284
      %v373 = vsel %vm368, %v214, %v286
      %v374 = vsel %vm368, %v216, %v288
      %v375 = vsel %vm368, %v218, %v290
      %v376 = vsel %vm368, %v220, %v292
      %v377 = vsel %vm368, %v222, %v294
      %v378 = vsel %vm368, %v224, %v296
      %vm379 = vcmask 523264
      %v380 = vsel %vm379, %v369, %v339
      %v381 = vsel %vm379, %v370, %v341
      %v382 = vsel %vm379, %v371, %v343
      %v383 = vsel %vm379, %v372, %v345
      %v384 = vsel %vm379, %v373, %v347
      %v385 = vsel %vm379, %v374, %v349
      %v386 = vsel %vm379, %v375, %v351
      %v387 = vsel %vm379, %v376, %v353
      %v388 = vsel %vm379, %v377, %v355
      %v389 = vsel %vm379, %v378, %v357
      %v390 = vpack.c.bf16 %v381, %v380
      %v391 = vpack.c.bf16 %v383, %v382
      %v392 = vpack.c.bf16 %v385, %v384
      %v393 = vpack.c.bf16 %v387, %v386
      %v394 = vld [vmem:[%s1] sm:$0xff]
      %v395 = vld [vmem:[%s1 + $0x8] sm:$0xff]
      %v396 = vld [vmem:[%s1 + $0x10] sm:$0xff]
      %v397 = vld [vmem:[%s1 + $0x18] sm:$0xff]
      %v398 = vld [vmem:[%s1 + $0x20] sm:$0xff]
      %v399 = vld [vmem:[%s1 + $0x28] sm:$0xff]
      %v400 = vld [vmem:[%s1 + $0x30] sm:$0xff]
      %v401 = vld [vmem:[%s1 + $0x38] sm:$0xff]
      %v402 = vld [vmem:[%s1 + $0x40] sm:$0xff]
      %v403 = vld [vmem:[%s1 + $0x48] sm:$0xff]
      %v404 = vld [vmem:[%s1 + $0x50] sm:$0xff]
      %v405 = vld [vmem:[%s1 + $0x58] sm:$0xff]
      %v406 = vpack.c.bf16 %v395, %v394
      %v407 = vpack.c.bf16 %v397, %v396
      %v408 = vpack.c.bf16 %v399, %v398
      %v409 = vpack.c.bf16 %v401, %v400
      %v410 = vpack.c.bf16 %v403, %v402
      %v411 = vpack.c.bf16 %v405, %v404
      %v412 = vpack.c.bf16 %v382, %v381
      %v413 = vpack.c.bf16 %v384, %v383
      %v414 = vpack.c.bf16 %v386, %v385
      %v415 = vpack.c.bf16 %v388, %v387
      %s416 = scalar_lea.vmem %s1, 96
      %v417 = vld [vmem:[%s416] sm:$0xff]
      %v418 = vld [vmem:[%s416 + $0x8] sm:$0xff]
      %v419 = vld [vmem:[%s416 + $0x10] sm:$0xff]
      %v420 = vld [vmem:[%s416 + $0x18] sm:$0xff]
      %v421 = vld [vmem:[%s416 + $0x20] sm:$0xff]
      %v422 = vld [vmem:[%s416 + $0x28] sm:$0xff]
      %v423 = vld [vmem:[%s416 + $0x30] sm:$0xff]
      %v424 = vld [vmem:[%s416 + $0x38] sm:$0xff]
      %v425 = vld [vmem:[%s416 + $0x40] sm:$0xff]
      %v426 = vld [vmem:[%s416 + $0x48] sm:$0xff]
      %v427 = vld [vmem:[%s416 + $0x50] sm:$0xff]
      %v428 = vld [vmem:[%s416 + $0x58] sm:$0xff]
      %v429 = vpack.c.bf16 %v418, %v417
      %v430 = vpack.c.bf16 %v420, %v419
      %v431 = vpack.c.bf16 %v422, %v421
      %v432 = vpack.c.bf16 %v424, %v423
      %v433 = vpack.c.bf16 %v426, %v425
      %v434 = vpack.c.bf16 %v428, %v427
      %vm435 = vcmask 785408
      %v437 = vsel %vm435, %v412, 0
      %v440 = vsel %vm435, %v413, 0
      %v443 = vsel %vm435, %v414, 0
      %v446 = vsel %vm435, %v415, 0
      %448 = vmatpush.bf16.msra.mxu0 0
      %449 = vmatpush.bf16.msra.mxu0 0
      %450 = vmatpush.bf16.msra.mxu0 %v434
      %451 = vmatpush.bf16.msra.mxu0 %v433
      %452 = vmatpush.bf16.msra.mxu0 %v432
      %453 = vmatpush.bf16.msra.mxu0 %v431
      %454 = vmatpush.bf16.msra.mxu0 %v430
      %455 = vmatpush.bf16.msra.mxu0 %v429
      %456 = vmatmul.bf16.gmra.mxu0 %v437
      %v457 = vpop.f32.mrf.mxu0
      %v458 = vadd.f32 0.0, %v457
      %v459 = vpop.f32.mrf.mxu0
      %v460 = vadd.f32 0.0, %v459
      %461 = vmatmul.bf16.gmra.mxu0 %v440
      %v462 = vpop.f32.mrf.mxu0
      %v463 = vadd.f32 0.0, %v462
      %v464 = vpop.f32.mrf.mxu0
      %v465 = vadd.f32 0.0, %v464
      %466 = vmatmul.bf16.gmra.mxu0 %v443
      %v467 = vpop.f32.mrf.mxu0
      %v468 = vadd.f32 0.0, %v467
      %v469 = vpop.f32.mrf.mxu0
      %v470 = vadd.f32 0.0, %v469
      %471 = vmatmul.bf16.gmra.mxu0 %v446
      %v472 = vpop.f32.mrf.mxu0
      %v473 = vadd.f32 0.0, %v472
      %v474 = vpop.f32.mrf.mxu0
      %v475 = vadd.f32 0.0, %v474
      %476 = vdwg.mxu0
      %v478 = vsel %vm435, %v390, 0
      %v481 = vsel %vm435, %v391, 0
      %v484 = vsel %vm435, %v392, 0
      %v487 = vsel %vm435, %v393, 0
      %489 = vmatpush.bf16.msra.mxu0 0
      %490 = vmatpush.bf16.msra.mxu0 0
      %491 = vmatpush.bf16.msra.mxu0 %v411
      %492 = vmatpush.bf16.msra.mxu0 %v410
      %493 = vmatpush.bf16.msra.mxu0 %v409
      %494 = vmatpush.bf16.msra.mxu0 %v408
      %495 = vmatpush.bf16.msra.mxu0 %v407
      %496 = vmatpush.bf16.msra.mxu0 %v406
      %497 = vmatmul.bf16.gmra.mxu0 %v478
      %v498 = vpop.f32.mrf.mxu0
      %v499 = vadd.f32 %v458, %v498
      %v500 = vpop.f32.mrf.mxu0
      %v501 = vadd.f32 %v460, %v500
      %502 = vmatmul.bf16.gmra.mxu0 %v481
      %v503 = vpop.f32.mrf.mxu0
      %v504 = vadd.f32 %v463, %v503
      %v505 = vpop.f32.mrf.mxu0
      %v506 = vadd.f32 %v465, %v505
      %507 = vmatmul.bf16.gmra.mxu0 %v484
      %v508 = vpop.f32.mrf.mxu0
      %v509 = vadd.f32 %v468, %v508
      %v510 = vpop.f32.mrf.mxu0
      %v511 = vadd.f32 %v470, %v510
      %512 = vmatmul.bf16.gmra.mxu0 %v487
      %v513 = vpop.f32.mrf.mxu0
      %v514 = vadd.f32 %v473, %v513
      %v515 = vpop.f32.mrf.mxu0
      %v516 = vadd.f32 %v475, %v515
      %517 = vdwg.mxu0
      %v518 = vpack.c.bf16 %v389, %v388
      %s519 = scalar_lea.vmem %s1, 192
      %v520 = vld [vmem:[%s519] sm:$0xff]
      %v521 = vld [vmem:[%s519 + $0x8] sm:$0xff]
      %v522 = vld [vmem:[%s519 + $0x10] sm:$0xff]
      %v523 = vld [vmem:[%s519 + $0x18] sm:$0xff]
      %v524 = vld [vmem:[%s519 + $0x20] sm:$0xff]
      %v525 = vld [vmem:[%s519 + $0x28] sm:$0xff]
      %v526 = vld [vmem:[%s519 + $0x30] sm:$0xff]
      %v527 = vld [vmem:[%s519 + $0x38] sm:$0xff]
      %v528 = vld [vmem:[%s519 + $0x40] sm:$0xff]
      %v529 = vld [vmem:[%s519 + $0x48] sm:$0xff]
      %v530 = vld [vmem:[%s519 + $0x50] sm:$0xff]
      %v531 = vld [vmem:[%s519 + $0x58] sm:$0xff]
      %v532 = vpack.c.bf16 %v521, %v520
      %v533 = vpack.c.bf16 %v523, %v522
      %v534 = vpack.c.bf16 %v525, %v524
      %v535 = vpack.c.bf16 %v527, %v526
      %v536 = vpack.c.bf16 %v529, %v528
      %v537 = vpack.c.bf16 %v531, %v530
      %v539 = vsel %vm435, %v518, 0
      %541 = vmatpush.bf16.msra.mxu0 0
      %542 = vmatpush.bf16.msra.mxu0 0
      %543 = vmatpush.bf16.msra.mxu0 %v537
      %544 = vmatpush.bf16.msra.mxu0 %v536
      %545 = vmatpush.bf16.msra.mxu0 %v535
      %546 = vmatpush.bf16.msra.mxu0 %v534
      %547 = vmatpush.bf16.msra.mxu0 %v533
      %548 = vmatpush.bf16.msra.mxu0 %v532
      %549 = vmatmul.bf16.gmra.mxu0 %v481
      %v550 = vpop.f32.mrf.mxu0
      %v551 = vadd.f32 0.0, %v550
      %v552 = vpop.f32.mrf.mxu0
      %v553 = vadd.f32 0.0, %v552
      %554 = vmatmul.bf16.gmra.mxu0 %v484
      %v555 = vpop.f32.mrf.mxu0
      %v556 = vadd.f32 0.0, %v555
      %v557 = vpop.f32.mrf.mxu0
      %v558 = vadd.f32 0.0, %v557
      %559 = vmatmul.bf16.gmra.mxu0 %v487
      %v560 = vpop.f32.mrf.mxu0
      %v561 = vadd.f32 0.0, %v560
      %v562 = vpop.f32.mrf.mxu0
      %v563 = vadd.f32 0.0, %v562
      %564 = vmatmul.bf16.gmra.mxu0 %v539
      %v565 = vpop.f32.mrf.mxu0
      %v566 = vadd.f32 0.0, %v565
      %v567 = vpop.f32.mrf.mxu0
      %v568 = vadd.f32 0.0, %v567
      %569 = vdwg.mxu0
      %v570 = vadd.f32 %v499, %v551
      %v571 = vadd.f32 %v501, %v553
      %v572 = vadd.f32 %v504, %v556
      %v573 = vadd.f32 %v506, %v558
      %v574 = vadd.f32 %v509, %v561
      %v575 = vadd.f32 %v511, %v563
      %v576 = vadd.f32 %v514, %v566
      %v577 = vadd.f32 %v516, %v568
      %v578 = vld [vmem:[%s2] sm:$0x1]
      %v580 = vperm.slane %v578, 0
      %v582 = vadd.f32 %v570, %v580
      %v583 = vadd.f32 %v571, %v580
      %v584 = vadd.f32 %v572, %v580
      %v585 = vadd.f32 %v573, %v580
      %v586 = vadd.f32 %v574, %v580
      %v587 = vadd.f32 %v575, %v580
      %v588 = vadd.f32 %v576, %v580
      %v589 = vadd.f32 %v577, %v580
      %590 = vst.msk [vmem:[%s204] sm:$0xff] %vm368, %v582
      %591 = vst.msk [vmem:[%s204 + $0x8] sm:$0xff] %vm368, %v583
      %592 = vst.msk [vmem:[%s204 + $0x10] sm:$0xff] %vm368, %v584
      %593 = vst.msk [vmem:[%s204 + $0x18] sm:$0xff] %vm368, %v585
      %594 = vst.msk [vmem:[%s204 + $0x20] sm:$0xff] %vm368, %v586
      %595 = vst.msk [vmem:[%s204 + $0x28] sm:$0xff] %vm368, %v587
      %596 = vst.msk [vmem:[%s204 + $0x30] sm:$0xff] %vm368, %v588
      %597 = vst.msk [vmem:[%s204 + $0x38] sm:$0xff] %vm368, %v589
      %p598 = scmp.lt.s32.totalorder %s18, 1
      %s599 = scalar_select %p598, %s18, 1
      %p600 = scmp.lt.s32.totalorder %s19, 0
      %s601 = scalar_select %p600, %s19, 0
      %s602 = smul.addr %s599, 8
      %s603 = sadd.s32 %s601, %s602
      %s604 = smul.addr %s603, 8
      %s605 = scalar_lea.vmem %s3, %s604
      // Predicated region
      $region33: #{speech_model_forward.18} parent=31 // pred_check
        %p606 = pneg %p116
      $region34: #{speech_model_forward.18} parent=31 // pred_check_branch
        %608 = sbr.rel (%p606) target = $region36
      $region35: #{speech_model_forward.18} parent=31 // pred_region
        _
      $region36: #{speech_model_forward.18} parent=31 // pred_fallthru
        _
    $region32: #{speech_model_forward.18} parent=5 // pred_fallthru
      _
    %p609 = scmp.le.s32.totalorder 2, %s9
    // Predicated region
    $region37: #{speech_model_forward.18} parent=5 // pred_check
      %p610 = pneg %p609
    $region38: #{speech_model_forward.18} parent=5 // pred_check_branch
      %612 = sbr.rel (%p610) target = $region40
    $region39: #{speech_model_forward.18} parent=5 // pred_region
      %s613 = ssub.s32 %s9, 2
      // Predicated region
      $region41: #{speech_model_forward.18} parent=39 // pred_check
        %p614 = pneg %p122
      $region42: #{speech_model_forward.18} parent=39 // pred_check_branch
        %616 = sbr.rel (%p614) target = $region44
      $region43: #{speech_model_forward.18} parent=39 // pred_region
        %p617 = scmp.lt.s32.totalorder %s20, 1
        %s618 = scalar_select %p617, %s20, 1
        %p619 = scmp.lt.s32.totalorder %s21, 0
        %s620 = scalar_select %p619, %s21, 0
        %s621 = smul.addr %s618, 8
        %s622 = sadd.s32 %s620, %s621
        %s623 = smul.addr %s622, 8
        %s624 = scalar_lea.vmem %s3, %s623
      $region44: #{speech_model_forward.18} parent=39 // pred_fallthru
        _
    $region40: #{speech_model_forward.18} parent=5 // pred_fallthru
      _
  $region6: #{speech_model_forward.18} parent=0 // loop_footer
    %s13 = sadd.s32 1, %s9
  $region7: #{speech_model_forward.18} parent=0 // loop_footer_branch
    %8 = sbr.rel target = $region3
  $region8: #{speech_model_forward.18} parent=0 // loop_exit
    _

// kernel: speech_model_forward.20
$region0: #{speech_model_forward.20}
  #allocation0 [shape = 'u32[]', space=smem, size = 0x4, offset = 0x4, fixed_abs, tag = 'smem constant byte address 0x4 - core index']
  #allocation1 [shape = 'u32[72,128]{1,0:T(1,128)}', space=vmem, size = 0x9000, scoped, tag = 'internal scratch']
  %s0 = inlined_call_operand.vmem [shape: f32[2,1,10,10,32], index: 0, kind: input, shape index: {}]
  %s1 = inlined_call_operand.vmem [shape: f32[3,96,32], index: 1, kind: input, shape index: {}]
  %s2 = inlined_call_operand.vmem [shape: f32[1,32], index: 2, kind: input, shape index: {}]
  %s3 = inlined_call_operand.vmem [shape: f32[2,8,8,32], index: 3, kind: input, shape index: {}]
  %s4 = inlined_call_operand.vmem [shape: f32[2,8,8,32], index: 4, kind: output, shape index: {}]
  %s5 = sld [smem:[#allocation0]]
  $region49: #{speech_model_forward.20} parent=0
    _
  %s7 = ssub.s32 1, %s5
  %s8 = scalar_select 0, %s7, %s5
  loop: start=0, step=1, limit=4
  $region2: #{speech_model_forward.20} parent=0 // loop_pre_header
    _
  $region3: #{speech_model_forward.20} parent=0 // loop_header
    %s10 = sphi 0, %s14
    %p11 = scmp.ge.s32.totalorder %s10, 4
    %s17 = sphi 0, %s29
    %s18 = sphi 0, %s25
    %s19 = sphi 0, %s17
    %s20 = sphi 0, %s18
    %s21 = sphi 0, %s19
    %s22 = sphi 0, %s20
    %s34 = sphi 0, %s36
    %s37 = sphi 0, %s34
    %s38 = sphi 0, %s37
    %s54 = sphi 0, %s38
    %s58 = sphi 0, %s58
    %s60 = sphi 0, %s58
    %s61 = sphi 0, %s60
    %s75 = sphi 0, %s61
    %s79 = sphi 0, %s79
    %s81 = sphi 0, %s79
    %s82 = sphi 0, %s81
    %s96 = sphi 0, %s82
    %s104 = sphi 0, %s106
    %s107 = sphi 0, %s104
    %s108 = sphi 0, %s107
    %s124 = sphi 0, %s108
    %s132 = sphi 0, %s134
    %s135 = sphi 0, %s132
    %s136 = sphi 0, %s135
    %s152 = sphi 0, %s136
  $region4: #{speech_model_forward.20} parent=0 // loop_header_branch
    %13 = sbr.rel (%p11) target = $region8
  $region5: #{speech_model_forward.20} parent=0 // loop_body
    %s15 = ssub.s32 %s10, 1
    %s16 = ssub.s32 %s10, 2
    %s23 = sadd.s32 1, %s18
    %p24 = scmp.ge.s32.totalorder %s23, 1
    %s25 = scalar_select %p24, 0, %s23
    %s26 = sadd.s32 1, %s17
    %s27 = scalar_select %p24, %s26, %s17
    %p28 = scmp.ge.s32.totalorder %s27, 2
    %s29 = scalar_select %p28, 0, %s27
    %s30 = ssub.s32 %s17, %s29
    %s31 = ssub.s32 %s18, %s25
    %s32 = sor.u32 %s30, %s31
    %p33 = scmp.eq.s32.totalorder %s32, 0
    %s35 = sadd.s32 %s34, 1
    %s36 = scalar_select %p33, %s34, %s35
    %p39 = pneg %p33
    %p40 = scmp.eq.s32.totalorder %s10, 1
    %p41 = por %p39, %p40
    %p42 = scmp.ne.s32.totalorder %s34, %s37
    %p43 = scmp.eq.s32.totalorder %s10, 0
    %p44 = por %p42, %p43
    %p45 = scmp.ne.s32.totalorder %s34, %s37
    %p46 = scmp.eq.s32.totalorder %s15, 1
    %p47 = por %p45, %p46
    %p48 = scmp.ne.s32.totalorder %s37, %s38
    %p49 = scmp.eq.s32.totalorder %s15, 0
    %p50 = por %p48, %p49
    %p51 = scmp.ne.s32.totalorder %s37, %s38
    %p52 = scmp.eq.s32.totalorder %s16, 1
    %p53 = por %p51, %p52
    %p55 = scmp.ne.s32.totalorder %s38, %s54
    %p56 = scmp.eq.s32.totalorder %s16, 0
    %p57 = por %p55, %p56
    %s59 = sadd.s32 %s58, 1
    %p62 = scmp.eq.s32.totalorder %s10, 1
    %p63 = scmp.ne.s32.totalorder %s58, %s60
    %p64 = scmp.eq.s32.totalorder %s10, 0
    %p65 = por %p63, %p64
    %p66 = scmp.ne.s32.totalorder %s58, %s60
    %p67 = scmp.eq.s32.totalorder %s15, 1
    %p68 = por %p66, %p67
    %p69 = scmp.ne.s32.totalorder %s60, %s61
    %p70 = scmp.eq.s32.totalorder %s15, 0
    %p71 = por %p69, %p70
    %p72 = scmp.ne.s32.totalorder %s60, %s61
    %p73 = scmp.eq.s32.totalorder %s16, 1
    %p74 = por %p72, %p73
    %p76 = scmp.ne.s32.totalorder %s61, %s75
    %p77 = scmp.eq.s32.totalorder %s16, 0
    %p78 = por %p76, %p77
    %s80 = sadd.s32 %s79, 1
    %p83 = scmp.eq.s32.totalorder %s10, 1
    %p84 = scmp.ne.s32.totalorder %s79, %s81
    %p85 = scmp.eq.s32.totalorder %s10, 0
    %p86 = por %p84, %p85
    %p87 = scmp.ne.s32.totalorder %s79, %s81
    %p88 = scmp.eq.s32.totalorder %s15, 1
    %p89 = por %p87, %p88
    %p90 = scmp.ne.s32.totalorder %s81, %s82
    %p91 = scmp.eq.s32.totalorder %s15, 0
    %p92 = por %p90, %p91
    %p93 = scmp.ne.s32.totalorder %s81, %s82
    %p94 = scmp.eq.s32.totalorder %s16, 1
    %p95 = por %p93, %p94
    %p97 = scmp.ne.s32.totalorder %s82, %s96
    %p98 = scmp.eq.s32.totalorder %s16, 0
    %p99 = por %p97, %p98
    %s100 = ssub.s32 %s17, %s29
    %s101 = ssub.s32 %s18, %s25
    %s102 = sor.u32 %s100, %s101
    %p103 = scmp.eq.s32.totalorder %s102, 0
    %s105 = sadd.s32 %s104, 1
    %s106 = scalar_select %p103, %s104, %s105
    %p109 = pneg %p103
    %p110 = scmp.eq.s32.totalorder %s10, 1
    %p111 = por %p109, %p110
    %p112 = scmp.ne.s32.totalorder %s104, %s107
    %p113 = scmp.eq.s32.totalorder %s10, 0
    %p114 = por %p112, %p113
    %p115 = scmp.ne.s32.totalorder %s104, %s107
    %p116 = scmp.eq.s32.totalorder %s15, 1
    %p117 = por %p115, %p116
    %p118 = scmp.ne.s32.totalorder %s107, %s108
    %p119 = scmp.eq.s32.totalorder %s15, 0
    %p120 = por %p118, %p119
    %p121 = scmp.ne.s32.totalorder %s107, %s108
    %p122 = scmp.eq.s32.totalorder %s16, 1
    %p123 = por %p121, %p122
    %p125 = scmp.ne.s32.totalorder %s108, %s124
    %p126 = scmp.eq.s32.totalorder %s16, 0
    %p127 = por %p125, %p126
    %s128 = ssub.s32 %s17, %s29
    %s129 = ssub.s32 %s18, %s25
    %s130 = sor.u32 %s128, %s129
    %p131 = scmp.eq.s32.totalorder %s130, 0
    %s133 = sadd.s32 %s132, 1
    %s134 = scalar_select %p131, %s132, %s133
    %p137 = pneg %p131
    %p138 = scmp.eq.s32.totalorder %s10, 1
    %p139 = por %p137, %p138
    %p140 = scmp.ne.s32.totalorder %s132, %s135
    %p141 = scmp.eq.s32.totalorder %s10, 0
    %p142 = por %p140, %p141
    %p143 = scmp.ne.s32.totalorder %s132, %s135
    %p144 = scmp.eq.s32.totalorder %s15, 1
    %p145 = por %p143, %p144
    %p146 = scmp.ne.s32.totalorder %s135, %s136
    %p147 = scmp.eq.s32.totalorder %s15, 0
    %p148 = por %p146, %p147
    %p149 = scmp.ne.s32.totalorder %s135, %s136
    %p150 = scmp.eq.s32.totalorder %s16, 1
    %p151 = por %p149, %p150
    %p153 = scmp.ne.s32.totalorder %s136, %s152
    %p154 = scmp.eq.s32.totalorder %s16, 0
    %p155 = por %p153, %p154
    %p156 = scmp.le.s32.totalorder 1, %s10
    %p157 = scmp.lt.s32.totalorder %s10, 3
    %p158 = pnand %p156, %p157
    %p159 = pneg %p158
    // Predicated region
    $region9: #{speech_model_forward.20} parent=5 // pred_check
      _
    $region10: #{speech_model_forward.20} parent=5 // pred_check_branch
      %161 = sbr.rel (%p158) target = $region12
    $region11: #{speech_model_forward.20} parent=5 // pred_region
      %s162 = ssub.s32 %s10, 1
      // Predicated region
      $region13: #{speech_model_forward.20} parent=11 // pred_check
        %p163 = pneg %p71
      $region14: #{speech_model_forward.20} parent=11 // pred_check_branch
        %165 = sbr.rel (%p163) target = $region16
      $region15: #{speech_model_forward.20} parent=11 // pred_region
        _
      $region16: #{speech_model_forward.20} parent=11 // pred_fallthru
        _
      // Predicated region
      $region17: #{speech_model_forward.20} parent=11 // pred_check
        %p166 = pneg %p92
      $region18: #{speech_model_forward.20} parent=11 // pred_check_branch
        %168 = sbr.rel (%p166) target = $region20
      $region19: #{speech_model_forward.20} parent=11 // pred_region
        _
      $region20: #{speech_model_forward.20} parent=11 // pred_fallthru
        _
    $region12: #{speech_model_forward.20} parent=5 // pred_fallthru
      _
    %p169 = scmp.lt.s32.totalorder %s10, 2
    // Predicated region
    $region21: #{speech_model_forward.20} parent=5 // pred_check
      %p170 = pneg %p169
    $region22: #{speech_model_forward.20} parent=5 // pred_check_branch
      %172 = sbr.rel (%p170) target = $region24
    $region23: #{speech_model_forward.20} parent=5 // pred_region
      // Predicated region
      $region25: #{speech_model_forward.20} parent=23 // pred_check
        %p173 = pneg %p44
      $region26: #{speech_model_forward.20} parent=23 // pred_check_branch
        %175 = sbr.rel (%p173) target = $region28
      $region27: #{speech_model_forward.20} parent=23 // pred_region
        %p176 = scmp.lt.s32.totalorder %s17, 1
        %s177 = scalar_select %p176, %s17, 1
        %p178 = scmp.lt.s32.totalorder %s18, 0
        %s179 = scalar_select %p178, %s18, 0
        %s180 = smul.addr %s179, 20
        %s181 = smul.addr %s177, 20
        %s182 = sadd.s32 %s180, %s181
        %s183 = smul.addr %s182, 8
        %s184 = scalar_lea.vmem %s0, %s183
      $region28: #{speech_model_forward.20} parent=23 // pred_fallthru
        _
      // Predicated region
      $region29: #{speech_model_forward.20} parent=23 // pred_check
        %p185 = pneg %p114
      $region30: #{speech_model_forward.20} parent=23 // pred_check_branch
        %187 = sbr.rel (%p185) target = $region32
      $region31: #{speech_model_forward.20} parent=23 // pred_region
        %p188 = scmp.lt.s32.totalorder %s17, 1
        %s189 = scalar_select %p188, %s17, 1
        %p190 = scmp.lt.s32.totalorder %s18, 0
        %s191 = scalar_select %p190, %s18, 0
        %s192 = smul.addr %s189, 8
        %s193 = sadd.s32 %s191, %s192
        %s194 = smul.addr %s193, 8
        %s195 = scalar_lea.vmem %s3, %s194
      $region32: #{speech_model_forward.20} parent=23 // pred_fallthru
        _
    $region24: #{speech_model_forward.20} parent=5 // pred_fallthru
      _
    %p196 = scmp.le.s32.totalorder 1, %s10
    %p197 = scmp.lt.s32.totalorder %s10, 3
    %p198 = pnand %p196, %p197
    %p199 = pneg %p198
    // Predicated region
    $region33: #{speech_model_forward.20} parent=5 // pred_check
      _
    $region34: #{speech_model_forward.20} parent=5 // pred_check_branch
      %201 = sbr.rel (%p198) target = $region36
    $region35: #{speech_model_forward.20} parent=5 // pred_region
      %s202 = ssub.s32 %s10, 1
      %p203 = scmp.lt.s32.totalorder %s19, 1
      %s204 = scalar_select %p203, %s19, 1
      %p205 = scmp.lt.s32.totalorder %s20, 0
      %s206 = scalar_select %p205, %s20, 0
      %s207 = smul.addr %s206, 20
      %s208 = smul.addr %s204, 20
      %s209 = sadd.s32 %s207, %s208
      %s210 = smul.addr %s209, 8
      %s211 = scalar_lea.vmem %s0, %s210
      %p212 = pneg %p50
      %p213 = pneg %p47
      %p214 = pneg %p71
      %p215 = pneg %p68
      %p216 = pneg %p92
      %p217 = pneg %p89
      %p218 = scmp.lt.s32.totalorder %s19, 1
      %s219 = scalar_select %p218, %s19, 1
      %p220 = scmp.lt.s32.totalorder %s20, 0
      %s221 = scalar_select %p220, %s20, 0
      %s222 = smul.addr %s219, 8
      %s223 = sadd.s32 %s221, %s222
      %s224 = smul.addr %s223, 8
      %s225 = scalar_lea.vmem %s3, %s224
      %p226 = pneg %p120
      %p227 = pneg %p117
      %p228 = pneg %p148
      %p229 = pneg %p145
      %p230 = scmp.lt.s32.totalorder %s19, 1
      %s231 = scalar_select %p230, %s19, 1
      %p232 = scmp.lt.s32.totalorder %s20, 0
      %s233 = scalar_select %p232, %s20, 0
      %s234 = smul.addr %s231, 8
      %s235 = sadd.s32 %s233, %s234
      %s236 = smul.addr %s235, 8
      %s237 = scalar_lea.vmem %s4, %s236
      %p238 = scmp.lt.s32.totalorder %s19, 1
      %s239 = scalar_select %p238, %s19, 1
      %p240 = scmp.lt.s32.totalorder %s20, 0
      %s241 = scalar_select %p240, %s20, 0
      %s242 = smul.addr %s241, 20
      %s243 = smul.addr %s239, 20
      %s244 = sadd.s32 %s242, %s243
      %s245 = smul.addr %s244, 8
      %s246 = scalar_lea.vmem %s0, %s245
      %p247 = scmp.lt.s32.totalorder %s19, 1
      %s248 = scalar_select %p247, %s19, 1
      %p249 = scmp.lt.s32.totalorder %s20, 0
      %s250 = scalar_select %p249, %s20, 0
      %s251 = smul.addr %s248, 8
      %s252 = sadd.s32 %s250, %s251
      %s253 = smul.addr %s252, 8
      %s254 = scalar_lea.vmem %s3, %s253
      %p255 = scmp.lt.s32.totalorder %s19, 1
      %s256 = scalar_select %p255, %s19, 1
      %p257 = scmp.lt.s32.totalorder %s20, 0
      %s258 = scalar_select %p257, %s20, 0
      %s259 = smul.addr %s256, 8
      %s260 = sadd.s32 %s258, %s259
      %s261 = smul.addr %s260, 8
      %s262 = scalar_lea.vmem %s4, %s261
      %v264 = vld [vmem:[%s246] sm:$0xff]
      %v265 = vld [vmem:[%s246 + $0x8] sm:$0x3]
      %v266 = vld [vmem:[%s246 + $0x10] sm:$0xff]
      %v267 = vld [vmem:[%s246 + $0x18] sm:$0x3]
      %v268 = vld [vmem:[%s246 + $0x20] sm:$0xff]
      %v269 = vld [vmem:[%s246 + $0x28] sm:$0x3]
      %v270 = vld [vmem:[%s246 + $0x30] sm:$0xff]
      %v271 = vld [vmem:[%s246 + $0x38] sm:$0x3]
      %v272 = vld [vmem:[%s246 + $0x40] sm:$0xff]
      %v273 = vld [vmem:[%s246 + $0x48] sm:$0x3]
      %v274 = vld [vmem:[%s246 + $0x50] sm:$0xff]
      %v275 = vld [vmem:[%s246 + $0x58] sm:$0x3]
      %v276 = vld [vmem:[%s246 + $0x60] sm:$0xff]
      %v277 = vld [vmem:[%s246 + $0x68] sm:$0x3]
      %v278 = vld [vmem:[%s246 + $0x70] sm:$0xff]
      %v279 = vld [vmem:[%s246 + $0x78] sm:$0x3]
      %v280 = vld [vmem:[%s246 + $0x80] sm:$0xff]
      %v281 = vld [vmem:[%s246 + $0x88] sm:$0x3]
      %v282 = vld [vmem:[%s246 + $0x90] sm:$0xff]
      %v283 = vld [vmem:[%s246 + $0x98] sm:$0x3]
      %vm304 = vcmask 1046528
      %v305 = vrot.slane %v264, 1
      %v306 = vrot.slane %v265, 1
      %v307 = vsel %vm304, %v305, %v306
      %v308 = vrot.slane %v266, 1
      %v309 = vrot.slane %v267, 1
      %v310 = vsel %vm304, %v308, %v309
      %v311 = vrot.slane %v268, 1
      %v312 = vrot.slane %v269, 1
      %v313 = vsel %vm304, %v311, %v312
      %v314 = vrot.slane %v270, 1
      %v315 = vrot.slane %v271, 1
      %v316 = vsel %vm304, %v314, %v315
      %v317 = vrot.slane %v272, 1
      %v318 = vrot.slane %v273, 1
      %v319 = vsel %vm304, %v317, %v318
      %v320 = vrot.slane %v274, 1
      %v321 = vrot.slane %v275, 1
      %v322 = vsel %vm304, %v320, %v321
      %v323 = vrot.slane %v276, 1
      %v324 = vrot.slane %v277, 1
      %v325 = vsel %vm304, %v323, %v324
      %v326 = vrot.slane %v278, 1
      %v327 = vrot.slane %v279, 1
      %v328 = vsel %vm304, %v326, %v327
      %v329 = vrot.slane %v280, 1
      %v330 = vrot.slane %v281, 1
      %v331 = vsel %vm304, %v329, %v330
      %v332 = vrot.slane %v282, 1
      %v333 = vrot.slane %v283, 1
      %v334 = vsel %vm304, %v332, %v333
      %335 = vrot.lane.b32.xlu0 %v307, 32
      %v336 = vpop.permute.xlu0 %335
      %337 = vrot.lane.b32.xlu0 %v310, 32
      %v338 = vpop.permute.xlu0 %337
      %339 = vrot.lane.b32.xlu0 %v313, 32
      %v340 = vpop.permute.xlu0 %339
      %341 = vrot.lane.b32.xlu0 %v316, 32
      %v342 = vpop.permute.xlu0 %341
      %343 = vrot.lane.b32.xlu0 %v319, 32
      %v344 = vpop.permute.xlu0 %343
      %345 = vrot.lane.b32.xlu0 %v322, 32
      %v346 = vpop.permute.xlu0 %345
      %347 = vrot.lane.b32.xlu0 %v325, 32
      %v348 = vpop.permute.xlu0 %347
      %349 = vrot.lane.b32.xlu0 %v328, 32
      %v350 = vpop.permute.xlu0 %349
      %351 = vrot.lane.b32.xlu0 %v331, 32
      %v352 = vpop.permute.xlu0 %351
      %353 = vrot.lane.b32.xlu0 %v334, 32
      %v354 = vpop.permute.xlu0 %353
      %vm365 = vcmask 1045504
      %v366 = vrot.slane %v264, 2
      %v367 = vrot.slane %v265, 2
      %v368 = vsel %vm365, %v366, %v367
      %v369 = vrot.slane %v266, 2
      %v370 = vrot.slane %v267, 2
      %v371 = vsel %vm365, %v369, %v370
      %v372 = vrot.slane %v268, 2
      %v373 = vrot.slane %v269, 2
      %v374 = vsel %vm365, %v372, %v373
      %v375 = vrot.slane %v270, 2
      %v376 = vrot.slane %v271, 2
      %v377 = vsel %vm365, %v375, %v376
      %v378 = vrot.slane %v272, 2
      %v379 = vrot.slane %v273, 2
      %v380 = vsel %vm365, %v378, %v379
      %v381 = vrot.slane %v274, 2
      %v382 = vrot.slane %v275, 2
      %v383 = vsel %vm365, %v381, %v382
      %v384 = vrot.slane %v276, 2
      %v385 = vrot.slane %v277, 2
      %v386 = vsel %vm365, %v384, %v385
      %v387 = vrot.slane %v278, 2
      %v388 = vrot.slane %v279, 2
      %v389 = vsel %vm365, %v387, %v388
      %v390 = vrot.slane %v280, 2
      %v391 = vrot.slane %v281, 2
      %v392 = vsel %vm365, %v390, %v391
      %v393 = vrot.slane %v282, 2
      %v394 = vrot.slane %v283, 2
      %v395 = vsel %vm365, %v393, %v394
      %396 = vrot.lane.b32.xlu0 %v368, 64
      %v397 = vpop.permute.xlu0 %396
      %398 = vrot.lane.b32.xlu0 %v371, 64
      %v399 = vpop.permute.xlu0 %398
      %400 = vrot.lane.b32.xlu0 %v374, 64
      %v401 = vpop.permute.xlu0 %400
      %402 = vrot.lane.b32.xlu0 %v377, 64
      %v403 = vpop.permute.xlu0 %402
      %404 = vrot.lane.b32.xlu0 %v380, 64
      %v405 = vpop.permute.xlu0 %404
      %406 = vrot.lane.b32.xlu0 %v383, 64
      %v407 = vpop.permute.xlu0 %406
      %408 = vrot.lane.b32.xlu0 %v386, 64
      %v409 = vpop.permute.xlu0 %408
      %410 = vrot.lane.b32.xlu0 %v389, 64
      %v411 = vpop.permute.xlu0 %410
      %412 = vrot.lane.b32.xlu0 %v392, 64
      %v413 = vpop.permute.xlu0 %412
      %414 = vrot.lane.b32.xlu0 %v395, 64
      %v415 = vpop.permute.xlu0 %414
      %vm426 = vcmask 261120
      %v427 = vsel %vm426, %v264, %v336
      %v428 = vsel %vm426, %v266, %v338
      %v429 = vsel %vm426, %v268, %v340
      %v430 = vsel %vm426, %v270, %v342
      %v431 = vsel %vm426, %v272, %v344
      %v432 = vsel %vm426, %v274, %v346
      %v433 = vsel %vm426, %v276, %v348
      %v434 = vsel %vm426, %v278, %v350
      %v435 = vsel %vm426, %v280, %v352
      %v436 = vsel %vm426, %v282, %v354
      %vm437 = vcmask 523264
      %v438 = vsel %vm437, %v427, %v397
      %v439 = vsel %vm437, %v428, %v399
      %v440 = vsel %vm437, %v429, %v401
      %v441 = vsel %vm437, %v430, %v403
      %v442 = vsel %vm437, %v431, %v405
      %v443 = vsel %vm437, %v432, %v407
      %v444 = vsel %vm437, %v433, %v409
      %v445 = vsel %vm437, %v434, %v411
      %v446 = vsel %vm437, %v435, %v413
      %v447 = vsel %vm437, %v436, %v415
      %v448 = vpack.c.bf16 %v439, %v438
      %v449 = vpack.c.bf16 %v441, %v440
      %v450 = vpack.c.bf16 %v443, %v442
      %v451 = vpack.c.bf16 %v445, %v444
      %v452 = vld [vmem:[%s1] sm:$0xff]
      %v453 = vld [vmem:[%s1 + $0x8] sm:$0xff]
      %v454 = vld [vmem:[%s1 + $0x10] sm:$0xff]
      %v455 = vld [vmem:[%s1 + $0x18] sm:$0xff]
      %v456 = vld [vmem:[%s1 + $0x20] sm:$0xff]
      %v457 = vld [vmem:[%s1 + $0x28] sm:$0xff]
      %v458 = vld [vmem:[%s1 + $0x30] sm:$0xff]
      %v459 = vld [vmem:[%s1 + $0x38] sm:$0xff]
      %v460 = vld [vmem:[%s1 + $0x40] sm:$0xff]
      %v461 = vld [vmem:[%s1 + $0x48] sm:$0xff]
      %v462 = vld [vmem:[%s1 + $0x50] sm:$0xff]
      %v463 = vld [vmem:[%s1 + $0x58] sm:$0xff]
      %v464 = vpack.c.bf16 %v453, %v452
      %v465 = vpack.c.bf16 %v455, %v454
      %v466 = vpack.c.bf16 %v457, %v456
      %v467 = vpack.c.bf16 %v459, %v458
      %v468 = vpack.c.bf16 %v461, %v460
      %v469 = vpack.c.bf16 %v463, %v462
      %v470 = vpack.c.bf16 %v440, %v439
      %v471 = vpack.c.bf16 %v442, %v441
      %v472 = vpack.c.bf16 %v444, %v443
      %v473 = vpack.c.bf16 %v446, %v445
      %s474 = scalar_lea.vmem %s1, 96
      %v475 = vld [vmem:[%s474] sm:$0xff]
      %v476 = vld [vmem:[%s474 + $0x8] sm:$0xff]
      %v477 = vld [vmem:[%s474 + $0x10] sm:$0xff]
      %v478 = vld [vmem:[%s474 + $0x18] sm:$0xff]
      %v479 = vld [vmem:[%s474 + $0x20] sm:$0xff]
      %v480 = vld [vmem:[%s474 + $0x28] sm:$0xff]
      %v481 = vld [vmem:[%s474 + $0x30] sm:$0xff]
      %v482 = vld [vmem:[%s474 + $0x38] sm:$0xff]
      %v483 = vld [vmem:[%s474 + $0x40] sm:$0xff]
      %v484 = vld [vmem:[%s474 + $0x48] sm:$0xff]
      %v485 = vld [vmem:[%s474 + $0x50] sm:$0xff]
      %v486 = vld [vmem:[%s474 + $0x58] sm:$0xff]
      %v487 = vpack.c.bf16 %v476, %v475
      %v488 = vpack.c.bf16 %v478, %v477
      %v489 = vpack.c.bf16 %v480, %v479
      %v490 = vpack.c.bf16 %v482, %v481
      %v491 = vpack.c.bf16 %v484, %v483
      %v492 = vpack.c.bf16 %v486, %v485
      %vm493 = vcmask 785408
      %v495 = vsel %vm493, %v470, 0
      %v498 = vsel %vm493, %v471, 0
      %v501 = vsel %vm493, %v472, 0
      %v504 = vsel %vm493, %v473, 0
      %506 = vmatpush.bf16.msra.mxu0 0
      %507 = vmatpush.bf16.msra.mxu0 0
      %508 = vmatpush.bf16.msra.mxu0 %v492
      %509 = vmatpush.bf16.msra.mxu0 %v491
      %510 = vmatpush.bf16.msra.mxu0 %v490
      %511 = vmatpush.bf16.msra.mxu0 %v489
      %512 = vmatpush.bf16.msra.mxu0 %v488
      %513 = vmatpush.bf16.msra.mxu0 %v487
      %514 = vmatmul.bf16.gmra.mxu0 %v495
      %v515 = vpop.f32.mrf.mxu0
      %v516 = vadd.f32 0.0, %v515
      %v517 = vpop.f32.mrf.mxu0
      %v518 = vadd.f32 0.0, %v517
      %519 = vmatmul.bf16.gmra.mxu0 %v498
      %v520 = vpop.f32.mrf.mxu0
      %v521 = vadd.f32 0.0, %v520
      %v522 = vpop.f32.mrf.mxu0
      %v523 = vadd.f32 0.0, %v522
      %524 = vmatmul.bf16.gmra.mxu0 %v501
      %v525 = vpop.f32.mrf.mxu0
      %v526 = vadd.f32 0.0, %v525
      %v527 = vpop.f32.mrf.mxu0
      %v528 = vadd.f32 0.0, %v527
      %529 = vmatmul.bf16.gmra.mxu0 %v504
      %v530 = vpop.f32.mrf.mxu0
      %v531 = vadd.f32 0.0, %v530
      %v532 = vpop.f32.mrf.mxu0
      %v533 = vadd.f32 0.0, %v532
      %534 = vdwg.mxu0
      %v536 = vsel %vm493, %v448, 0
      %v539 = vsel %vm493, %v449, 0
      %v542 = vsel %vm493, %v450, 0
      %v545 = vsel %vm493, %v451, 0
      %547 = vmatpush.bf16.msra.mxu0 0
      %548 = vmatpush.bf16.msra.mxu0 0
      %549 = vmatpush.bf16.msra.mxu0 %v469
      %550 = vmatpush.bf16.msra.mxu0 %v468
      %551 = vmatpush.bf16.msra.mxu0 %v467
      %552 = vmatpush.bf16.msra.mxu0 %v466
      %553 = vmatpush.bf16.msra.mxu0 %v465
      %554 = vmatpush.bf16.msra.mxu0 %v464
      %555 = vmatmul.bf16.gmra.mxu0 %v536
      %v556 = vpop.f32.mrf.mxu0
      %v557 = vadd.f32 %v516, %v556
      %v558 = vpop.f32.mrf.mxu0
      %v559 = vadd.f32 %v518, %v558
      %560 = vmatmul.bf16.gmra.mxu0 %v539
      %v561 = vpop.f32.mrf.mxu0
      %v562 = vadd.f32 %v521, %v561
      %v563 = vpop.f32.mrf.mxu0
      %v564 = vadd.f32 %v523, %v563
      %565 = vmatmul.bf16.gmra.mxu0 %v542
      %v566 = vpop.f32.mrf.mxu0
      %v567 = vadd.f32 %v526, %v566
      %v568 = vpop.f32.mrf.mxu0
      %v569 = vadd.f32 %v528, %v568
      %570 = vmatmul.bf16.gmra.mxu0 %v545
      %v571 = vpop.f32.mrf.mxu0
      %v572 = vadd.f32 %v531, %v571
      %v573 = vpop.f32.mrf.mxu0
      %v574 = vadd.f32 %v533, %v573
      %575 = vdwg.mxu0
      %v576 = vpack.c.bf16 %v447, %v446
      %s577 = scalar_lea.vmem %s1, 192
      %v578 = vld [vmem:[%s577] sm:$0xff]
      %v579 = vld [vmem:[%s577 + $0x8] sm:$0xff]
      %v580 = vld [vmem:[%s577 + $0x10] sm:$0xff]
      %v581 = vld [vmem:[%s577 + $0x18] sm:$0xff]
      %v582 = vld [vmem:[%s577 + $0x20] sm:$0xff]
      %v583 = vld [vmem:[%s577 + $0x28] sm:$0xff]
      %v584 = vld [vmem:[%s577 + $0x30] sm:$0xff]
      %v585 = vld [vmem:[%s577 + $0x38] sm:$0xff]
      %v586 = vld [vmem:[%s577 + $0x40] sm:$0xff]
      %v587 = vld [vmem:[%s577 + $0x48] sm:$0xff]
      %v588 = vld [vmem:[%s577 + $0x50] sm:$0xff]
      %v589 = vld [vmem:[%s577 + $0x58] sm:$0xff]
      %v590 = vpack.c.bf16 %v579, %v578
      %v591 = vpack.c.bf16 %v581, %v580
      %v592 = vpack.c.bf16 %v583, %v582
      %v593 = vpack.c.bf16 %v585, %v584
      %v594 = vpack.c.bf16 %v587, %v586
      %v595 = vpack.c.bf16 %v589, %v588
      %v597 = vsel %vm493, %v576, 0
      %599 = vmatpush.bf16.msra.mxu0 0
      %600 = vmatpush.bf16.msra.mxu0 0
      %601 = vmatpush.bf16.msra.mxu0 %v595
      %602 = vmatpush.bf16.msra.mxu0 %v594
      %603 = vmatpush.bf16.msra.mxu0 %v593
      %604 = vmatpush.bf16.msra.mxu0 %v592
      %605 = vmatpush.bf16.msra.mxu0 %v591
      %606 = vmatpush.bf16.msra.mxu0 %v590
      %607 = vmatmul.bf16.gmra.mxu0 %v539
      %v608 = vpop.f32.mrf.mxu0
      %v609 = vadd.f32 0.0, %v608
      %v610 = vpop.f32.mrf.mxu0
      %v611 = vadd.f32 0.0, %v610
      %612 = vmatmul.bf16.gmra.mxu0 %v542
      %v613 = vpop.f32.mrf.mxu0
      %v614 = vadd.f32 0.0, %v613
      %v615 = vpop.f32.mrf.mxu0
      %v616 = vadd.f32 0.0, %v615
      %617 = vmatmul.bf16.gmra.mxu0 %v545
      %v618 = vpop.f32.mrf.mxu0
      %v619 = vadd.f32 0.0, %v618
      %v620 = vpop.f32.mrf.mxu0
      %v621 = vadd.f32 0.0, %v620
      %622 = vmatmul.bf16.gmra.mxu0 %v597
      %v623 = vpop.f32.mrf.mxu0
      %v624 = vadd.f32 0.0, %v623
      %v625 = vpop.f32.mrf.mxu0
      %v626 = vadd.f32 0.0, %v625
      %627 = vdwg.mxu0
      %v628 = vadd.f32 %v557, %v609
      %v629 = vadd.f32 %v559, %v611
      %v630 = vadd.f32 %v562, %v614
      %v631 = vadd.f32 %v564, %v616
      %v632 = vadd.f32 %v567, %v619
      %v633 = vadd.f32 %v569, %v621
      %v634 = vadd.f32 %v572, %v624
      %v635 = vadd.f32 %v574, %v626
      %v636 = vld [vmem:[%s2] sm:$0x1]
      %v638 = vperm.slane %v636, 0
      %v640 = vadd.f32 %v628, %v638
      %v641 = vadd.f32 %v629, %v638
      %v642 = vadd.f32 %v630, %v638
      %v643 = vadd.f32 %v631, %v638
      %v644 = vadd.f32 %v632, %v638
      %v645 = vadd.f32 %v633, %v638
      %v646 = vadd.f32 %v634, %v638
      %v647 = vadd.f32 %v635, %v638
      %v648 = vld [vmem:[%s254] sm:$0xff]
      %v649 = vld [vmem:[%s254 + $0x8] sm:$0xff]
      %v650 = vld [vmem:[%s254 + $0x10] sm:$0xff]
      %v651 = vld [vmem:[%s254 + $0x18] sm:$0xff]
      %v652 = vld [vmem:[%s254 + $0x20] sm:$0xff]
      %v653 = vld [vmem:[%s254 + $0x28] sm:$0xff]
      %v654 = vld [vmem:[%s254 + $0x30] sm:$0xff]
      %v655 = vld [vmem:[%s254 + $0x38] sm:$0xff]
      %v656 = vadd.f32 %v640, %v648
      %v657 = vadd.f32 %v641, %v649
      %v658 = vadd.f32 %v642, %v650
      %v659 = vadd.f32 %v643, %v651
      %v660 = vadd.f32 %v644, %v652
      %v661 = vadd.f32 %v645, %v653
      %v662 = vadd.f32 %v646, %v654
      %v663 = vadd.f32 %v647, %v655
      %664 = vst.msk [vmem:[%s262] sm:$0xff] %vm426, %v656
      %665 = vst.msk [vmem:[%s262 + $0x8] sm:$0xff] %vm426, %v657
      %666 = vst.msk [vmem:[%s262 + $0x10] sm:$0xff] %vm426, %v658
      %667 = vst.msk [vmem:[%s262 + $0x18] sm:$0xff] %vm426, %v659
      %668 = vst.msk [vmem:[%s262 + $0x20] sm:$0xff] %vm426, %v660
      %669 = vst.msk [vmem:[%s262 + $0x28] sm:$0xff] %vm426, %v661
      %670 = vst.msk [vmem:[%s262 + $0x30] sm:$0xff] %vm426, %v662
      %671 = vst.msk [vmem:[%s262 + $0x38] sm:$0xff] %vm426, %v663
      %p672 = scmp.lt.s32.totalorder %s19, 1
      %s673 = scalar_select %p672, %s19, 1
      %p674 = scmp.lt.s32.totalorder %s20, 0
      %s675 = scalar_select %p674, %s20, 0
      %s676 = smul.addr %s673, 8
      %s677 = sadd.s32 %s675, %s676
      %s678 = smul.addr %s677, 8
      %s679 = scalar_lea.vmem %s4, %s678
      // Predicated region
      $region37: #{speech_model_forward.20} parent=35 // pred_check
        %p680 = pneg %p145
      $region38: #{speech_model_forward.20} parent=35 // pred_check_branch
        %682 = sbr.rel (%p680) target = $region40
      $region39: #{speech_model_forward.20} parent=35 // pred_region
        _
      $region40: #{speech_model_forward.20} parent=35 // pred_fallthru
        _
    $region36: #{speech_model_forward.20} parent=5 // pred_fallthru
      _
    %p683 = scmp.le.s32.totalorder 2, %s10
    // Predicated region
    $region41: #{speech_model_forward.20} parent=5 // pred_check
      %p684 = pneg %p683
    $region42: #{speech_model_forward.20} parent=5 // pred_check_branch
      %686 = sbr.rel (%p684) target = $region44
    $region43: #{speech_model_forward.20} parent=5 // pred_region
      %s687 = ssub.s32 %s10, 2
      // Predicated region
      $region45: #{speech_model_forward.20} parent=43 // pred_check
        %p688 = pneg %p151
      $region46: #{speech_model_forward.20} parent=43 // pred_check_branch
        %690 = sbr.rel (%p688) target = $region48
      $region47: #{speech_model_forward.20} parent=43 // pred_region
        %p691 = scmp.lt.s32.totalorder %s21, 1
        %s692 = scalar_select %p691, %s21, 1
        %p693 = scmp.lt.s32.totalorder %s22, 0
        %s694 = scalar_select %p693, %s22, 0
        %s695 = smul.addr %s692, 8
        %s696 = sadd.s32 %s694, %s695
        %s697 = smul.addr %s696, 8
        %s698 = scalar_lea.vmem %s4, %s697
      $region48: #{speech_model_forward.20} parent=43 // pred_fallthru
        _
    $region44: #{speech_model_forward.20} parent=5 // pred_fallthru
      _
  $region6: #{speech_model_forward.20} parent=0 // loop_footer
    %s14 = sadd.s32 1, %s10
  $region7: #{speech_model_forward.20} parent=0 // loop_footer_branch
    %9 = sbr.rel target = $region3
  $region8: #{speech_model_forward.20} parent=0 // loop_exit
    _

// kernel: speech_model_forward.26
$region0: #{speech_model_forward.26}
  #allocation0 [shape = 'u32[]', space=smem, size = 0x4, offset = 0x4, fixed_abs, tag = 'smem constant byte address 0x4 - core index']
  #allocation1 [shape = 'u32[72,128]{1,0:T(1,128)}', space=vmem, size = 0x9000, scoped, tag = 'internal scratch']
  %s0 = inlined_call_operand.vmem [shape: f32[16,32], index: 0, kind: input, shape index: {}]
  %s1 = inlined_call_operand.vmem [shape: f32[1,32], index: 1, kind: input, shape index: {}]
  %s2 = inlined_call_operand.vmem [shape: f32[1,32], index: 2, kind: input, shape index: {}]
  %s3 = inlined_call_operand.vmem [shape: f32[16,32], index: 3, kind: output, shape index: {}]
  %s4 = sld [smem:[#allocation0]]
  $region22: #{speech_model_forward.26} parent=0
    _
  %s6 = ssub.s32 1, %s4
  %s7 = scalar_select 0, %s6, %s4
  // Predicated region
  $region2: #{speech_model_forward.26} parent=0 // pred_check
    _
  $region3: #{speech_model_forward.26} parent=0 // pred_check_branch
    %9 = sbr.rel (0) target = $region5
  $region4: #{speech_model_forward.26} parent=0 // pred_region
    _
  $region5: #{speech_model_forward.26} parent=0 // pred_fallthru
    _
  // Predicated region
  $region6: #{speech_model_forward.26} parent=0 // pred_check
    _
  $region7: #{speech_model_forward.26} parent=0 // pred_check_branch
    %11 = sbr.rel (0) target = $region9
  $region8: #{speech_model_forward.26} parent=0 // pred_region
    _
  $region9: #{speech_model_forward.26} parent=0 // pred_fallthru
    _
  // Predicated region
  $region10: #{speech_model_forward.26} parent=0 // pred_check
    _
  $region11: #{speech_model_forward.26} parent=0 // pred_check_branch
    %13 = sbr.rel (0) target = $region13
  $region12: #{speech_model_forward.26} parent=0 // pred_region
    _
  $region13: #{speech_model_forward.26} parent=0 // pred_fallthru
    _
  %v14 = vld [vmem:[%s0] sm:$0xff]
  %v15 = vld [vmem:[%s0 + $0x8] sm:$0xff]
  %vm16 = vcmask 261120
  %v17 = vsel %vm16, %v14, 0.0
  %18 = vadd.xlane.f32.xlu0 %v17
  %v19 = vpop.xlane.xlu0 %18
  %v20 = vsel %vm16, %v15, 0.0
  %21 = vadd.xlane.f32.xlu0 %v20
  %v22 = vpop.xlane.xlu0 %21
  %v23 = vrcp.pop 32.0
  %v24 = vmul.f32 32.0, %v23
  %v25 = vsub.f32 1.0, %v24
  %v26 = vmul.f32 %v23, %v25
  %v27 = vadd.f32 %v23, %v26
  %vm28 = vweird.f32 %v23
  %v29 = vsel %vm28, %v23, %v27
  %v30 = vmul.f32 %v19, %v29
  %v31 = vmul.f32 %v22, %v29
  %v32 = vsub.f32 %v14, %v30
  %v33 = vsub.f32 %v15, %v31
  %v34 = vmul.f32 %v32, %v32
  %v35 = vmul.f32 %v33, %v33
  %v36 = vsel %vm16, %v34, 0.0
  %37 = vadd.xlane.f32.xlu0 %v36
  %v38 = vpop.xlane.xlu0 %37
  %v39 = vsel %vm16, %v35, 0.0
  %40 = vadd.xlane.f32.xlu0 %v39
  %v41 = vpop.xlane.xlu0 %40
  %v42 = vmul.f32 %v38, %v29
  %v43 = vmul.f32 %v41, %v29
  %v44 = vadd.f32 %v42, 1e-05
  %v45 = vadd.f32 %v43, 1e-05
  %v46 = vrsqrt.pop %v44
  %v47 = vmul.f32 %v46, %v44
  %v48 = vmul.f32 %v47, %v46
  %v49 = vmul.f32 0.5, %v48
  %v50 = vsub.f32 1.5, %v49
  %v51 = vmul.f32 %v46, %v50
  %vm52 = vweird.f32 %v44
  %vm53 = vweird.f32 %v46
  %vm54 = vmor %vm52, %vm53
  %v55 = vsel %vm54, %v46, %v51
  %v56 = vrsqrt.pop %v45
  %v57 = vmul.f32 %v56, %v45
  %v58 = vmul.f32 %v57, %v56
  %v59 = vmul.f32 0.5, %v58
  %v60 = vsub.f32 1.5, %v59
  %v61 = vmul.f32 %v56, %v60
  %vm62 = vweird.f32 %v45
  %vm63 = vweird.f32 %v56
  %vm64 = vmor %vm62, %vm63
  %v65 = vsel %vm64, %v56, %v61
  %v66 = vmul.f32 %v32, %v55
  %v67 = vmul.f32 %v33, %v65
  %v68 = vld [vmem:[%s1] sm:$0x1]
  %v70 = vperm.slane %v68, 0
  %v72 = vmul.f32 %v66, %v70
  %v73 = vmul.f32 %v67, %v70
  %v74 = vld [vmem:[%s2] sm:$0x1]
  %v76 = vperm.slane %v74, 0
  %v78 = vadd.f32 %v72, %v76
  %v79 = vadd.f32 %v73, %v76
  %v80 = vmul.f32 %v78, 0.5
  %v81 = vmul.f32 %v79, 0.5
  %v82 = vmul.f32 %v78, 0.044715
  %v83 = vmul.f32 %v79, 0.044715
  %v84 = vmul.f32 %v82, %v78
  %v85 = vmul.f32 %v83, %v79
  %v86 = vmul.f32 %v84, %v78
  %v87 = vmul.f32 %v85, %v79
  %v88 = vadd.f32 %v78, %v86
  %v89 = vadd.f32 %v79, %v87
  %v90 = vmul.f32 %v88, 0.7978846
  %v91 = vmul.f32 %v89, 0.7978846
  %v92 = vtanh.pop %v90
  %v93 = vtanh.pop %v91
  %v94 = vadd.f32 %v92, 1.0
  %v95 = vadd.f32 %v93, 1.0
  %v96 = vmul.f32 %v80, %v94
  %v97 = vmul.f32 %v81, %v95
  %98 = vst.msk [vmem:[%s3] sm:$0xff] %vm16, %v96
  %99 = vst.msk [vmem:[%s3 + $0x8] sm:$0xff] %vm16, %v97
  // Predicated region
  $region14: #{speech_model_forward.26} parent=0 // pred_check
    _
  $region15: #{speech_model_forward.26} parent=0 // pred_check_branch
    %101 = sbr.rel (0) target = $region17
  $region16: #{speech_model_forward.26} parent=0 // pred_region
    _
  $region17: #{speech_model_forward.26} parent=0 // pred_fallthru
    _
  // Predicated region
  $region18: #{speech_model_forward.26} parent=0 // pred_check
    _
  $region19: #{speech_model_forward.26} parent=0 // pred_check_branch
    %103 = sbr.rel (0) target = $region21
  $region20: #{speech_model_forward.26} parent=0 // pred_region
    _
  $region21: #{speech_model_forward.26} parent=0 // pred_fallthru
    _

// kernel: speech_model_forward.25
$region0: #{speech_model_forward.25}
  #allocation0 [shape = 'u32[]', space=smem, size = 0x4, offset = 0x4, fixed_abs, tag = 'smem constant byte address 0x4 - core index']
  #allocation1 [shape = 'u32[72,128]{1,0:T(1,128)}', space=vmem, size = 0x9000, scoped, tag = 'internal scratch']
  %s0 = inlined_call_operand.vmem [shape: f32[16,256], index: 0, kind: input, shape index: {}]
  %s1 = inlined_call_operand.vmem [shape: f32[256,32], index: 1, kind: input, shape index: {}]
  %s2 = inlined_call_operand.vmem [shape: f32[1,32], index: 2, kind: input, shape index: {}]
  %s3 = inlined_call_operand.vmem [shape: f32[16,32], index: 3, kind: output, shape index: {}]
  %s4 = sld [smem:[#allocation0]]
  $region26: #{speech_model_forward.25} parent=0
    _
  %s6 = ssub.s32 1, %s4
  %s7 = scalar_select 0, %s6, %s4
  // Predicated region
  $region2: #{speech_model_forward.25} parent=0 // pred_check
    _
  $region3: #{speech_model_forward.25} parent=0 // pred_check_branch
    %9 = sbr.rel (0) target = $region5
  $region4: #{speech_model_forward.25} parent=0 // pred_region
    _
  $region5: #{speech_model_forward.25} parent=0 // pred_fallthru
    _
  // Predicated region
  $region6: #{speech_model_forward.25} parent=0 // pred_check
    _
  $region7: #{speech_model_forward.25} parent=0 // pred_check_branch
    %11 = sbr.rel (0) target = $region9
  $region8: #{speech_model_forward.25} parent=0 // pred_region
    _
  $region9: #{speech_model_forward.25} parent=0 // pred_fallthru
    _
  // Predicated region
  $region10: #{speech_model_forward.25} parent=0 // pred_check
    _
  $region11: #{speech_model_forward.25} parent=0 // pred_check_branch
    %13 = sbr.rel (0) target = $region13
  $region12: #{speech_model_forward.25} parent=0 // pred_region
    _
  $region13: #{speech_model_forward.25} parent=0 // pred_fallthru
    _
  %p14 = scmp.eq.s32.totalorder 0, 0
  // Predicated region
  $region14: #{speech_model_forward.25} parent=0 // pred_check
    %p15 = pneg %p14
  $region15: #{speech_model_forward.25} parent=0 // pred_check_branch
    %17 = sbr.rel (%p15) target = $region17
  $region16: #{speech_model_forward.25} parent=0 // pred_region
    %v18 = vld [vmem:[%s2] sm:$0x1]
    %v20 = vperm.slane %v18, 0
    %vm22 = vcmask 261120
    %23 = vst.msk [vmem:[%s3] sm:$0xff] %vm22, %v20
    %24 = vst.msk [vmem:[%s3 + $0x8] sm:$0xff] %vm22, %v20
  $region17: #{speech_model_forward.25} parent=0 // pred_fallthru
    _
  %v25 = vld [vmem:[%s3] sm:$0xff]
  %v26 = vld [vmem:[%s3 + $0x8] sm:$0xff]
  %v27 = vld [vmem:[%s0] sm:$0xff]
  %v28 = vld [vmem:[%s0 + $0x8] sm:$0xff]
  %v29 = vld [vmem:[%s0 + $0x10] sm:$0xff]
  %v30 = vld [vmem:[%s0 + $0x18] sm:$0xff]
  %v31 = vpack.c.bf16 %v29, %v27
  %v32 = vpack.c.bf16 %v30, %v28
  %v33 = vld [vmem:[%s1] sm:$0xff]
  %v34 = vld [vmem:[%s1 + $0x8] sm:$0xff]
  %v35 = vld [vmem:[%s1 + $0x10] sm:$0xff]
  %v36 = vld [vmem:[%s1 + $0x18] sm:$0xff]
  %v37 = vld [vmem:[%s1 + $0x20] sm:$0xff]
  %v38 = vld [vmem:[%s1 + $0x28] sm:$0xff]
  %v39 = vld [vmem:[%s1 + $0x30] sm:$0xff]
  %v40 = vld [vmem:[%s1 + $0x38] sm:$0xff]
  %v41 = vld [vmem:[%s1 + $0x40] sm:$0xff]
  %v42 = vld [vmem:[%s1 + $0x48] sm:$0xff]
  %v43 = vld [vmem:[%s1 + $0x50] sm:$0xff]
  %v44 = vld [vmem:[%s1 + $0x58] sm:$0xff]
  %v45 = vld [vmem:[%s1 + $0x60] sm:$0xff]
  %v46 = vld [vmem:[%s1 + $0x68] sm:$0xff]
  %v47 = vld [vmem:[%s1 + $0x70] sm:$0xff]
  %v48 = vld [vmem:[%s1 + $0x78] sm:$0xff]
  %v49 = vld [vmem:[%s1 + $0x80] sm:$0xff]
  %v50 = vld [vmem:[%s1 + $0x88] sm:$0xff]
  %v51 = vld [vmem:[%s1 + $0x90] sm:$0xff]
  %v52 = vld [vmem:[%s1 + $0x98] sm:$0xff]
  %v53 = vld [vmem:[%s1 + $0xa0] sm:$0xff]
  %v54 = vld [vmem:[%s1 + $0xa8] sm:$0xff]
  %v55 = vld [vmem:[%s1 + $0xb0] sm:$0xff]
  %v56 = vld [vmem:[%s1 + $0xb8] sm:$0xff]
  %v57 = vld [vmem:[%s1 + $0xc0] sm:$0xff]
  %v58 = vld [vmem:[%s1 + $0xc8] sm:$0xff]
  %v59 = vld [vmem:[%s1 + $0xd0] sm:$0xff]
  %v60 = vld [vmem:[%s1 + $0xd8] sm:$0xff]
  %v61 = vld [vmem:[%s1 + $0xe0] sm:$0xff]
  %v62 = vld [vmem:[%s1 + $0xe8] sm:$0xff]
  %v63 = vld [vmem:[%s1 + $0xf0] sm:$0xff]
  %v64 = vld [vmem:[%s1 + $0xf8] sm:$0xff]
  %v65 = vpack.c.bf16 %v34, %v33
  %v66 = vpack.c.bf16 %v36, %v35
  %v67 = vpack.c.bf16 %v38, %v37
  %v68 = vpack.c.bf16 %v40, %v39
  %v69 = vpack.c.bf16 %v42, %v41
  %v70 = vpack.c.bf16 %v44, %v43
  %v71 = vpack.c.bf16 %v46, %v45
  %v72 = vpack.c.bf16 %v48, %v47
  %v73 = vpack.c.bf16 %v50, %v49
  %v74 = vpack.c.bf16 %v52, %v51
  %v75 = vpack.c.bf16 %v54, %v53
  %v76 = vpack.c.bf16 %v56, %v55
  %v77 = vpack.c.bf16 %v58, %v57
  %v78 = vpack.c.bf16 %v60, %v59
  %v79 = vpack.c.bf16 %v62, %v61
  %v80 = vpack.c.bf16 %v64, %v63
  %81 = vmatpush.bf16.msra.mxu0 %v72
  %82 = vmatpush.bf16.msra.mxu0 %v71
  %83 = vmatpush.bf16.msra.mxu0 %v70
  %84 = vmatpush.bf16.msra.mxu0 %v69
  %85 = vmatpush.bf16.msra.mxu0 %v68
  %86 = vmatpush.bf16.msra.mxu0 %v67
  %87 = vmatpush.bf16.msra.mxu0 %v66
  %88 = vmatpush.bf16.msra.mxu0 %v65
  %89 = vmatmul.bf16.gmra.mxu0 %v31
  %v90 = vpop.f32.mrf.mxu0
  %v91 = vadd.f32 0.0, %v90
  %v92 = vpop.f32.mrf.mxu0
  %v93 = vadd.f32 0.0, %v92
  %94 = vdwg.mxu0
  %95 = vmatpush.bf16.msra.mxu0 %v80
  %96 = vmatpush.bf16.msra.mxu0 %v79
  %97 = vmatpush.bf16.msra.mxu0 %v78
  %98 = vmatpush.bf16.msra.mxu0 %v77
  %99 = vmatpush.bf16.msra.mxu0 %v76
  %100 = vmatpush.bf16.msra.mxu0 %v75
  %101 = vmatpush.bf16.msra.mxu0 %v74
  %102 = vmatpush.bf16.msra.mxu0 %v73
  %103 = vmatmul.bf16.gmra.mxu0 %v32
  %v104 = vpop.f32.mrf.mxu0
  %v105 = vadd.f32 %v91, %v104
  %v106 = vpop.f32.mrf.mxu0
  %v107 = vadd.f32 %v93, %v106
  %108 = vdwg.mxu0
  %v109 = vadd.f32 %v25, %v105
  %v110 = vadd.f32 %v26, %v107
  %vm111 = vcmask 261120
  %112 = vst.msk [vmem:[%s3] sm:$0xff] %vm111, %v109
  %113 = vst.msk [vmem:[%s3 + $0x8] sm:$0xff] %vm111, %v110
  // Predicated region
  $region18: #{speech_model_forward.25} parent=0 // pred_check
    _
  $region19: #{speech_model_forward.25} parent=0 // pred_check_branch
    %115 = sbr.rel (0) target = $region21
  $region20: #{speech_model_forward.25} parent=0 // pred_region
    _
  $region21: #{speech_model_forward.25} parent=0 // pred_fallthru
    _
  // Predicated region
  $region22: #{speech_model_forward.25} parent=0 // pred_check
    _
  $region23: #{speech_model_forward.25} parent=0 // pred_check_branch
    %117 = sbr.rel (0) target = $region25
  $region24: #{speech_model_forward.25} parent=0 // pred_region
    _
  $region25: #{speech_model_forward.25} parent=0 // pred_fallthru
    _

// kernel: speech_model_forward.27
$region0: #{speech_model_forward.27}
  #allocation0 [shape = 'u32[]', space=smem, size = 0x4, offset = 0x4, fixed_abs, tag = 'smem constant byte address 0x4 - core index']
  #allocation1 [shape = 'u32[72,128]{1,0:T(1,128)}', space=vmem, size = 0x9000, scoped, tag = 'internal scratch']
  #allocation2 [shape = 'f32[64,96]{1,0:T(8,128)}', space=vmem, size = 0x8000, scoped, tag = 'scratch operand']
  #allocation3 [shape = 'f32[8,32]{1,0:T(8,128)}', space=vmem, size = 0x1000, scoped, tag = 'scratch operand']
  %s0 = inlined_call_operand.vmem [shape: f32[64,32], index: 0, kind: input, shape index: {}]
  %s1 = inlined_call_operand.vmem [shape: f32[2,32,96], index: 1, kind: input, shape index: {}]
  %s2 = inlined_call_operand.vmem [shape: f32[2,1,96], index: 2, kind: input, shape index: {}]
  %s3 = inlined_call_operand.vmem [shape: f32[2,32,96], index: 3, kind: input, shape index: {}]
  %s4 = inlined_call_operand.vmem [shape: f32[2,1,96], index: 4, kind: input, shape index: {}]
  %s5 = inlined_call_operand.vmem [shape: f32[2,8,8,32], index: 5, kind: output, shape index: {}]
  %s6 = sld [smem:[#allocation0]]
  $region64: #{speech_model_forward.27} parent=0
    _
  %s8 = ssub.s32 1, %s6
  %s9 = scalar_select 0, %s8, %s6
  loop: start=0, step=1, limit=4
  $region2: #{speech_model_forward.27} parent=0 // loop_pre_header
    _
  $region3: #{speech_model_forward.27} parent=0 // loop_header
    %s11 = sphi 0, %s15
    %p12 = scmp.ge.s32.totalorder %s11, 4
    %s18 = sphi 0, %s30
    %s19 = sphi 0, %s26
    %s20 = sphi 0, %s18
    %s21 = sphi 0, %s19
    %s22 = sphi 0, %s20
    %s23 = sphi 0, %s21
    %s43 = sphi 0, %s45
    %s46 = sphi 0, %s43
    %s47 = sphi 0, %s46
    %s63 = sphi 0, %s47
    %s69 = sphi 0, %s71
    %s72 = sphi 0, %s69
    %s73 = sphi 0, %s72
    %s89 = sphi 0, %s73
    %s95 = sphi 0, %s97
    %s98 = sphi 0, %s95
    %s99 = sphi 0, %s98
    %s115 = sphi 0, %s99
    %s121 = sphi 0, %s123
    %s124 = sphi 0, %s121
    %s125 = sphi 0, %s124
    %s141 = sphi 0, %s125
    %s147 = sphi 0, %s149
    %s150 = sphi 0, %s147
    %s151 = sphi 0, %s150
    %s167 = sphi 0, %s151
    %s185 = sphi 0, %s187
    %s188 = sphi 0, %s185
    %s189 = sphi 0, %s188
    %s205 = sphi 0, %s189
  $region4: #{speech_model_forward.27} parent=0 // loop_header_branch
    %14 = sbr.rel (%p12) target = $region8
  $region5: #{speech_model_forward.27} parent=0 // loop_body
    %s16 = ssub.s32 %s11, 1
    %s17 = ssub.s32 %s11, 2
    %s24 = sadd.s32 1, %s19
    %p25 = scmp.ge.s32.totalorder %s24, 1
    %s26 = scalar_select %p25, 0, %s24
    %s27 = sadd.s32 1, %s18
    %s28 = scalar_select %p25, %s27, %s18
    %p29 = scmp.ge.s32.totalorder %s28, 2
    %s30 = scalar_select %p29, 0, %s28
    %s31 = ssub.s32 1, %s18
    %s32 = smul.u32 %s31, %s19
    %s33 = ssub.s32 0, %s19
    %s34 = smul.u32 %s18, %s33
    %s35 = sadd.s32 %s32, %s34
    %s36 = ssub.s32 1, %s30
    %s37 = smul.u32 %s36, %s26
    %s38 = ssub.s32 0, %s26
    %s39 = smul.u32 %s30, %s38
    %s40 = sadd.s32 %s37, %s39
    %s41 = ssub.s32 %s35, %s40
    %p42 = scmp.eq.s32.totalorder %s41, 0
    %s44 = sadd.s32 %s43, 1
    %s45 = scalar_select %p42, %s43, %s44
    %p48 = pneg %p42
    %p49 = scmp.eq.s32.totalorder %s11, 1
    %p50 = por %p48, %p49
    %p51 = scmp.ne.s32.totalorder %s43, %s46
    %p52 = scmp.eq.s32.totalorder %s11, 0
    %p53 = por %p51, %p52
    %p54 = scmp.ne.s32.totalorder %s43, %s46
    %p55 = scmp.eq.s32.totalorder %s16, 1
    %p56 = por %p54, %p55
    %p57 = scmp.ne.s32.totalorder %s46, %s47
    %p58 = scmp.eq.s32.totalorder %s16, 0
    %p59 = por %p57, %p58
    %p60 = scmp.ne.s32.totalorder %s46, %s47
    %p61 = scmp.eq.s32.totalorder %s17, 1
    %p62 = por %p60, %p61
    %p64 = scmp.ne.s32.totalorder %s47, %s63
    %p65 = scmp.eq.s32.totalorder %s17, 0
    %p66 = por %p64, %p65
    %s67 = ssub.s32 %s18, %s30
    %p68 = scmp.eq.s32.totalorder %s67, 0
    %s70 = sadd.s32 %s69, 1
    %s71 = scalar_select %p68, %s69, %s70
    %p74 = pneg %p68
    %p75 = scmp.eq.s32.totalorder %s11, 1
    %p76 = por %p74, %p75
    %p77 = scmp.ne.s32.totalorder %s69, %s72
    %p78 = scmp.eq.s32.totalorder %s11, 0
    %p79 = por %p77, %p78
    %p80 = scmp.ne.s32.totalorder %s69, %s72
    %p81 = scmp.eq.s32.totalorder %s16, 1
    %p82 = por %p80, %p81
    %p83 = scmp.ne.s32.totalorder %s72, %s73
    %p84 = scmp.eq.s32.totalorder %s16, 0
    %p85 = por %p83, %p84
    %p86 = scmp.ne.s32.totalorder %s72, %s73
    %p87 = scmp.eq.s32.totalorder %s17, 1
    %p88 = por %p86, %p87
    %p90 = scmp.ne.s32.totalorder %s73, %s89
    %p91 = scmp.eq.s32.totalorder %s17, 0
    %p92 = por %p90, %p91
    %s93 = ssub.s32 %s18, %s30
    %p94 = scmp.eq.s32.totalorder %s93, 0
    %s96 = sadd.s32 %s95, 1
    %s97 = scalar_select %p94, %s95, %s96
    %p100 = pneg %p94
    %p101 = scmp.eq.s32.totalorder %s11, 1
    %p102 = por %p100, %p101
    %p103 = scmp.ne.s32.totalorder %s95, %s98
    %p104 = scmp.eq.s32.totalorder %s11, 0
    %p105 = por %p103, %p104
    %p106 = scmp.ne.s32.totalorder %s95, %s98
    %p107 = scmp.eq.s32.totalorder %s16, 1
    %p108 = por %p106, %p107
    %p109 = scmp.ne.s32.totalorder %s98, %s99
    %p110 = scmp.eq.s32.totalorder %s16, 0
    %p111 = por %p109, %p110
    %p112 = scmp.ne.s32.totalorder %s98, %s99
    %p113 = scmp.eq.s32.totalorder %s17, 1
    %p114 = por %p112, %p113
    %p116 = scmp.ne.s32.totalorder %s99, %s115
    %p117 = scmp.eq.s32.totalorder %s17, 0
    %p118 = por %p116, %p117
    %s119 = ssub.s32 %s18, %s30
    %p120 = scmp.eq.s32.totalorder %s119, 0
    %s122 = sadd.s32 %s121, 1
    %s123 = scalar_select %p120, %s121, %s122
    %p126 = pneg %p120
    %p127 = scmp.eq.s32.totalorder %s11, 1
    %p128 = por %p126, %p127
    %p129 = scmp.ne.s32.totalorder %s121, %s124
    %p130 = scmp.eq.s32.totalorder %s11, 0
    %p131 = por %p129, %p130
    %p132 = scmp.ne.s32.totalorder %s121, %s124
    %p133 = scmp.eq.s32.totalorder %s16, 1
    %p134 = por %p132, %p133
    %p135 = scmp.ne.s32.totalorder %s124, %s125
    %p136 = scmp.eq.s32.totalorder %s16, 0
    %p137 = por %p135, %p136
    %p138 = scmp.ne.s32.totalorder %s124, %s125
    %p139 = scmp.eq.s32.totalorder %s17, 1
    %p140 = por %p138, %p139
    %p142 = scmp.ne.s32.totalorder %s125, %s141
    %p143 = scmp.eq.s32.totalorder %s17, 0
    %p144 = por %p142, %p143
    %s145 = ssub.s32 %s18, %s30
    %p146 = scmp.eq.s32.totalorder %s145, 0
    %s148 = sadd.s32 %s147, 1
    %s149 = scalar_select %p146, %s147, %s148
    %p152 = pneg %p146
    %p153 = scmp.eq.s32.totalorder %s11, 1
    %p154 = por %p152, %p153
    %p155 = scmp.ne.s32.totalorder %s147, %s150
    %p156 = scmp.eq.s32.totalorder %s11, 0
    %p157 = por %p155, %p156
    %p158 = scmp.ne.s32.totalorder %s147, %s150
    %p159 = scmp.eq.s32.totalorder %s16, 1
    %p160 = por %p158, %p159
    %p161 = scmp.ne.s32.totalorder %s150, %s151
    %p162 = scmp.eq.s32.totalorder %s16, 0
    %p163 = por %p161, %p162
    %p164 = scmp.ne.s32.totalorder %s150, %s151
    %p165 = scmp.eq.s32.totalorder %s17, 1
    %p166 = por %p164, %p165
    %p168 = scmp.ne.s32.totalorder %s151, %s167
    %p169 = scmp.eq.s32.totalorder %s17, 0
    %p170 = por %p168, %p169
    %s171 = ssub.s32 1, %s18
    %s172 = smul.u32 %s171, %s19
    %s173 = ssub.s32 0, %s19
    %s174 = smul.u32 %s18, %s173
    %s175 = sadd.s32 %s172, %s174
    %s176 = ssub.s32 1, %s30
    %s177 = smul.u32 %s176, %s26
    %s178 = ssub.s32 0, %s26
    %s179 = smul.u32 %s30, %s178
    %s180 = sadd.s32 %s177, %s179
    %s181 = ssub.s32 %s18, %s30
    %s182 = ssub.s32 %s175, %s180
    %s183 = sor.u32 %s181, %s182
    %p184 = scmp.eq.s32.totalorder %s183, 0
    %s186 = sadd.s32 %s185, 1
    %s187 = scalar_select %p184, %s185, %s186
    %p190 = pneg %p184
    %p191 = scmp.eq.s32.totalorder %s11, 1
    %p192 = por %p190, %p191
    %p193 = scmp.ne.s32.totalorder %s185, %s188
    %p194 = scmp.eq.s32.totalorder %s11, 0
    %p195 = por %p193, %p194
    %p196 = scmp.ne.s32.totalorder %s185, %s188
    %p197 = scmp.eq.s32.totalorder %s16, 1
    %p198 = por %p196, %p197
    %p199 = scmp.ne.s32.totalorder %s188, %s189
    %p200 = scmp.eq.s32.totalorder %s16, 0
    %p201 = por %p199, %p200
    %p202 = scmp.ne.s32.totalorder %s188, %s189
    %p203 = scmp.eq.s32.totalorder %s17, 1
    %p204 = por %p202, %p203
    %p206 = scmp.ne.s32.totalorder %s189, %s205
    %p207 = scmp.eq.s32.totalorder %s17, 0
    %p208 = por %p206, %p207
    %p209 = scmp.le.s32.totalorder 1, %s11
    %p210 = scmp.lt.s32.totalorder %s11, 3
    %p211 = pnand %p209, %p210
    %p212 = pneg %p211
    // Predicated region
    $region9: #{speech_model_forward.27} parent=5 // pred_check
      _
    $region10: #{speech_model_forward.27} parent=5 // pred_check_branch
      %214 = sbr.rel (%p211) target = $region12
    $region11: #{speech_model_forward.27} parent=5 // pred_region
      %s215 = ssub.s32 %s11, 1
    $region12: #{speech_model_forward.27} parent=5 // pred_fallthru
      _
    %p216 = scmp.lt.s32.totalorder %s11, 2
    // Predicated region
    $region13: #{speech_model_forward.27} parent=5 // pred_check
      %p217 = pneg %p216
    $region14: #{speech_model_forward.27} parent=5 // pred_check_branch
      %219 = sbr.rel (%p217) target = $region16
    $region15: #{speech_model_forward.27} parent=5 // pred_region
      // Predicated region
      $region17: #{speech_model_forward.27} parent=15 // pred_check
        %p220 = pneg %p53
      $region18: #{speech_model_forward.27} parent=15 // pred_check_branch
        %222 = sbr.rel (%p220) target = $region20
      $region19: #{speech_model_forward.27} parent=15 // pred_region
        %s223 = ssub.s32 1, %s18
        %s224 = smul.u32 %s223, %s19
        %s225 = ssub.s32 0, %s19
        %s226 = smul.u32 %s18, %s225
        %s227 = sadd.s32 %s224, %s226
        %s228 = smul.u32 8, %s227
        %p229 = scmp.lt.s32.totalorder %s228, 7
        %s230 = scalar_select %p229, %s228, 7
        %s231 = smul.addr %s230, 8
        %s232 = scalar_lea.vmem %s0, %s231
        %s233 = ssub.s32 1, %s18
        %s234 = smul.u32 %s233, %s19
        %s235 = ssub.s32 0, %s19
        %s236 = smul.u32 %s18, %s235
        %s237 = sadd.s32 %s234, %s236
        %s238 = smul.u32 8, %s237
      $region20: #{speech_model_forward.27} parent=15 // pred_fallthru
        _
      // Predicated region
      $region21: #{speech_model_forward.27} parent=15 // pred_check
        %p239 = pneg %p79
      $region22: #{speech_model_forward.27} parent=15 // pred_check_branch
        %241 = sbr.rel (%p239) target = $region24
      $region23: #{speech_model_forward.27} parent=15 // pred_region
        %p242 = scmp.lt.s32.totalorder %s18, 1
        %s243 = scalar_select %p242, %s18, 1
        %s244 = smul.addr %s243, 4
        %s245 = smul.addr %s244, 8
        %s246 = scalar_lea.vmem %s1, %s245
      $region24: #{speech_model_forward.27} parent=15 // pred_fallthru
        _
      // Predicated region
      $region25: #{speech_model_forward.27} parent=15 // pred_check
        %p247 = pneg %p105
      $region26: #{speech_model_forward.27} parent=15 // pred_check_branch
        %249 = sbr.rel (%p247) target = $region28
      $region27: #{speech_model_forward.27} parent=15 // pred_region
        %p250 = scmp.lt.s32.totalorder %s18, 1
        %s251 = scalar_select %p250, %s18, 1
        %s252 = scalar_lea.vmem %s2, %s251
      $region28: #{speech_model_forward.27} parent=15 // pred_fallthru
        _
      // Predicated region
      $region29: #{speech_model_forward.27} parent=15 // pred_check
        %p253 = pneg %p131
      $region30: #{speech_model_forward.27} parent=15 // pred_check_branch
        %255 = sbr.rel (%p253) target = $region32
      $region31: #{speech_model_forward.27} parent=15 // pred_region
        %p256 = scmp.lt.s32.totalorder %s18, 1
        %s257 = scalar_select %p256, %s18, 1
        %s258 = smul.addr %s257, 4
        %s259 = smul.addr %s258, 8
        %s260 = scalar_lea.vmem %s3, %s259
      $region32: #{speech_model_forward.27} parent=15 // pred_fallthru
        _
      // Predicated region
      $region33: #{speech_model_forward.27} parent=15 // pred_check
        %p261 = pneg %p157
      $region34: #{speech_model_forward.27} parent=15 // pred_check_branch
        %263 = sbr.rel (%p261) target = $region36
      $region35: #{speech_model_forward.27} parent=15 // pred_region
        %p264 = scmp.lt.s32.totalorder %s18, 1
        %s265 = scalar_select %p264, %s18, 1
        %s266 = scalar_lea.vmem %s4, %s265
      $region36: #{speech_model_forward.27} parent=15 // pred_fallthru
        _
    $region16: #{speech_model_forward.27} parent=5 // pred_fallthru
      _
    %p267 = scmp.le.s32.totalorder 1, %s11
    %p268 = scmp.lt.s32.totalorder %s11, 3
    %p269 = pnand %p267, %p268
    %p270 = pneg %p269
    // Predicated region
    $region37: #{speech_model_forward.27} parent=5 // pred_check
      _
    $region38: #{speech_model_forward.27} parent=5 // pred_check_branch
      %272 = sbr.rel (%p269) target = $region40
    $region39: #{speech_model_forward.27} parent=5 // pred_region
      %s273 = ssub.s32 %s11, 1
      %s274 = ssub.s32 1, %s20
      %s275 = smul.u32 %s274, %s21
      %s276 = ssub.s32 0, %s21
      %s277 = smul.u32 %s20, %s276
      %s278 = sadd.s32 %s275, %s277
      %s279 = smul.u32 8, %s278
      %p280 = scmp.lt.s32.totalorder %s279, 7
      %s281 = scalar_select %p280, %s279, 7
      %s282 = smul.addr %s281, 8
      %s283 = scalar_lea.vmem %s0, %s282
      %p284 = pneg %p59
      %p285 = pneg %p56
      %p286 = scmp.lt.s32.totalorder %s20, 1
      %s287 = scalar_select %p286, %s20, 1
      %s288 = smul.addr %s287, 4
      %s289 = smul.addr %s288, 8
      %s290 = scalar_lea.vmem %s1, %s289
      %p291 = pneg %p85
      %p292 = pneg %p82
      %p293 = scmp.lt.s32.totalorder %s20, 1
      %s294 = scalar_select %p293, %s20, 1
      %s295 = scalar_lea.vmem %s2, %s294
      %p296 = pneg %p111
      %p297 = pneg %p108
      %p298 = scmp.lt.s32.totalorder %s20, 1
      %s299 = scalar_select %p298, %s20, 1
      %s300 = smul.addr %s299, 4
      %s301 = smul.addr %s300, 8
      %s302 = scalar_lea.vmem %s3, %s301
      %p303 = pneg %p137
      %p304 = pneg %p134
      %p305 = scmp.lt.s32.totalorder %s20, 1
      %s306 = scalar_select %p305, %s20, 1
      %s307 = scalar_lea.vmem %s4, %s306
      %p308 = pneg %p163
      %p309 = pneg %p160
      %p310 = pneg %p201
      %p311 = pneg %p198
      %s312 = ssub.s32 1, %s20
      %s313 = smul.u32 %s312, %s21
      %s314 = ssub.s32 0, %s21
      %s315 = smul.u32 %s20, %s314
      %s316 = sadd.s32 %s313, %s315
      %s317 = smul.u32 8, %s316
      %p318 = scmp.lt.s32.totalorder %s20, 1
      %s319 = scalar_select %p318, %s20, 1
      %p320 = scmp.lt.s32.totalorder %s317, 7
      %s321 = scalar_select %p320, %s317, 7
      %s322 = smul.addr %s319, 8
      %s323 = sadd.s32 %s321, %s322
      %s324 = smul.addr %s323, 8
      %s325 = scalar_lea.vmem %s5, %s324
      %s326 = ssub.s32 1, %s20
      %s327 = smul.u32 %s326, %s21
      %s328 = ssub.s32 0, %s21
      %s329 = smul.u32 %s20, %s328
      %s330 = sadd.s32 %s327, %s329
      %s331 = smul.u32 8, %s330
      %p332 = scmp.lt.s32.totalorder %s331, 7
      %s333 = scalar_select %p332, %s331, 7
      %s334 = smul.addr %s333, 8
      %s335 = scalar_lea.vmem %s0, %s334
      %s336 = ssub.s32 1, %s20
      %s337 = smul.u32 %s336, %s21
      %s338 = ssub.s32 0, %s21
      %s339 = smul.u32 %s20, %s338
      %s340 = sadd.s32 %s337, %s339
      %s341 = smul.u32 8, %s340
      %p342 = scmp.lt.s32.totalorder %s20, 1
      %s343 = scalar_select %p342, %s20, 1
      %s344 = smul.addr %s343, 4
      %s345 = smul.addr %s344, 8
      %s346 = scalar_lea.vmem %s1, %s345
      %p347 = scmp.lt.s32.totalorder %s20, 1
      %s348 = scalar_select %p347, %s20, 1
      %s349 = scalar_lea.vmem %s2, %s348
      %p350 = scmp.lt.s32.totalorder %s20, 1
      %s351 = scalar_select %p350, %s20, 1
      %s352 = smul.addr %s351, 4
      %s353 = smul.addr %s352, 8
      %s354 = scalar_lea.vmem %s3, %s353
      %p355 = scmp.lt.s32.totalorder %s20, 1
      %s356 = scalar_select %p355, %s20, 1
      %s357 = scalar_lea.vmem %s4, %s356
      %s358 = ssub.s32 1, %s20
      %s359 = smul.u32 %s358, %s21
      %s360 = ssub.s32 0, %s21
      %s361 = smul.u32 %s20, %s360
      %s362 = sadd.s32 %s359, %s361
      %s363 = smul.u32 8, %s362
      %p364 = scmp.lt.s32.totalorder %s20, 1
      %s365 = scalar_select %p364, %s20, 1
      %p366 = scmp.lt.s32.totalorder %s363, 7
      %s367 = scalar_select %p366, %s363, 7
      %s368 = smul.addr %s365, 8
      %s369 = sadd.s32 %s367, %s368
      %s370 = smul.addr %s369, 8
      %s371 = scalar_lea.vmem %s5, %s370
      %s372 = ssub.s32 1, %s20
      %s373 = smul.u32 %s372, %s21
      %s374 = ssub.s32 0, %s21
      %s375 = smul.u32 %s20, %s374
      %s376 = sadd.s32 %s373, %s375
      %s377 = smul.u32 8, %s376
      %s379 = ssub.s32 1, %s20
      %s380 = smul.u32 %s379, %s21
      %s381 = ssub.s32 0, %s21
      %s382 = smul.u32 %s20, %s381
      %s383 = sadd.s32 %s380, %s382
      %p384 = scmp.eq.s32.totalorder %s21, 0
      // Predicated region
      $region41: #{speech_model_forward.27} parent=39 // pred_check
        %p385 = pneg %p384
      $region42: #{speech_model_forward.27} parent=39 // pred_check_branch
        %387 = sbr.rel (%p385) target = $region44
      $region43: #{speech_model_forward.27} parent=39 // pred_region
        %vm388 = vcmask 261120
        %389 = vst.msk [vmem:[#allocation3] sm:$0xff] %vm388, 0.0
      $region44: #{speech_model_forward.27} parent=39 // pred_fallthru
        _
      %v390 = vld [vmem:[%s335] sm:$0xff]
      %v391 = vld [vmem:[%s335 + $0x8] sm:$0xff]
      %v392 = vld [vmem:[%s335 + $0x10] sm:$0xff]
      %v393 = vld [vmem:[%s335 + $0x18] sm:$0xff]
      %v394 = vld [vmem:[%s335 + $0x20] sm:$0xff]
      %v395 = vld [vmem:[%s335 + $0x28] sm:$0xff]
      %v396 = vld [vmem:[%s335 + $0x30] sm:$0xff]
      %v397 = vld [vmem:[%s335 + $0x38] sm:$0xff]
      %v398 = vpack.c.bf16 %v391, %v390
      %v399 = vpack.c.bf16 %v393, %v392
      %v400 = vpack.c.bf16 %v395, %v394
      %v401 = vpack.c.bf16 %v397, %v396
      %v402 = vld [vmem:[%s346] sm:$0xff]
      %v403 = vld [vmem:[%s346 + $0x8] sm:$0xff]
      %v404 = vld [vmem:[%s346 + $0x10] sm:$0xff]
      %v405 = vld [vmem:[%s346 + $0x18] sm:$0xff]
      %v406 = vpack.c.bf16 %v403, %v402
      %v407 = vpack.c.bf16 %v405, %v404
      %v408 = vld [vmem:[%s349] sm:$0x1]
      %v410 = vperm.slane %v408, 0
      %vm412 = vcmask 261120
      %v414 = vsel %vm412, %v398, 0
      %v417 = vsel %vm412, %v399, 0
      %v420 = vsel %vm412, %v400, 0
      %v423 = vsel %vm412, %v401, 0
      %425 = vmatpush.bf16.msra.mxu0 0
      %426 = vmatpush.bf16.msra.mxu0 0
      %427 = vmatpush.bf16.msra.mxu0 0
      %428 = vmatpush.bf16.msra.mxu0 0
      %429 = vmatpush.bf16.msra.mxu0 0
      %430 = vmatpush.bf16.msra.mxu0 0
      %431 = vmatpush.bf16.msra.mxu0 %v407
      %432 = vmatpush.bf16.msra.mxu0 %v406
      %433 = vmatmul.bf16.gmra.mxu0 %v414
      %v434 = vpop.f32.mrf.mxu0
      %v435 = vadd.f32 %v410, %v434
      %v436 = vpop.f32.mrf.mxu0
      %v437 = vadd.f32 %v410, %v436
      %438 = vmatmul.bf16.gmra.mxu0 %v417
      %v439 = vpop.f32.mrf.mxu0
      %v440 = vadd.f32 %v410, %v439
      %v441 = vpop.f32.mrf.mxu0
      %v442 = vadd.f32 %v410, %v441
      %443 = vmatmul.bf16.gmra.mxu0 %v420
      %v444 = vpop.f32.mrf.mxu0
      %v445 = vadd.f32 %v410, %v444
      %v446 = vpop.f32.mrf.mxu0
      %v447 = vadd.f32 %v410, %v446
      %448 = vmatmul.bf16.gmra.mxu0 %v423
      %v449 = vpop.f32.mrf.mxu0
      %v450 = vadd.f32 %v410, %v449
      %v451 = vpop.f32.mrf.mxu0
      %v452 = vadd.f32 %v410, %v451
      %453 = vdwg.mxu0
      %vm454 = vcmask 785408
      %455 = vst.msk [vmem:[#allocation2] sm:$0xff] %vm454, %v435
      %456 = vst.msk [vmem:[#allocation2 + $0x8] sm:$0xff] %vm454, %v437
      %457 = vst.msk [vmem:[#allocation2 + $0x10] sm:$0xff] %vm454, %v440
      %458 = vst.msk [vmem:[#allocation2 + $0x18] sm:$0xff] %vm454, %v442
      %459 = vst.msk [vmem:[#allocation2 + $0x20] sm:$0xff] %vm454, %v445
      %460 = vst.msk [vmem:[#allocation2 + $0x28] sm:$0xff] %vm454, %v447
      %461 = vst.msk [vmem:[#allocation2 + $0x30] sm:$0xff] %vm454, %v450
      %462 = vst.msk [vmem:[#allocation2 + $0x38] sm:$0xff] %vm454, %v452
      %v463 = vld [vmem:[%s354] sm:$0xff]
      %v464 = vld [vmem:[%s354 + $0x8] sm:$0xff]
      %v465 = vld [vmem:[%s354 + $0x10] sm:$0xff]
      %v466 = vld [vmem:[%s354 + $0x18] sm:$0xff]
      %v467 = vpack.c.bf16 %v464, %v463
      %v468 = vpack.c.bf16 %v466, %v465
      %v469 = vld [vmem:[%s357] sm:$0x1]
      %v470 = vld [vmem:[#allocation3] sm:$0xff]
      loop: start=0, step=1, limit=8
      $region45: #{speech_model_forward.27} parent=39 // loop_pre_header
        _
      $region46: #{speech_model_forward.27} parent=39 // loop_header
        %s472 = sphi 0, %s476
        %p473 = scmp.ge.s32.totalorder %s472, 8
        %v477 = vphi %v470, %v556
      $region47: #{speech_model_forward.27} parent=39 // loop_header_branch
        %475 = sbr.rel (%p473) target = $region51
      $region48: #{speech_model_forward.27} parent=39 // loop_body
        %p478 = scmp.eq.s32.totalorder %s20, 0
        %s479 = ssub.s32 7, %s472
        %s480 = scalar_select %p478, %s472, %s479
        %s481 = smul.u32 %s480, 8
        %s482 = scalar_lea.vmem [#allocation2], %s481
        %v483 = vld [vmem:[%s482] sm:$0xff]
        %v484 = vpack.c.bf16 %v477, %v477
        %v486 = vperm.slane %v469, 0
        %v489 = vsel %vm412, %v484, 0
        %491 = vmatpush.bf16.msra.mxu0 0
        %492 = vmatpush.bf16.msra.mxu0 0
        %493 = vmatpush.bf16.msra.mxu0 0
        %494 = vmatpush.bf16.msra.mxu0 0
        %495 = vmatpush.bf16.msra.mxu0 0
        %496 = vmatpush.bf16.msra.mxu0 0
        %497 = vmatpush.bf16.msra.mxu0 %v468
        %498 = vmatpush.bf16.msra.mxu0 %v467
        %499 = vmatmul.bf16.gmra.mxu0 %v489
        %v500 = vpop.f32.mrf.mxu0
        %v501 = vadd.f32 %v486, %v500
        %v502 = vpop.f32.mrf.mxu0
        %503 = vdwg.mxu0
        %v504 = vadd.f32 %v483, %v501
        %v505 = vxor.u32 %v504, 2147483648
        %v506 = vmul.f32 %v505, 1.442695
        %v507 = vpow.pop %v506
        %v508 = vadd.f32 %v507, 1.0
        %v509 = vrcp.pop %v508
        %v510 = vmul.f32 %v508, %v509
        %v511 = vsub.f32 1.0, %v510
        %v512 = vmul.f32 %v509, %v511
        %v513 = vadd.f32 %v509, %v512
        %vm514 = vweird.f32 %v508
        %vm515 = vweird.f32 %v509
        %vm516 = vmor %vm514, %vm515
        %v517 = vsel %vm516, %v509, %v513
        %v518 = vand.u32 2147483647, %v508
        %vm519 = vcmp.eq.f32.partialorder %v518, 8.507059e+37
        %v520 = vand.u32 %v508, 2147483648
        %v521 = vor.u32 1.1754944e-38, %v520
        %v522 = vsel %vm519, %v521, %v517
        %v523 = vmul.f32 1.0, %v522
        %525 = vrot.lane.b32.xlu0 %v501, 64
        %v526 = vpop.permute.xlu0 %525
        %v528 = vmul.f32 %v523, %v526
        %530 = vrot.lane.b32.xlu0 %v528, 64
        %v531 = vpop.permute.xlu0 %530
        %v533 = vadd.f32 %v483, %v531
        %v534 = vtanh.pop %v533
        %v535 = vsub.f32 1.0, %v523
        %537 = vrot.lane.b32.xlu0 %v534, 96
        %v538 = vpop.permute.xlu0 %537
        %v540 = vmul.f32 %v535, %v538
        %542 = vrot.lane.b32.xlu0 %v477, 32
        %v543 = vpop.permute.xlu0 %542
        %v545 = vmul.f32 %v523, %v543
        %v546 = vadd.f32 %v540, %v545
        %s547 = smul.u32 %s383, 8
        %s548 = sadd.s32 %s547, %s480
        %p549 = scmp.lt.s32.totalorder %s548, 8
        %s550 = scalar_select %p549, 1, 0
        %v551 = vstv %s550
        %vm552 = vcmp.eq.s32.totalorder %v551, 1
        %v553 = vsel %vm552, %v546, %v543
        %555 = vrot.lane.b32.xlu0 %v553, 96
        %v556 = vpop.permute.xlu0 %555
        %s558 = scalar_lea.vmem %s371, %s481
        %559 = vst.msk [vmem:[%s558] sm:$0xff] %vm412, %v556
      $region49: #{speech_model_forward.27} parent=39 // loop_footer
        %s476 = sadd.s32 1, %s472
      $region50: #{speech_model_forward.27} parent=39 // loop_footer_branch
        %471 = sbr.rel target = $region46
      $region51: #{speech_model_forward.27} parent=39 // loop_exit
        _
      %560 = vst.msk [vmem:[#allocation3] sm:$0xff] %vm412, %v477
      %s561 = ssub.s32 1, %s20
      %s562 = smul.u32 %s561, %s21
      %s563 = ssub.s32 0, %s21
      %s564 = smul.u32 %s20, %s563
      %s565 = sadd.s32 %s562, %s564
      %s566 = smul.u32 8, %s565
      %p567 = scmp.lt.s32.totalorder %s20, 1
      %s568 = scalar_select %p567, %s20, 1
      %p569 = scmp.lt.s32.totalorder %s566, 7
      %s570 = scalar_select %p569, %s566, 7
      %s571 = smul.addr %s568, 8
      %s572 = sadd.s32 %s570, %s571
      %s573 = smul.addr %s572, 8
      %s574 = scalar_lea.vmem %s5, %s573
      // Predicated region
      $region52: #{speech_model_forward.27} parent=39 // pred_check
        %p575 = pneg %p198
      $region53: #{speech_model_forward.27} parent=39 // pred_check_branch
        %577 = sbr.rel (%p575) target = $region55
      $region54: #{speech_model_forward.27} parent=39 // pred_region
        %s578 = ssub.s32 1, %s20
        %s579 = smul.u32 %s578, %s21
        %s580 = ssub.s32 0, %s21
        %s581 = smul.u32 %s20, %s580
        %s582 = sadd.s32 %s579, %s581
        %s583 = smul.u32 8, %s582
      $region55: #{speech_model_forward.27} parent=39 // pred_fallthru
        _
    $region40: #{speech_model_forward.27} parent=5 // pred_fallthru
      _
    %p584 = scmp.le.s32.totalorder 2, %s11
    // Predicated region
    $region56: #{speech_model_forward.27} parent=5 // pred_check
      %p585 = pneg %p584
    $region57: #{speech_model_forward.27} parent=5 // pred_check_branch
      %587 = sbr.rel (%p585) target = $region59
    $region58: #{speech_model_forward.27} parent=5 // pred_region
      %s588 = ssub.s32 %s11, 2
      // Predicated region
      $region60: #{speech_model_forward.27} parent=58 // pred_check
        %p589 = pneg %p204
      $region61: #{speech_model_forward.27} parent=58 // pred_check_branch
        %591 = sbr.rel (%p589) target = $region63
      $region62: #{speech_model_forward.27} parent=58 // pred_region
        %s592 = ssub.s32 1, %s22
        %s593 = smul.u32 %s592, %s23
        %s594 = ssub.s32 0, %s23
        %s595 = smul.u32 %s22, %s594
        %s596 = sadd.s32 %s593, %s595
        %s597 = smul.u32 8, %s596
        %p598 = scmp.lt.s32.totalorder %s22, 1
        %s599 = scalar_select %p598, %s22, 1
        %p600 = scmp.lt.s32.totalorder %s597, 7
        %s601 = scalar_select %p600, %s597, 7
        %s602 = smul.addr %s599, 8
        %s603 = sadd.s32 %s601, %s602
        %s604 = smul.addr %s603, 8
        %s605 = scalar_lea.vmem %s5, %s604
      $region63: #{speech_model_forward.27} parent=58 // pred_fallthru
        _
    $region59: #{speech_model_forward.27} parent=5 // pred_fallthru
      _
  $region6: #{speech_model_forward.27} parent=0 // loop_footer
    %s15 = sadd.s32 1, %s11
  $region7: #{speech_model_forward.27} parent=0 // loop_footer_branch
    %10 = sbr.rel target = $region3
  $region8: #{speech_model_forward.27} parent=0 // loop_exit
    _

// kernel: speech_model_forward.28
$region0: #{speech_model_forward.28}
  #allocation0 [shape = 'u32[]', space=smem, size = 0x4, offset = 0x4, fixed_abs, tag = 'smem constant byte address 0x4 - core index']
  #allocation1 [shape = 'u32[72,128]{1,0:T(1,128)}', space=vmem, size = 0x9000, scoped, tag = 'internal scratch']
  %s0 = inlined_call_operand.vmem [shape: f32[16,64], index: 0, kind: input, shape index: {}]
  %s1 = inlined_call_operand.vmem [shape: f32[1,64], index: 1, kind: input, shape index: {}]
  %s2 = inlined_call_operand.vmem [shape: f32[1,64], index: 2, kind: input, shape index: {}]
  %s3 = inlined_call_operand.vmem [shape: f32[16,64], index: 3, kind: output, shape index: {}]
  %s4 = sld [smem:[#allocation0]]
  $region22: #{speech_model_forward.28} parent=0
    _
  %s6 = ssub.s32 1, %s4
  %s7 = scalar_select 0, %s6, %s4
  // Predicated region
  $region2: #{speech_model_forward.28} parent=0 // pred_check
    _
  $region3: #{speech_model_forward.28} parent=0 // pred_check_branch
    %9 = sbr.rel (0) target = $region5
  $region4: #{speech_model_forward.28} parent=0 // pred_region
    _
  $region5: #{speech_model_forward.28} parent=0 // pred_fallthru
    _
  // Predicated region
  $region6: #{speech_model_forward.28} parent=0 // pred_check
    _
  $region7: #{speech_model_forward.28} parent=0 // pred_check_branch
    %11 = sbr.rel (0) target = $region9
  $region8: #{speech_model_forward.28} parent=0 // pred_region
    _
  $region9: #{speech_model_forward.28} parent=0 // pred_fallthru
    _
  // Predicated region
  $region10: #{speech_model_forward.28} parent=0 // pred_check
    _
  $region11: #{speech_model_forward.28} parent=0 // pred_check_branch
    %13 = sbr.rel (0) target = $region13
  $region12: #{speech_model_forward.28} parent=0 // pred_region
    _
  $region13: #{speech_model_forward.28} parent=0 // pred_fallthru
    _
  %v14 = vld [vmem:[%s0] sm:$0xff]
  %v15 = vld [vmem:[%s0 + $0x8] sm:$0xff]
  %vm16 = vcmask 523264
  %v17 = vsel %vm16, %v14, 0.0
  %18 = vadd.xlane.f32.xlu0 %v17
  %v19 = vpop.xlane.xlu0 %18
  %v20 = vsel %vm16, %v15, 0.0
  %21 = vadd.xlane.f32.xlu0 %v20
  %v22 = vpop.xlane.xlu0 %21
  %v23 = vrcp.pop 64.0
  %v24 = vmul.f32 64.0, %v23
  %v25 = vsub.f32 1.0, %v24
  %v26 = vmul.f32 %v23, %v25
  %v27 = vadd.f32 %v23, %v26
  %vm28 = vweird.f32 %v23
  %v29 = vsel %vm28, %v23, %v27
  %v30 = vmul.f32 %v19, %v29
  %v31 = vmul.f32 %v22, %v29
  %v32 = vsub.f32 %v14, %v30
  %v33 = vsub.f32 %v15, %v31
  %v34 = vmul.f32 %v32, %v32
  %v35 = vmul.f32 %v33, %v33
  %v36 = vsel %vm16, %v34, 0.0
  %37 = vadd.xlane.f32.xlu0 %v36
  %v38 = vpop.xlane.xlu0 %37
  %v39 = vsel %vm16, %v35, 0.0
  %40 = vadd.xlane.f32.xlu0 %v39
  %v41 = vpop.xlane.xlu0 %40
  %v42 = vmul.f32 %v38, %v29
  %v43 = vmul.f32 %v41, %v29
  %v44 = vadd.f32 %v42, 1e-05
  %v45 = vadd.f32 %v43, 1e-05
  %v46 = vrsqrt.pop %v44
  %v47 = vmul.f32 %v46, %v44
  %v48 = vmul.f32 %v47, %v46
  %v49 = vmul.f32 0.5, %v48
  %v50 = vsub.f32 1.5, %v49
  %v51 = vmul.f32 %v46, %v50
  %vm52 = vweird.f32 %v44
  %vm53 = vweird.f32 %v46
  %vm54 = vmor %vm52, %vm53
  %v55 = vsel %vm54, %v46, %v51
  %v56 = vrsqrt.pop %v45
  %v57 = vmul.f32 %v56, %v45
  %v58 = vmul.f32 %v57, %v56
  %v59 = vmul.f32 0.5, %v58
  %v60 = vsub.f32 1.5, %v59
  %v61 = vmul.f32 %v56, %v60
  %vm62 = vweird.f32 %v45
  %vm63 = vweird.f32 %v56
  %vm64 = vmor %vm62, %vm63
  %v65 = vsel %vm64, %v56, %v61
  %v66 = vmul.f32 %v32, %v55
  %v67 = vmul.f32 %v33, %v65
  %v68 = vld [vmem:[%s1] sm:$0x1]
  %v70 = vperm.slane %v68, 0
  %v72 = vmul.f32 %v66, %v70
  %v73 = vmul.f32 %v67, %v70
  %v74 = vld [vmem:[%s2] sm:$0x1]
  %v76 = vperm.slane %v74, 0
  %v78 = vadd.f32 %v72, %v76
  %v79 = vadd.f32 %v73, %v76
  %v80 = vmul.f32 %v78, 0.5
  %v81 = vmul.f32 %v79, 0.5
  %v82 = vmul.f32 %v78, 0.044715
  %v83 = vmul.f32 %v79, 0.044715
  %v84 = vmul.f32 %v82, %v78
  %v85 = vmul.f32 %v83, %v79
  %v86 = vmul.f32 %v84, %v78
  %v87 = vmul.f32 %v85, %v79
  %v88 = vadd.f32 %v78, %v86
  %v89 = vadd.f32 %v79, %v87
  %v90 = vmul.f32 %v88, 0.7978846
  %v91 = vmul.f32 %v89, 0.7978846
  %v92 = vtanh.pop %v90
  %v93 = vtanh.pop %v91
  %v94 = vadd.f32 %v92, 1.0
  %v95 = vadd.f32 %v93, 1.0
  %v96 = vmul.f32 %v80, %v94
  %v97 = vmul.f32 %v81, %v95
  %98 = vst.msk [vmem:[%s3] sm:$0xff] %vm16, %v96
  %99 = vst.msk [vmem:[%s3 + $0x8] sm:$0xff] %vm16, %v97
  // Predicated region
  $region14: #{speech_model_forward.28} parent=0 // pred_check
    _
  $region15: #{speech_model_forward.28} parent=0 // pred_check_branch
    %101 = sbr.rel (0) target = $region17
  $region16: #{speech_model_forward.28} parent=0 // pred_region
    _
  $region17: #{speech_model_forward.28} parent=0 // pred_fallthru
    _
  // Predicated region
  $region18: #{speech_model_forward.28} parent=0 // pred_check
    _
  $region19: #{speech_model_forward.28} parent=0 // pred_check_branch
    %103 = sbr.rel (0) target = $region21
  $region20: #{speech_model_forward.28} parent=0 // pred_region
    _
  $region21: #{speech_model_forward.28} parent=0 // pred_fallthru
    _

// kernel: speech_model_forward.29
$region0: #{speech_model_forward.29}
  #allocation0 [shape = 'u32[]', space=smem, size = 0x4, offset = 0x4, fixed_abs, tag = 'smem constant byte address 0x4 - core index']
  #allocation1 [shape = 'u32[72,128]{1,0:T(1,128)}', space=vmem, size = 0x9000, scoped, tag = 'internal scratch']
  #allocation2 [shape = 'f32[16,96]{1,0:T(8,128)}', space=vmem, size = 0x2000, scoped, tag = 'scratch operand']
  #allocation3 [shape = 'f32[8,32]{1,0:T(8,128)}', space=vmem, size = 0x1000, scoped, tag = 'scratch operand']
  %s0 = inlined_call_operand.vmem [shape: f32[16,64], index: 0, kind: input, shape index: {}]
  %s1 = inlined_call_operand.vmem [shape: f32[2,64,96], index: 1, kind: input, shape index: {}]
  %s2 = inlined_call_operand.vmem [shape: f32[2,1,96], index: 2, kind: input, shape index: {}]
  %s3 = inlined_call_operand.vmem [shape: f32[2,32,96], index: 3, kind: input, shape index: {}]
  %s4 = inlined_call_operand.vmem [shape: f32[2,1,96], index: 4, kind: input, shape index: {}]
  %s5 = inlined_call_operand.vmem [shape: f32[2,2,8,32], index: 5, kind: output, shape index: {}]
  %s6 = sld [smem:[#allocation0]]
  $region64: #{speech_model_forward.29} parent=0
    _
  %s8 = ssub.s32 1, %s6
  %s9 = scalar_select 0, %s8, %s6
  loop: start=0, step=1, limit=4
  $region2: #{speech_model_forward.29} parent=0 // loop_pre_header
    _
  $region3: #{speech_model_forward.29} parent=0 // loop_header
    %s11 = sphi 0, %s15
    %p12 = scmp.ge.s32.totalorder %s11, 4
    %s18 = sphi 0, %s30
    %s19 = sphi 0, %s26
    %s20 = sphi 0, %s18
    %s21 = sphi 0, %s19
    %s22 = sphi 0, %s20
    %s23 = sphi 0, %s21
    %s43 = sphi 0, %s45
    %s46 = sphi 0, %s43
    %s47 = sphi 0, %s46
    %s63 = sphi 0, %s47
    %s69 = sphi 0, %s71
    %s72 = sphi 0, %s69
    %s73 = sphi 0, %s72
    %s89 = sphi 0, %s73
    %s95 = sphi 0, %s97
    %s98 = sphi 0, %s95
    %s99 = sphi 0, %s98
    %s115 = sphi 0, %s99
    %s121 = sphi 0, %s123
    %s124 = sphi 0, %s121
    %s125 = sphi 0, %s124
    %s141 = sphi 0, %s125
    %s147 = sphi 0, %s149
    %s150 = sphi 0, %s147
    %s151 = sphi 0, %s150
    %s167 = sphi 0, %s151
    %s185 = sphi 0, %s187
    %s188 = sphi 0, %s185
    %s189 = sphi 0, %s188
    %s205 = sphi 0, %s189
  $region4: #{speech_model_forward.29} parent=0 // loop_header_branch
    %14 = sbr.rel (%p12) target = $region8
  $region5: #{speech_model_forward.29} parent=0 // loop_body
    %s16 = ssub.s32 %s11, 1
    %s17 = ssub.s32 %s11, 2
    %s24 = sadd.s32 1, %s19
    %p25 = scmp.ge.s32.totalorder %s24, 1
    %s26 = scalar_select %p25, 0, %s24
    %s27 = sadd.s32 1, %s18
    %s28 = scalar_select %p25, %s27, %s18
    %p29 = scmp.ge.s32.totalorder %s28, 2
    %s30 = scalar_select %p29, 0, %s28
    %s31 = ssub.s32 1, %s18
    %s32 = smul.u32 %s31, %s19
    %s33 = ssub.s32 0, %s19
    %s34 = smul.u32 %s18, %s33
    %s35 = sadd.s32 %s32, %s34
    %s36 = ssub.s32 1, %s30
    %s37 = smul.u32 %s36, %s26
    %s38 = ssub.s32 0, %s26
    %s39 = smul.u32 %s30, %s38
    %s40 = sadd.s32 %s37, %s39
    %s41 = ssub.s32 %s35, %s40
    %p42 = scmp.eq.s32.totalorder %s41, 0
    %s44 = sadd.s32 %s43, 1
    %s45 = scalar_select %p42, %s43, %s44
    %p48 = pneg %p42
    %p49 = scmp.eq.s32.totalorder %s11, 1
    %p50 = por %p48, %p49
    %p51 = scmp.ne.s32.totalorder %s43, %s46
    %p52 = scmp.eq.s32.totalorder %s11, 0
    %p53 = por %p51, %p52
    %p54 = scmp.ne.s32.totalorder %s43, %s46
    %p55 = scmp.eq.s32.totalorder %s16, 1
    %p56 = por %p54, %p55
    %p57 = scmp.ne.s32.totalorder %s46, %s47
    %p58 = scmp.eq.s32.totalorder %s16, 0
    %p59 = por %p57, %p58
    %p60 = scmp.ne.s32.totalorder %s46, %s47
    %p61 = scmp.eq.s32.totalorder %s17, 1
    %p62 = por %p60, %p61
    %p64 = scmp.ne.s32.totalorder %s47, %s63
    %p65 = scmp.eq.s32.totalorder %s17, 0
    %p66 = por %p64, %p65
    %s67 = ssub.s32 %s18, %s30
    %p68 = scmp.eq.s32.totalorder %s67, 0
    %s70 = sadd.s32 %s69, 1
    %s71 = scalar_select %p68, %s69, %s70
    %p74 = pneg %p68
    %p75 = scmp.eq.s32.totalorder %s11, 1
    %p76 = por %p74, %p75
    %p77 = scmp.ne.s32.totalorder %s69, %s72
    %p78 = scmp.eq.s32.totalorder %s11, 0
    %p79 = por %p77, %p78
    %p80 = scmp.ne.s32.totalorder %s69, %s72
    %p81 = scmp.eq.s32.totalorder %s16, 1
    %p82 = por %p80, %p81
    %p83 = scmp.ne.s32.totalorder %s72, %s73
    %p84 = scmp.eq.s32.totalorder %s16, 0
    %p85 = por %p83, %p84
    %p86 = scmp.ne.s32.totalorder %s72, %s73
    %p87 = scmp.eq.s32.totalorder %s17, 1
    %p88 = por %p86, %p87
    %p90 = scmp.ne.s32.totalorder %s73, %s89
    %p91 = scmp.eq.s32.totalorder %s17, 0
    %p92 = por %p90, %p91
    %s93 = ssub.s32 %s18, %s30
    %p94 = scmp.eq.s32.totalorder %s93, 0
    %s96 = sadd.s32 %s95, 1
    %s97 = scalar_select %p94, %s95, %s96
    %p100 = pneg %p94
    %p101 = scmp.eq.s32.totalorder %s11, 1
    %p102 = por %p100, %p101
    %p103 = scmp.ne.s32.totalorder %s95, %s98
    %p104 = scmp.eq.s32.totalorder %s11, 0
    %p105 = por %p103, %p104
    %p106 = scmp.ne.s32.totalorder %s95, %s98
    %p107 = scmp.eq.s32.totalorder %s16, 1
    %p108 = por %p106, %p107
    %p109 = scmp.ne.s32.totalorder %s98, %s99
    %p110 = scmp.eq.s32.totalorder %s16, 0
    %p111 = por %p109, %p110
    %p112 = scmp.ne.s32.totalorder %s98, %s99
    %p113 = scmp.eq.s32.totalorder %s17, 1
    %p114 = por %p112, %p113
    %p116 = scmp.ne.s32.totalorder %s99, %s115
    %p117 = scmp.eq.s32.totalorder %s17, 0
    %p118 = por %p116, %p117
    %s119 = ssub.s32 %s18, %s30
    %p120 = scmp.eq.s32.totalorder %s119, 0
    %s122 = sadd.s32 %s121, 1
    %s123 = scalar_select %p120, %s121, %s122
    %p126 = pneg %p120
    %p127 = scmp.eq.s32.totalorder %s11, 1
    %p128 = por %p126, %p127
    %p129 = scmp.ne.s32.totalorder %s121, %s124
    %p130 = scmp.eq.s32.totalorder %s11, 0
    %p131 = por %p129, %p130
    %p132 = scmp.ne.s32.totalorder %s121, %s124
    %p133 = scmp.eq.s32.totalorder %s16, 1
    %p134 = por %p132, %p133
    %p135 = scmp.ne.s32.totalorder %s124, %s125
    %p136 = scmp.eq.s32.totalorder %s16, 0
    %p137 = por %p135, %p136
    %p138 = scmp.ne.s32.totalorder %s124, %s125
    %p139 = scmp.eq.s32.totalorder %s17, 1
    %p140 = por %p138, %p139
    %p142 = scmp.ne.s32.totalorder %s125, %s141
    %p143 = scmp.eq.s32.totalorder %s17, 0
    %p144 = por %p142, %p143
    %s145 = ssub.s32 %s18, %s30
    %p146 = scmp.eq.s32.totalorder %s145, 0
    %s148 = sadd.s32 %s147, 1
    %s149 = scalar_select %p146, %s147, %s148
    %p152 = pneg %p146
    %p153 = scmp.eq.s32.totalorder %s11, 1
    %p154 = por %p152, %p153
    %p155 = scmp.ne.s32.totalorder %s147, %s150
    %p156 = scmp.eq.s32.totalorder %s11, 0
    %p157 = por %p155, %p156
    %p158 = scmp.ne.s32.totalorder %s147, %s150
    %p159 = scmp.eq.s32.totalorder %s16, 1
    %p160 = por %p158, %p159
    %p161 = scmp.ne.s32.totalorder %s150, %s151
    %p162 = scmp.eq.s32.totalorder %s16, 0
    %p163 = por %p161, %p162
    %p164 = scmp.ne.s32.totalorder %s150, %s151
    %p165 = scmp.eq.s32.totalorder %s17, 1
    %p166 = por %p164, %p165
    %p168 = scmp.ne.s32.totalorder %s151, %s167
    %p169 = scmp.eq.s32.totalorder %s17, 0
    %p170 = por %p168, %p169
    %s171 = ssub.s32 1, %s18
    %s172 = smul.u32 %s171, %s19
    %s173 = ssub.s32 0, %s19
    %s174 = smul.u32 %s18, %s173
    %s175 = sadd.s32 %s172, %s174
    %s176 = ssub.s32 1, %s30
    %s177 = smul.u32 %s176, %s26
    %s178 = ssub.s32 0, %s26
    %s179 = smul.u32 %s30, %s178
    %s180 = sadd.s32 %s177, %s179
    %s181 = ssub.s32 %s18, %s30
    %s182 = ssub.s32 %s175, %s180
    %s183 = sor.u32 %s181, %s182
    %p184 = scmp.eq.s32.totalorder %s183, 0
    %s186 = sadd.s32 %s185, 1
    %s187 = scalar_select %p184, %s185, %s186
    %p190 = pneg %p184
    %p191 = scmp.eq.s32.totalorder %s11, 1
    %p192 = por %p190, %p191
    %p193 = scmp.ne.s32.totalorder %s185, %s188
    %p194 = scmp.eq.s32.totalorder %s11, 0
    %p195 = por %p193, %p194
    %p196 = scmp.ne.s32.totalorder %s185, %s188
    %p197 = scmp.eq.s32.totalorder %s16, 1
    %p198 = por %p196, %p197
    %p199 = scmp.ne.s32.totalorder %s188, %s189
    %p200 = scmp.eq.s32.totalorder %s16, 0
    %p201 = por %p199, %p200
    %p202 = scmp.ne.s32.totalorder %s188, %s189
    %p203 = scmp.eq.s32.totalorder %s17, 1
    %p204 = por %p202, %p203
    %p206 = scmp.ne.s32.totalorder %s189, %s205
    %p207 = scmp.eq.s32.totalorder %s17, 0
    %p208 = por %p206, %p207
    %p209 = scmp.le.s32.totalorder 1, %s11
    %p210 = scmp.lt.s32.totalorder %s11, 3
    %p211 = pnand %p209, %p210
    %p212 = pneg %p211
    // Predicated region
    $region9: #{speech_model_forward.29} parent=5 // pred_check
      _
    $region10: #{speech_model_forward.29} parent=5 // pred_check_branch
      %214 = sbr.rel (%p211) target = $region12
    $region11: #{speech_model_forward.29} parent=5 // pred_region
      %s215 = ssub.s32 %s11, 1
    $region12: #{speech_model_forward.29} parent=5 // pred_fallthru
      _
    %p216 = scmp.lt.s32.totalorder %s11, 2
    // Predicated region
    $region13: #{speech_model_forward.29} parent=5 // pred_check
      %p217 = pneg %p216
    $region14: #{speech_model_forward.29} parent=5 // pred_check_branch
      %219 = sbr.rel (%p217) target = $region16
    $region15: #{speech_model_forward.29} parent=5 // pred_region
      // Predicated region
      $region17: #{speech_model_forward.29} parent=15 // pred_check
        %p220 = pneg %p53
      $region18: #{speech_model_forward.29} parent=15 // pred_check_branch
        %222 = sbr.rel (%p220) target = $region20
      $region19: #{speech_model_forward.29} parent=15 // pred_region
        %s223 = ssub.s32 1, %s18
        %s224 = smul.u32 %s223, %s19
        %s225 = ssub.s32 0, %s19
        %s226 = smul.u32 %s18, %s225
        %s227 = sadd.s32 %s224, %s226
        %s228 = smul.u32 2, %s227
        %p229 = scmp.lt.s32.totalorder %s228, 1
        %s230 = scalar_select %p229, %s228, 1
        %s231 = smul.addr %s230, 8
        %s232 = scalar_lea.vmem %s0, %s231
        %s233 = ssub.s32 1, %s18
        %s234 = smul.u32 %s233, %s19
        %s235 = ssub.s32 0, %s19
        %s236 = smul.u32 %s18, %s235
        %s237 = sadd.s32 %s234, %s236
        %s238 = smul.u32 2, %s237
      $region20: #{speech_model_forward.29} parent=15 // pred_fallthru
        _
      // Predicated region
      $region21: #{speech_model_forward.29} parent=15 // pred_check
        %p239 = pneg %p79
      $region22: #{speech_model_forward.29} parent=15 // pred_check_branch
        %241 = sbr.rel (%p239) target = $region24
      $region23: #{speech_model_forward.29} parent=15 // pred_region
        %p242 = scmp.lt.s32.totalorder %s18, 1
        %s243 = scalar_select %p242, %s18, 1
        %s244 = smul.addr %s243, 8
        %s245 = smul.addr %s244, 8
        %s246 = scalar_lea.vmem %s1, %s245
      $region24: #{speech_model_forward.29} parent=15 // pred_fallthru
        _
      // Predicated region
      $region25: #{speech_model_forward.29} parent=15 // pred_check
        %p247 = pneg %p105
      $region26: #{speech_model_forward.29} parent=15 // pred_check_branch
        %249 = sbr.rel (%p247) target = $region28
      $region27: #{speech_model_forward.29} parent=15 // pred_region
        %p250 = scmp.lt.s32.totalorder %s18, 1
        %s251 = scalar_select %p250, %s18, 1
        %s252 = scalar_lea.vmem %s2, %s251
      $region28: #{speech_model_forward.29} parent=15 // pred_fallthru
        _
      // Predicated region
      $region29: #{speech_model_forward.29} parent=15 // pred_check
        %p253 = pneg %p131
      $region30: #{speech_model_forward.29} parent=15 // pred_check_branch
        %255 = sbr.rel (%p253) target = $region32
      $region31: #{speech_model_forward.29} parent=15 // pred_region
        %p256 = scmp.lt.s32.totalorder %s18, 1
        %s257 = scalar_select %p256, %s18, 1
        %s258 = smul.addr %s257, 4
        %s259 = smul.addr %s258, 8
        %s260 = scalar_lea.vmem %s3, %s259
      $region32: #{speech_model_forward.29} parent=15 // pred_fallthru
        _
      // Predicated region
      $region33: #{speech_model_forward.29} parent=15 // pred_check
        %p261 = pneg %p157
      $region34: #{speech_model_forward.29} parent=15 // pred_check_branch
        %263 = sbr.rel (%p261) target = $region36
      $region35: #{speech_model_forward.29} parent=15 // pred_region
        %p264 = scmp.lt.s32.totalorder %s18, 1
        %s265 = scalar_select %p264, %s18, 1
        %s266 = scalar_lea.vmem %s4, %s265
      $region36: #{speech_model_forward.29} parent=15 // pred_fallthru
        _
    $region16: #{speech_model_forward.29} parent=5 // pred_fallthru
      _
    %p267 = scmp.le.s32.totalorder 1, %s11
    %p268 = scmp.lt.s32.totalorder %s11, 3
    %p269 = pnand %p267, %p268
    %p270 = pneg %p269
    // Predicated region
    $region37: #{speech_model_forward.29} parent=5 // pred_check
      _
    $region38: #{speech_model_forward.29} parent=5 // pred_check_branch
      %272 = sbr.rel (%p269) target = $region40
    $region39: #{speech_model_forward.29} parent=5 // pred_region
      %s273 = ssub.s32 %s11, 1
      %s274 = ssub.s32 1, %s20
      %s275 = smul.u32 %s274, %s21
      %s276 = ssub.s32 0, %s21
      %s277 = smul.u32 %s20, %s276
      %s278 = sadd.s32 %s275, %s277
      %s279 = smul.u32 2, %s278
      %p280 = scmp.lt.s32.totalorder %s279, 1
      %s281 = scalar_select %p280, %s279, 1
      %s282 = smul.addr %s281, 8
      %s283 = scalar_lea.vmem %s0, %s282
      %p284 = pneg %p59
      %p285 = pneg %p56
      %p286 = scmp.lt.s32.totalorder %s20, 1
      %s287 = scalar_select %p286, %s20, 1
      %s288 = smul.addr %s287, 8
      %s289 = smul.addr %s288, 8
      %s290 = scalar_lea.vmem %s1, %s289
      %p291 = pneg %p85
      %p292 = pneg %p82
      %p293 = scmp.lt.s32.totalorder %s20, 1
      %s294 = scalar_select %p293, %s20, 1
      %s295 = scalar_lea.vmem %s2, %s294
      %p296 = pneg %p111
      %p297 = pneg %p108
      %p298 = scmp.lt.s32.totalorder %s20, 1
      %s299 = scalar_select %p298, %s20, 1
      %s300 = smul.addr %s299, 4
      %s301 = smul.addr %s300, 8
      %s302 = scalar_lea.vmem %s3, %s301
      %p303 = pneg %p137
      %p304 = pneg %p134
      %p305 = scmp.lt.s32.totalorder %s20, 1
      %s306 = scalar_select %p305, %s20, 1
      %s307 = scalar_lea.vmem %s4, %s306
      %p308 = pneg %p163
      %p309 = pneg %p160
      %p310 = pneg %p201
      %p311 = pneg %p198
      %s312 = ssub.s32 1, %s20
      %s313 = smul.u32 %s312, %s21
      %s314 = ssub.s32 0, %s21
      %s315 = smul.u32 %s20, %s314
      %s316 = sadd.s32 %s313, %s315
      %s317 = smul.u32 2, %s316
      %p318 = scmp.lt.s32.totalorder %s20, 1
      %s319 = scalar_select %p318, %s20, 1
      %p320 = scmp.lt.s32.totalorder %s317, 1
      %s321 = scalar_select %p320, %s317, 1
      %s322 = smul.addr %s319, 2
      %s323 = sadd.s32 %s321, %s322
      %s324 = smul.addr %s323, 8
      %s325 = scalar_lea.vmem %s5, %s324
      %s326 = ssub.s32 1, %s20
      %s327 = smul.u32 %s326, %s21
      %s328 = ssub.s32 0, %s21
      %s329 = smul.u32 %s20, %s328
      %s330 = sadd.s32 %s327, %s329
      %s331 = smul.u32 2, %s330
      %p332 = scmp.lt.s32.totalorder %s331, 1
      %s333 = scalar_select %p332, %s331, 1
      %s334 = smul.addr %s333, 8
      %s335 = scalar_lea.vmem %s0, %s334
      %s336 = ssub.s32 1, %s20
      %s337 = smul.u32 %s336, %s21
      %s338 = ssub.s32 0, %s21
      %s339 = smul.u32 %s20, %s338
      %s340 = sadd.s32 %s337, %s339
      %s341 = smul.u32 2, %s340
      %p342 = scmp.lt.s32.totalorder %s20, 1
      %s343 = scalar_select %p342, %s20, 1
      %s344 = smul.addr %s343, 8
      %s345 = smul.addr %s344, 8
      %s346 = scalar_lea.vmem %s1, %s345
      %p347 = scmp.lt.s32.totalorder %s20, 1
      %s348 = scalar_select %p347, %s20, 1
      %s349 = scalar_lea.vmem %s2, %s348
      %p350 = scmp.lt.s32.totalorder %s20, 1
      %s351 = scalar_select %p350, %s20, 1
      %s352 = smul.addr %s351, 4
      %s353 = smul.addr %s352, 8
      %s354 = scalar_lea.vmem %s3, %s353
      %p355 = scmp.lt.s32.totalorder %s20, 1
      %s356 = scalar_select %p355, %s20, 1
      %s357 = scalar_lea.vmem %s4, %s356
      %s358 = ssub.s32 1, %s20
      %s359 = smul.u32 %s358, %s21
      %s360 = ssub.s32 0, %s21
      %s361 = smul.u32 %s20, %s360
      %s362 = sadd.s32 %s359, %s361
      %s363 = smul.u32 2, %s362
      %p364 = scmp.lt.s32.totalorder %s20, 1
      %s365 = scalar_select %p364, %s20, 1
      %p366 = scmp.lt.s32.totalorder %s363, 1
      %s367 = scalar_select %p366, %s363, 1
      %s368 = smul.addr %s365, 2
      %s369 = sadd.s32 %s367, %s368
      %s370 = smul.addr %s369, 8
      %s371 = scalar_lea.vmem %s5, %s370
      %s372 = ssub.s32 1, %s20
      %s373 = smul.u32 %s372, %s21
      %s374 = ssub.s32 0, %s21
      %s375 = smul.u32 %s20, %s374
      %s376 = sadd.s32 %s373, %s375
      %s377 = smul.u32 2, %s376
      %s379 = ssub.s32 1, %s20
      %s380 = smul.u32 %s379, %s21
      %s381 = ssub.s32 0, %s21
      %s382 = smul.u32 %s20, %s381
      %s383 = sadd.s32 %s380, %s382
      %p384 = scmp.eq.s32.totalorder %s21, 0
      // Predicated region
      $region41: #{speech_model_forward.29} parent=39 // pred_check
        %p385 = pneg %p384
      $region42: #{speech_model_forward.29} parent=39 // pred_check_branch
        %387 = sbr.rel (%p385) target = $region44
      $region43: #{speech_model_forward.29} parent=39 // pred_region
        %vm388 = vcmask 261120
        %389 = vst.msk [vmem:[#allocation3] sm:$0xff] %vm388, 0.0
      $region44: #{speech_model_forward.29} parent=39 // pred_fallthru
        _
      %v390 = vld [vmem:[%s335] sm:$0xff]
      %v391 = vld [vmem:[%s335 + $0x8] sm:$0xff]
      %v392 = vpack.c.bf16 %v391, %v390
      %v393 = vld [vmem:[%s346] sm:$0xff]
      %v394 = vld [vmem:[%s346 + $0x8] sm:$0xff]
      %v395 = vld [vmem:[%s346 + $0x10] sm:$0xff]
      %v396 = vld [vmem:[%s346 + $0x18] sm:$0xff]
      %v397 = vld [vmem:[%s346 + $0x20] sm:$0xff]
      %v398 = vld [vmem:[%s346 + $0x28] sm:$0xff]
      %v399 = vld [vmem:[%s346 + $0x30] sm:$0xff]
      %v400 = vld [vmem:[%s346 + $0x38] sm:$0xff]
      %v401 = vpack.c.bf16 %v394, %v393
      %v402 = vpack.c.bf16 %v396, %v395
      %v403 = vpack.c.bf16 %v398, %v397
      %v404 = vpack.c.bf16 %v400, %v399
      %v405 = vld [vmem:[%s349] sm:$0x1]
      %v407 = vperm.slane %v405, 0
      %vm409 = vcmask 523264
      %v411 = vsel %vm409, %v392, 0
      %413 = vmatpush.bf16.msra.mxu0 0
      %414 = vmatpush.bf16.msra.mxu0 0
      %415 = vmatpush.bf16.msra.mxu0 0
      %416 = vmatpush.bf16.msra.mxu0 0
      %417 = vmatpush.bf16.msra.mxu0 %v404
      %418 = vmatpush.bf16.msra.mxu0 %v403
      %419 = vmatpush.bf16.msra.mxu0 %v402
      %420 = vmatpush.bf16.msra.mxu0 %v401
      %421 = vmatmul.bf16.gmra.mxu0 %v411
      %v422 = vpop.f32.mrf.mxu0
      %v423 = vadd.f32 %v407, %v422
      %v424 = vpop.f32.mrf.mxu0
      %v425 = vadd.f32 %v407, %v424
      %426 = vdwg.mxu0
      %vm427 = vcmask 785408
      %428 = vst.msk [vmem:[#allocation2] sm:$0xff] %vm427, %v423
      %429 = vst.msk [vmem:[#allocation2 + $0x8] sm:$0xff] %vm427, %v425
      %v430 = vld [vmem:[%s354] sm:$0xff]
      %v431 = vld [vmem:[%s354 + $0x8] sm:$0xff]
      %v432 = vld [vmem:[%s354 + $0x10] sm:$0xff]
      %v433 = vld [vmem:[%s354 + $0x18] sm:$0xff]
      %v434 = vpack.c.bf16 %v431, %v430
      %v435 = vpack.c.bf16 %v433, %v432
      %v436 = vld [vmem:[%s357] sm:$0x1]
      %v437 = vld [vmem:[#allocation3] sm:$0xff]
      loop: start=0, step=1, limit=2
      $region45: #{speech_model_forward.29} parent=39 // loop_pre_header
        _
      $region46: #{speech_model_forward.29} parent=39 // loop_header
        %s439 = sphi 0, %s443
        %p440 = scmp.ge.s32.totalorder %s439, 2
        %v444 = vphi %v437, %v524
      $region47: #{speech_model_forward.29} parent=39 // loop_header_branch
        %442 = sbr.rel (%p440) target = $region51
      $region48: #{speech_model_forward.29} parent=39 // loop_body
        %p445 = scmp.eq.s32.totalorder %s20, 0
        %s446 = ssub.s32 1, %s439
        %s447 = scalar_select %p445, %s439, %s446
        %s448 = smul.u32 %s447, 8
        %s449 = scalar_lea.vmem [#allocation2], %s448
        %v450 = vld [vmem:[%s449] sm:$0xff]
        %v451 = vpack.c.bf16 %v444, %v444
        %v453 = vperm.slane %v436, 0
        %vm455 = vcmask 261120
        %v457 = vsel %vm455, %v451, 0
        %459 = vmatpush.bf16.msra.mxu0 0
        %460 = vmatpush.bf16.msra.mxu0 0
        %461 = vmatpush.bf16.msra.mxu0 0
        %462 = vmatpush.bf16.msra.mxu0 0
        %463 = vmatpush.bf16.msra.mxu0 0
        %464 = vmatpush.bf16.msra.mxu0 0
        %465 = vmatpush.bf16.msra.mxu0 %v435
        %466 = vmatpush.bf16.msra.mxu0 %v434
        %467 = vmatmul.bf16.gmra.mxu0 %v457
        %v468 = vpop.f32.mrf.mxu0
        %v469 = vadd.f32 %v453, %v468
        %v470 = vpop.f32.mrf.mxu0
        %471 = vdwg.mxu0
        %v472 = vadd.f32 %v450, %v469
        %v473 = vxor.u32 %v472, 2147483648
        %v474 = vmul.f32 %v473, 1.442695
        %v475 = vpow.pop %v474
        %v476 = vadd.f32 %v475, 1.0
        %v477 = vrcp.pop %v476
        %v478 = vmul.f32 %v476, %v477
        %v479 = vsub.f32 1.0, %v478
        %v480 = vmul.f32 %v477, %v479
        %v481 = vadd.f32 %v477, %v480
        %vm482 = vweird.f32 %v476
        %vm483 = vweird.f32 %v477
        %vm484 = vmor %vm482, %vm483
        %v485 = vsel %vm484, %v477, %v481
        %v486 = vand.u32 2147483647, %v476
        %vm487 = vcmp.eq.f32.partialorder %v486, 8.507059e+37
        %v488 = vand.u32 %v476, 2147483648
        %v489 = vor.u32 1.1754944e-38, %v488
        %v490 = vsel %vm487, %v489, %v485
        %v491 = vmul.f32 1.0, %v490
        %493 = vrot.lane.b32.xlu0 %v469, 64
        %v494 = vpop.permute.xlu0 %493
        %v496 = vmul.f32 %v491, %v494
        %498 = vrot.lane.b32.xlu0 %v496, 64
        %v499 = vpop.permute.xlu0 %498
        %v501 = vadd.f32 %v450, %v499
        %v502 = vtanh.pop %v501
        %v503 = vsub.f32 1.0, %v491
        %505 = vrot.lane.b32.xlu0 %v502, 96
        %v506 = vpop.permute.xlu0 %505
        %v508 = vmul.f32 %v503, %v506
        %510 = vrot.lane.b32.xlu0 %v444, 32
        %v511 = vpop.permute.xlu0 %510
        %v513 = vmul.f32 %v491, %v511
        %v514 = vadd.f32 %v508, %v513
        %s515 = smul.u32 %s383, 2
        %s516 = sadd.s32 %s515, %s447
        %p517 = scmp.lt.s32.totalorder %s516, 2
        %s518 = scalar_select %p517, 1, 0
        %v519 = vstv %s518
        %vm520 = vcmp.eq.s32.totalorder %v519, 1
        %v521 = vsel %vm520, %v514, %v511
        %523 = vrot.lane.b32.xlu0 %v521, 96
        %v524 = vpop.permute.xlu0 %523
        %s526 = scalar_lea.vmem %s371, %s448
        %527 = vst.msk [vmem:[%s526] sm:$0xff] %vm455, %v524
      $region49: #{speech_model_forward.29} parent=39 // loop_footer
        %s443 = sadd.s32 1, %s439
      $region50: #{speech_model_forward.29} parent=39 // loop_footer_branch
        %438 = sbr.rel target = $region46
      $region51: #{speech_model_forward.29} parent=39 // loop_exit
        _
      %vm528 = vcmask 261120
      %529 = vst.msk [vmem:[#allocation3] sm:$0xff] %vm528, %v444
      %s530 = ssub.s32 1, %s20
      %s531 = smul.u32 %s530, %s21
      %s532 = ssub.s32 0, %s21
      %s533 = smul.u32 %s20, %s532
      %s534 = sadd.s32 %s531, %s533
      %s535 = smul.u32 2, %s534
      %p536 = scmp.lt.s32.totalorder %s20, 1
      %s537 = scalar_select %p536, %s20, 1
      %p538 = scmp.lt.s32.totalorder %s535, 1
      %s539 = scalar_select %p538, %s535, 1
      %s540 = smul.addr %s537, 2
      %s541 = sadd.s32 %s539, %s540
      %s542 = smul.addr %s541, 8
      %s543 = scalar_lea.vmem %s5, %s542
      // Predicated region
      $region52: #{speech_model_forward.29} parent=39 // pred_check
        %p544 = pneg %p198
      $region53: #{speech_model_forward.29} parent=39 // pred_check_branch
        %546 = sbr.rel (%p544) target = $region55
      $region54: #{speech_model_forward.29} parent=39 // pred_region
        %s547 = ssub.s32 1, %s20
        %s548 = smul.u32 %s547, %s21
        %s549 = ssub.s32 0, %s21
        %s550 = smul.u32 %s20, %s549
        %s551 = sadd.s32 %s548, %s550
        %s552 = smul.u32 2, %s551
      $region55: #{speech_model_forward.29} parent=39 // pred_fallthru
        _
    $region40: #{speech_model_forward.29} parent=5 // pred_fallthru
      _
    %p553 = scmp.le.s32.totalorder 2, %s11
    // Predicated region
    $region56: #{speech_model_forward.29} parent=5 // pred_check
      %p554 = pneg %p553
    $region57: #{speech_model_forward.29} parent=5 // pred_check_branch
      %556 = sbr.rel (%p554) target = $region59
    $region58: #{speech_model_forward.29} parent=5 // pred_region
      %s557 = ssub.s32 %s11, 2
      // Predicated region
      $region60: #{speech_model_forward.29} parent=58 // pred_check
        %p558 = pneg %p204
      $region61: #{speech_model_forward.29} parent=58 // pred_check_branch
        %560 = sbr.rel (%p558) target = $region63
      $region62: #{speech_model_forward.29} parent=58 // pred_region
        %s561 = ssub.s32 1, %s22
        %s562 = smul.u32 %s561, %s23
        %s563 = ssub.s32 0, %s23
        %s564 = smul.u32 %s22, %s563
        %s565 = sadd.s32 %s562, %s564
        %s566 = smul.u32 2, %s565
        %p567 = scmp.lt.s32.totalorder %s22, 1
        %s568 = scalar_select %p567, %s22, 1
        %p569 = scmp.lt.s32.totalorder %s566, 1
        %s570 = scalar_select %p569, %s566, 1
        %s571 = smul.addr %s568, 2
        %s572 = sadd.s32 %s570, %s571
        %s573 = smul.addr %s572, 8
        %s574 = scalar_lea.vmem %s5, %s573
      $region63: #{speech_model_forward.29} parent=58 // pred_fallthru
        _
    $region59: #{speech_model_forward.29} parent=5 // pred_fallthru
      _
  $region6: #{speech_model_forward.29} parent=0 // loop_footer
    %s15 = sadd.s32 1, %s11
  $region7: #{speech_model_forward.29} parent=0 // loop_footer_branch
    %10 = sbr.rel target = $region3
  $region8: #{speech_model_forward.29} parent=0 // loop_exit
    _

// kernel: speech_model_forward.30
$region0: #{speech_model_forward.30}
  #allocation0 [shape = 'u32[]', space=smem, size = 0x4, offset = 0x4, fixed_abs, tag = 'smem constant byte address 0x4 - core index']
  #allocation1 [shape = 'u32[72,128]{1,0:T(1,128)}', space=vmem, size = 0x9000, scoped, tag = 'internal scratch']
  %s0 = inlined_call_operand.vmem [shape: f32[16,64], index: 0, kind: input, shape index: {}]
  %s1 = inlined_call_operand.vmem [shape: f32[64,32], index: 1, kind: input, shape index: {}]
  %s2 = inlined_call_operand.vmem [shape: f32[1,32], index: 2, kind: input, shape index: {}]
  %s3 = inlined_call_operand.vmem [shape: f32[16,32], index: 3, kind: output, shape index: {}]
  %s4 = sld [smem:[#allocation0]]
  $region30: #{speech_model_forward.30} parent=0
    _
  %s6 = ssub.s32 1, %s4
  %s7 = scalar_select 0, %s6, %s4
  // Predicated region
  $region2: #{speech_model_forward.30} parent=0 // pred_check
    _
  $region3: #{speech_model_forward.30} parent=0 // pred_check_branch
    %9 = sbr.rel (0) target = $region5
  $region4: #{speech_model_forward.30} parent=0 // pred_region
    _
  $region5: #{speech_model_forward.30} parent=0 // pred_fallthru
    _
  // Predicated region
  $region6: #{speech_model_forward.30} parent=0 // pred_check
    _
  $region7: #{speech_model_forward.30} parent=0 // pred_check_branch
    %11 = sbr.rel (0) target = $region9
  $region8: #{speech_model_forward.30} parent=0 // pred_region
    _
  $region9: #{speech_model_forward.30} parent=0 // pred_fallthru
    _
  // Predicated region
  $region10: #{speech_model_forward.30} parent=0 // pred_check
    _
  $region11: #{speech_model_forward.30} parent=0 // pred_check_branch
    %13 = sbr.rel (0) target = $region13
  $region12: #{speech_model_forward.30} parent=0 // pred_region
    _
  $region13: #{speech_model_forward.30} parent=0 // pred_fallthru
    _
  %p15 = scmp.eq.s32.totalorder 0, 0
  // Predicated region
  $region14: #{speech_model_forward.30} parent=0 // pred_check
    %p16 = pneg %p15
  $region15: #{speech_model_forward.30} parent=0 // pred_check_branch
    %18 = sbr.rel (%p16) target = $region17
  $region16: #{speech_model_forward.30} parent=0 // pred_region
    %v19 = vld [vmem:[%s2] sm:$0x1]
    %v21 = vperm.slane %v19, 0
    %vm23 = vcmask 261120
    %24 = vst.msk [vmem:[%s3] sm:$0xff] %vm23, %v21
    %25 = vst.msk [vmem:[%s3 + $0x8] sm:$0xff] %vm23, %v21
  $region17: #{speech_model_forward.30} parent=0 // pred_fallthru
    _
  %v26 = vld [vmem:[%s3] sm:$0xff]
  %v27 = vld [vmem:[%s3 + $0x8] sm:$0xff]
  %v28 = vld [vmem:[%s0] sm:$0xff]
  %v29 = vld [vmem:[%s0 + $0x8] sm:$0xff]
  %v30 = vpack.c.bf16 %v29, %v28
  %v31 = vld [vmem:[%s1] sm:$0xff]
  %v32 = vld [vmem:[%s1 + $0x8] sm:$0xff]
  %v33 = vld [vmem:[%s1 + $0x10] sm:$0xff]
  %v34 = vld [vmem:[%s1 + $0x18] sm:$0xff]
  %v35 = vld [vmem:[%s1 + $0x20] sm:$0xff]
  %v36 = vld [vmem:[%s1 + $0x28] sm:$0xff]
  %v37 = vld [vmem:[%s1 + $0x30] sm:$0xff]
  %v38 = vld [vmem:[%s1 + $0x38] sm:$0xff]
  %v39 = vpack.c.bf16 %v32, %v31
  %v40 = vpack.c.bf16 %v34, %v33
  %v41 = vpack.c.bf16 %v36, %v35
  %v42 = vpack.c.bf16 %v38, %v37
  %vm43 = vcmask 523264
  %v45 = vsel %vm43, %v30, 0
  %47 = vmatpush.bf16.msra.mxu0 0
  %48 = vmatpush.bf16.msra.mxu0 0
  %49 = vmatpush.bf16.msra.mxu0 0
  %50 = vmatpush.bf16.msra.mxu0 0
  %51 = vmatpush.bf16.msra.mxu0 %v42
  %52 = vmatpush.bf16.msra.mxu0 %v41
  %53 = vmatpush.bf16.msra.mxu0 %v40
  %54 = vmatpush.bf16.msra.mxu0 %v39
  %55 = vmatmul.bf16.gmra.mxu0 %v45
  %v56 = vpop.f32.mrf.mxu0
  %v57 = vadd.f32 0.0, %v56
  %v58 = vpop.f32.mrf.mxu0
  %v59 = vadd.f32 0.0, %v58
  %60 = vdwg.mxu0
  %v61 = vadd.f32 %v26, %v57
  %v62 = vadd.f32 %v27, %v59
  %vm63 = vcmask 261120
  %64 = vst.msk [vmem:[%s3] sm:$0xff] %vm63, %v61
  %65 = vst.msk [vmem:[%s3 + $0x8] sm:$0xff] %vm63, %v62
  // Predicated region
  $region18: #{speech_model_forward.30} parent=0 // pred_check
    %p66 = pneg %p15
  $region19: #{speech_model_forward.30} parent=0 // pred_check_branch
    %68 = sbr.rel (%p66) target = $region21
  $region20: #{speech_model_forward.30} parent=0 // pred_region
    %v69 = vld [vmem:[%s3] sm:$0xff]
    %v70 = vld [vmem:[%s3 + $0x8] sm:$0xff]
    %v71 = vmul.f32 %v69, 0.5
    %v72 = vmul.f32 %v70, 0.5
    %v73 = vmul.f32 %v69, 0.044715
    %v74 = vmul.f32 %v70, 0.044715
    %v75 = vmul.f32 %v73, %v69
    %v76 = vmul.f32 %v74, %v70
    %v77 = vmul.f32 %v75, %v69
    %v78 = vmul.f32 %v76, %v70
    %v79 = vadd.f32 %v69, %v77
    %v80 = vadd.f32 %v70, %v78
    %v81 = vmul.f32 %v79, 0.7978846
    %v82 = vmul.f32 %v80, 0.7978846
    %v83 = vtanh.pop %v81
    %v84 = vtanh.pop %v82
    %v85 = vadd.f32 %v83, 1.0
    %v86 = vadd.f32 %v84, 1.0
    %v87 = vmul.f32 %v71, %v85
    %v88 = vmul.f32 %v72, %v86
    %89 = vst.msk [vmem:[%s3] sm:$0xff] %vm63, %v87
    %90 = vst.msk [vmem:[%s3 + $0x8] sm:$0xff] %vm63, %v88
  $region21: #{speech_model_forward.30} parent=0 // pred_fallthru
    _
  // Predicated region
  $region22: #{speech_model_forward.30} parent=0 // pred_check
    _
  $region23: #{speech_model_forward.30} parent=0 // pred_check_branch
    %92 = sbr.rel (0) target = $region25
  $region24: #{speech_model_forward.30} parent=0 // pred_region
    _
  $region25: #{speech_model_forward.30} parent=0 // pred_fallthru
    _
  // Predicated region
  $region26: #{speech_model_forward.30} parent=0 // pred_check
    _
  $region27: #{speech_model_forward.30} parent=0 // pred_check_branch
    %94 = sbr.rel (0) target = $region29
  $region28: #{speech_model_forward.30} parent=0 // pred_region
    _
  $region29: #{speech_model_forward.30} parent=0 // pred_fallthru
    _

// kernel: speech_model_forward.31
$region0: #{speech_model_forward.31}
  #allocation0 [shape = 'u32[]', space=smem, size = 0x4, offset = 0x4, fixed_abs, tag = 'smem constant byte address 0x4 - core index']
  #allocation1 [shape = 'u32[72,128]{1,0:T(1,128)}', space=vmem, size = 0x9000, scoped, tag = 'internal scratch']
  %s0 = inlined_call_operand.vmem [shape: f32[16,32], index: 0, kind: input, shape index: {}]
  %s1 = inlined_call_operand.vmem [shape: f32[32,10], index: 1, kind: input, shape index: {}]
  %s2 = inlined_call_operand.vmem [shape: f32[1,10], index: 2, kind: input, shape index: {}]
  %s3 = inlined_call_operand.hbm [shape: f32[16,10], index: 3, kind: output, shape index: {}]
  %s4 = sld [smem:[#allocation0]]
  $region26: #{speech_model_forward.31} parent=0
    _
  %s6 = ssub.s32 1, %s4
  %s7 = scalar_select 0, %s6, %s4
  $region1: #{speech_model_forward.31} parent=0
    #allocation2 [shape = 'u8[8192]{0}', space=vmem, size = 0x2000, scoped, tag = 'output window, operand 0, single buffered']
    #allocation3 [shape = 's32[1]{0}', space=sflag, size = 0x4, scoped, tag = 'scoped memory for speech_model_forward.31']
    %8 = vsyncpa [#allocation3], 0
    // Predicated region
    $region2: #{speech_model_forward.31} parent=1 // pred_check
      _
    $region3: #{speech_model_forward.31} parent=1 // pred_check_branch
      %10 = sbr.rel (0) target = $region5
    $region4: #{speech_model_forward.31} parent=1 // pred_region
      _
    $region5: #{speech_model_forward.31} parent=1 // pred_fallthru
      _
    // Predicated region
    $region6: #{speech_model_forward.31} parent=1 // pred_check
      _
    $region7: #{speech_model_forward.31} parent=1 // pred_check_branch
      %12 = sbr.rel (0) target = $region9
    $region8: #{speech_model_forward.31} parent=1 // pred_region
      _
    $region9: #{speech_model_forward.31} parent=1 // pred_fallthru
      _
    // Predicated region
    $region10: #{speech_model_forward.31} parent=1 // pred_check
      _
    $region11: #{speech_model_forward.31} parent=1 // pred_check_branch
      %14 = sbr.rel (0) target = $region13
    $region12: #{speech_model_forward.31} parent=1 // pred_region
      _
    $region13: #{speech_model_forward.31} parent=1 // pred_fallthru
      _
    %p16 = scmp.eq.s32.totalorder 0, 0
    // Predicated region
    $region14: #{speech_model_forward.31} parent=1 // pred_check
      %p17 = pneg %p16
    $region15: #{speech_model_forward.31} parent=1 // pred_check_branch
      %19 = sbr.rel (%p17) target = $region17
    $region16: #{speech_model_forward.31} parent=1 // pred_region
      %v20 = vld [vmem:[%s2] sm:$0x1]
      %v22 = vperm.slane %v20, 0
      %vm24 = vcmask 80896
      %25 = vst.msk [vmem:[#allocation2] sm:$0xff] %vm24, %v22
      %26 = vst.msk [vmem:[#allocation2 + $0x8] sm:$0xff] %vm24, %v22
    $region17: #{speech_model_forward.31} parent=1 // pred_fallthru
      _
    %v27 = vld [vmem:[#allocation2] sm:$0xff]
    %v28 = vld [vmem:[#allocation2 + $0x8] sm:$0xff]
    %v29 = vld [vmem:[%s0] sm:$0xff]
    %v30 = vld [vmem:[%s0 + $0x8] sm:$0xff]
    %v31 = vpack.c.bf16 %v30, %v29
    %v32 = vld [vmem:[%s1] sm:$0xff]
    %v33 = vld [vmem:[%s1 + $0x8] sm:$0xff]
    %v34 = vld [vmem:[%s1 + $0x10] sm:$0xff]
    %v35 = vld [vmem:[%s1 + $0x18] sm:$0xff]
    %v36 = vpack.c.bf16 %v33, %v32
    %v37 = vpack.c.bf16 %v35, %v34
    %vm38 = vcmask 261120
    %v40 = vsel %vm38, %v31, 0
    %42 = vmatpush.bf16.msra.mxu0 0
    %43 = vmatpush.bf16.msra.mxu0 0
    %44 = vmatpush.bf16.msra.mxu0 0
    %45 = vmatpush.bf16.msra.mxu0 0
    %46 = vmatpush.bf16.msra.mxu0 0
    %47 = vmatpush.bf16.msra.mxu0 0
    %48 = vmatpush.bf16.msra.mxu0 %v37
    %49 = vmatpush.bf16.msra.mxu0 %v36
    %50 = vmatmul.bf16.gmra.mxu0 %v40
    %v51 = vpop.f32.mrf.mxu0
    %v52 = vadd.f32 0.0, %v51
    %v53 = vpop.f32.mrf.mxu0
    %v54 = vadd.f32 0.0, %v53
    %55 = vdwg.mxu0
    %v56 = vadd.f32 %v27, %v52
    %v57 = vadd.f32 %v28, %v54
    %vm58 = vcmask 80896
    %59 = vst.msk [vmem:[#allocation2] sm:$0xff] %vm58, %v56
    %60 = vst.msk [vmem:[#allocation2 + $0x8] sm:$0xff] %vm58, %v57
    // Predicated region
    $region18: #{speech_model_forward.31} parent=1 // pred_check
      _
    $region19: #{speech_model_forward.31} parent=1 // pred_check_branch
      %62 = sbr.rel (0) target = $region21
    $region20: #{speech_model_forward.31} parent=1 // pred_region
      %64 = vsyncadd [#allocation3], 0
      %s65 = sshll.u32 [#allocation2], 4
      %s66 = int_to_ptr.vmem [resolvable:$true] %s65
      %s67 = sshll.u32 %s3, 4
      %s68 = int_to_ptr.hbm [resolvable:$true] %s67
      %73 = dma.vmem_to_hbm [thread:$0]  %s66, 256, %s68, [#allocation3], 128, 128, 8
    $region21: #{speech_model_forward.31} parent=1 // pred_fallthru
      _
    // Predicated region
    $region22: #{speech_model_forward.31} parent=1 // pred_check
      _
    $region23: #{speech_model_forward.31} parent=1 // pred_check_branch
      %75 = sbr.rel (0) target = $region25
    $region24: #{speech_model_forward.31} parent=1 // pred_region
      %77 = dma.done [#allocation3], 256
    $region25: #{speech_model_forward.31} parent=1 // pred_fallthru
      _
    %78 = vsyncpa [#allocation3], 1

</llo_original>
